<compile_context>
chip_gen: v6e
topology: v6e:2x2x1
jax: 0.10.0
libtpu: 0.0.40
codegen_flags: <defaults>
</compile_context>

<pallas_src>
import math
from functools import partial

import jax
import jax.numpy as jnp
from jax import lax
from jax.experimental import pallas as pl
from jax.experimental.pallas import tpu as pltpu


def _mha_kernel(x_ref, w_in_ref, b_in_ref, w_out_ref, b_out_ref,
                o_ref, qkv_ref, attn_ref, *, num_heads: int, head_dim: int,
                q_tile: int):
    # x_ref: (1, E, S) tile for one batch element; all math in (rows, S) layout.
    E = w_out_ref.shape[0]
    D = head_dim
    S = x_ref.shape[-1]

    # Cast activations to bf16 once; every matmul below is bf16 x bf16 with
    # f32 accumulation (preferred_element_type).
    x = x_ref[0].astype(jnp.bfloat16)                        # (E, S) bf16

    # Fused QKV projection: (3E, E) bf16 @ (E, S) bf16 -> (3E, S) f32.
    # (1/sqrt(D) scale already folded into the Wq / bq rows.)
    qkv_ref[...] = (
        jnp.dot(w_in_ref[...], x, preferred_element_type=jnp.float32)
        + b_in_ref[...])

    def _head_body(h, carry):
        off = pl.multiple_of(h * D, D)                       # sublane-aligned
        kh = qkv_ref[pl.ds(E + off, D), :].astype(jnp.bfloat16)       # (D, S)
        vh = qkv_ref[pl.ds(2 * E + off, D), :].astype(jnp.bfloat16)   # (D, S)

        # Static query tiles: live scores block is (S, q_tile), not (S, S).
        for qoff in range(0, S, q_tile):
            qh = qkv_ref[pl.ds(off, D),
                         pl.ds(qoff, q_tile)].astype(jnp.bfloat16)    # (D, Tq)

            # st[k, q] = sum_d kh[d, k] * qh[d, q]  (transposed scores).
            # Only the skinny (D, S) operand carries the logical transpose.
            st = lax.dot_general(
                kh, qh, dimension_numbers=(((0,), (0,)), ((), ())),
                preferred_element_type=jnp.float32)          # (S, Tq) f32

            # Numerically stable softmax over keys (axis 0), f32;
            # normalization deferred until after the PV matmul.
            m = jnp.max(st, axis=0, keepdims=True)           # (1, Tq)
            p = jnp.exp(st - m)                              # (S, Tq) f32
            l = jnp.sum(p, axis=0, keepdims=True)            # (1, Tq)

            # out[d, q] = sum_k vh[d, k] * p[k, q] — MXU-native (contract
            # lane-of-LHS with sublane-of-RHS), no (S, S) transpose.
            oh = lax.dot_general(
                vh, p.astype(jnp.bfloat16),
                dimension_numbers=(((1,), (0,)), ((), ())),
                preferred_element_type=jnp.float32)          # (D, Tq) f32

            # Deferred normalization: scale the small (D, Tq) result instead
            # of the (S, Tq) probability block.  EUP reciprocal is ~free.
            attn_ref[pl.ds(off, D), pl.ds(qoff, q_tile)] = (
                oh * pl.reciprocal(l, approx=True))
        return carry

    # num_heads is tiny and static: fully unroll for cross-head LLO overlap.
    lax.fori_loop(0, num_heads, _head_body, 0, unroll=True)

    # Output projection: (E, E) bf16 @ (E, S) bf16 -> (E, S) f32, + bias.
    y = (jnp.dot(w_out_ref[...], attn_ref[...].astype(jnp.bfloat16),
                 preferred_element_type=jnp.float32)
         + b_out_ref[...])
    o_ref[0] = y.astype(o_ref.dtype)


def multihead_attention_2d(x_nchw, kernel_params, num_heads: int):
    """x_nchw: (B, C, H, W) float32.  Returns (B, C, H, W)."""
    B, C, H, W = x_nchw.shape
    S, E = H * W, C
    D = E // num_heads
    w_in, b_in, w_out, b_out = kernel_params

    # NCHW is already (B, E, H*W): pure reshape, no transpose.
    x_bes = x_nchw.reshape(B, E, S)

    # Query tile: 128 lanes when S allows, else the whole row.
    q_tile = 128 if S % 128 == 0 else S

    full = lambda shape: pl.BlockSpec(shape, lambda i: (0,) * len(shape))

    y_bes = pl.pallas_call(
        partial(_mha_kernel, num_heads=num_heads, head_dim=D, q_tile=q_tile),
        out_shape=jax.ShapeDtypeStruct((B, E, S), x_bes.dtype),
        grid_spec=pltpu.PrefetchScalarGridSpec(
            num_scalar_prefetch=0,
            grid=(B,),                       # B=2 -> one step per v7x TC
            in_specs=[
                pl.BlockSpec((1, E, S), lambda i: (i, 0, 0)),   # x (lane-dense S)
                full((3 * E, E)),                               # fused W_qkv (bf16)
                full((3 * E, 1)),                               # fused b_qkv (f32)
                full((E, E)),                                   # W_out (bf16)
                full((E, 1)),                                   # b_out (f32)
            ],
            out_specs=pl.BlockSpec((1, E, S), lambda i: (i, 0, 0)),
            scratch_shapes=[
                pltpu.VMEM((3 * E, S), jnp.float32),   # qkv slab (f32: avoids
                pltpu.VMEM((E, S), jnp.float32),       #  bf16 D=8 repacks)
            ],
        ),
        # vmem_limit_bytes dropped: actual use here is <1 MiB; defaults are
        # ample and leave headroom for deeper buffering on v7x.
        compiler_params=pltpu.CompilerParams(
            dimension_semantics=("parallel",),
        ),
    )(x_bes, w_in, b_in, w_out, b_out)

    # (B, E, S) -> NCHW: pure reshape, no transpose.
    return y_bes.reshape(B, C, H, W)


def init_params(key, embed_dim: int):
    """Raw PyTorch-style params: in_proj_weight (3E, E), in_proj_bias (3E,),
    out_proj.weight (E, E), out_proj.bias (E,)."""
    E = embed_dim
    k1, k2, k3 = jax.random.split(key, 3)
    bound = 1.0 / math.sqrt(E)
    in_proj_w = jax.random.uniform(k1, (3 * E, E), jnp.float32, -bound, bound)
    in_proj_b = jax.random.uniform(k2, (3 * E,), jnp.float32, -bound, bound)
    out_w = jax.random.uniform(k3, (E, E), jnp.float32, -bound, bound)
    out_b = jnp.zeros((E,), jnp.float32)
    return in_proj_w, in_proj_b, out_w, out_b


def prepare_kernel_params(raw_params, embed_dim: int, num_heads: int):
    """One-time parameter transform for the (E, S) kernel layout:
    keep (out, in) weight layout (kernel computes W @ x), fold 1/sqrt(D) into
    the Wq / bq rows (in f32), then cast weights to bf16 for the MXU; biases
    stay f32 column vectors."""
    E = embed_dim
    D = E // num_heads
    in_w, in_b, out_w, out_b = raw_params
    scale = jnp.concatenate([
        jnp.full((E,), 1.0 / math.sqrt(D), jnp.float32),
        jnp.ones((2 * E,), jnp.float32)])
    w_in = (in_w * scale[:, None]).astype(jnp.bfloat16)   # (3E, E) bf16
    b_in = (in_b * scale)[:, None]                        # (3E, 1) f32
    w_out = out_w.astype(jnp.bfloat16)                    # (E, E) bf16
    b_out = out_b[:, None]                                # (E, 1) f32
    return w_in, b_in, w_out, b_out


def _reference(x_nchw, raw_params, num_heads):
    """Pure-JAX reference of nn.MultiheadAttention forward (batch_first)."""
    B, C, H, W = x_nchw.shape
    S, E = H * W, C
    D = E // num_heads
    in_w, in_b, out_w, out_b = raw_params
    x = jnp.transpose(x_nchw, (0, 2, 3, 1)).reshape(B, S, E)
    qkv = x @ in_w.T + in_b                 # (B, S, 3E)
    q, k, v = qkv[..., :E], qkv[..., E:2 * E], qkv[..., 2 * E:]
    q = q.reshape(B, S, num_heads, D).transpose(0, 2, 1, 3) / math.sqrt(D)
    k = k.reshape(B, S, num_heads, D).transpose(0, 2, 1, 3)
    v = v.reshape(B, S, num_heads, D).transpose(0, 2, 1, 3)
    s = jnp.einsum("bhqd,bhkd->bhqk", q, k)
    p = jax.nn.softmax(s, axis=-1)
    o = jnp.einsum("bhqk,bhkd->bhqd", p, v)
    o = o.transpose(0, 2, 1, 3).reshape(B, S, E)
    y = o @ out_w.T + out_b
    return jnp.transpose(y.reshape(B, H, W, E), (0, 3, 1, 2))


if __name__ == "__main__":
    B, C, H, W = 2, 32, 16, 16        # embed_dim = C = 32, S = 256
    NUM_HEADS = 4                      # head_dim = 8 (one f32 sublane tile)

    key = jax.random.PRNGKey(0)
    kx, kp = jax.random.split(key)
    x = jax.random.normal(kx, (B, C, H, W), jnp.float32)

    raw_params = init_params(kp, C)
    kernel_params = prepare_kernel_params(raw_params, C, NUM_HEADS)

    y = multihead_attention_2d(x, kernel_params, NUM_HEADS)
    y = jax.block_until_ready(y)

    y_ref = jax.block_until_ready(_reference(x, raw_params, NUM_HEADS))
    assert y.shape == (B, C, H, W)
    assert jnp.allclose(y, y_ref, atol=5e-3, rtol=5e-3), "mismatch vs reference"

    print("KERNEL_OK")
</pallas_src>

<mosaic_0001>
module attributes {stable_mosaic.version = 11 : i64} {
  func.func @_mha_kernel(%arg0: i32, %arg1: memref<1x32x256xf32, #tpu.memory_space<vmem>>, %arg2: memref<96x32xbf16, #tpu.memory_space<vmem>>, %arg3: memref<96x1xf32, #tpu.memory_space<vmem>>, %arg4: memref<32x32xbf16, #tpu.memory_space<vmem>>, %arg5: memref<32x1xf32, #tpu.memory_space<vmem>>, %arg6: memref<1x32x256xf32, #tpu.memory_space<vmem>>, %arg7: memref<96x256xf32, #tpu.memory_space<vmem>>, %arg8: memref<32x256xf32, #tpu.memory_space<vmem>>) attributes {dimension_semantics = [#tpu.dimension_semantics<parallel>], iteration_bounds = array<i64: 2>, scalar_prefetch = 0 : i64, scratch_operands = 2 : i64, tpu.core_type = #tpu.core_type<tc>, window_params = [{transform_indices = @transform_0, window_bounds = array<i64: 1, 32, 256>}, {pipeline_mode = #tpu.pipeline_mode<synchronous>, transform_indices = @transform_1, window_bounds = array<i64: 96, 32>}, {pipeline_mode = #tpu.pipeline_mode<synchronous>, transform_indices = @transform_2, window_bounds = array<i64: 96, 1>}, {pipeline_mode = #tpu.pipeline_mode<synchronous>, transform_indices = @transform_3, window_bounds = array<i64: 32, 32>}, {pipeline_mode = #tpu.pipeline_mode<synchronous>, transform_indices = @transform_4, window_bounds = array<i64: 32, 1>}, {transform_indices = @transform_5, window_bounds = array<i64: 1, 32, 256>}]} {
    %c0 = arith.constant 0 : index
    %c0_0 = arith.constant 0 : index
    %c0_1 = arith.constant 0 : index
    %0 = vector.load %arg1[%c0, %c0_0, %c0_1] : memref<1x32x256xf32, #tpu.memory_space<vmem>>, vector<1x32x256xf32>
    %1 = vector.shape_cast %0 : vector<1x32x256xf32> to vector<32x256xf32>
    %2 = arith.truncf %1 : vector<32x256xf32> to vector<32x256xbf16>
    %c0_2 = arith.constant 0 : index
    %c0_3 = arith.constant 0 : index
    %3 = vector.load %arg2[%c0_2, %c0_3] : memref<96x32xbf16, #tpu.memory_space<vmem>>, vector<96x32xbf16>
    %cst = arith.constant dense<0.000000e+00> : vector<96x256xf32>
    %4 = tpu.matmul %3, %2, %cst {dimension_numbers = #tpu.dot_dimension_numbers<[1], [0], [0], [1], [0, 0, 1, 1], [], []>} : vector<96x32xbf16>, vector<32x256xbf16>, vector<96x256xf32> -> vector<96x256xf32>
    %c0_4 = arith.constant 0 : index
    %c0_5 = arith.constant 0 : index
    %5 = vector.load %arg3[%c0_4, %c0_5] : memref<96x1xf32, #tpu.memory_space<vmem>>, vector<96x1xf32>
    %6 = vector.broadcast %5 : vector<96x1xf32> to vector<96x256xf32>
    %7 = arith.addf %4, %6 : vector<96x256xf32>
    %c0_6 = arith.constant 0 : index
    %c0_7 = arith.constant 0 : index
    %8 = vector.load %arg7[%c0_6, %c0_7] : memref<96x256xf32, #tpu.memory_space<vmem>>, vector<96x256xf32>
    tpu.vector_store %arg7[%c0_6, %c0_7], %7 {strides = array<i32>} : memref<96x256xf32, #tpu.memory_space<vmem>>, vector<96x256xf32>,
    %c0_i32 = arith.constant 0 : i32
    %c8_i32 = arith.constant 8 : i32
    %9 = arith.muli %c0_i32, %c8_i32 : i32
    %10 = tpu.assume_multiple %9, 8 : i32
    %c32_i32 = arith.constant 32 : i32
    %11 = arith.addi %c32_i32, %10 : i32
    %12 = arith.index_cast %11 : i32 to index
    %c0_8 = arith.constant 0 : index
    %13 = vector.load %arg7[%12, %c0_8] : memref<96x256xf32, #tpu.memory_space<vmem>>, vector<8x256xf32>
    %14 = arith.truncf %13 : vector<8x256xf32> to vector<8x256xbf16>
    %c64_i32 = arith.constant 64 : i32
    %15 = arith.addi %c64_i32, %10 : i32
    %16 = arith.index_cast %15 : i32 to index
    %c0_9 = arith.constant 0 : index
    %17 = vector.load %arg7[%16, %c0_9] : memref<96x256xf32, #tpu.memory_space<vmem>>, vector<8x256xf32>
    %18 = arith.truncf %17 : vector<8x256xf32> to vector<8x256xbf16>
    %19 = arith.index_cast %10 : i32 to index
    %c0_10 = arith.constant 0 : index
    %20 = vector.load %arg7[%19, %c0_10] : memref<96x256xf32, #tpu.memory_space<vmem>>, vector<8x128xf32>
    %21 = arith.truncf %20 : vector<8x128xf32> to vector<8x128xbf16>
    %cst_11 = arith.constant dense<0.000000e+00> : vector<256x128xf32>
    %22 = tpu.matmul %14, %21, %cst_11 {dimension_numbers = #tpu.dot_dimension_numbers<[0], [0], [1], [1], [0, 1, 1, 1], [], []>} : vector<8x256xbf16>, vector<8x128xbf16>, vector<256x128xf32> -> vector<256x128xf32>
    %cst_12 = arith.constant dense<0xFF800000> : vector<128xf32>
    %23 = vector.multi_reduction <maximumf>, %22, %cst_12 [0] : vector<256x128xf32> to vector<128xf32>
    %24 = vector.shape_cast %23 : vector<128xf32> to vector<1x128xf32>
    %25 = vector.broadcast %24 : vector<1x128xf32> to vector<256x128xf32>
    %26 = arith.subf %22, %25 : vector<256x128xf32>
    %27 = math.exp %26 : vector<256x128xf32>
    %cst_13 = arith.constant dense<0.000000e+00> : vector<128xf32>
    %28 = vector.multi_reduction <add>, %27, %cst_13 [0] : vector<256x128xf32> to vector<128xf32>
    %29 = vector.shape_cast %28 : vector<128xf32> to vector<1x128xf32>
    %30 = arith.truncf %27 : vector<256x128xf32> to vector<256x128xbf16>
    %cst_14 = arith.constant dense<0.000000e+00> : vector<8x128xf32>
    %31 = tpu.matmul %18, %30, %cst_14 {dimension_numbers = #tpu.dot_dimension_numbers<[1], [0], [0], [1], [0, 0, 1, 1], [], []>} : vector<8x256xbf16>, vector<256x128xbf16>, vector<8x128xf32> -> vector<8x128xf32>
    %32 = tpu.reciprocal %29 {approx = true} : vector<1x128xf32> -> vector<1x128xf32>
    %33 = vector.broadcast %32 : vector<1x128xf32> to vector<8x128xf32>
    %34 = arith.mulf %31, %33 : vector<8x128xf32>
    %35 = arith.index_cast %10 : i32 to index
    %c0_15 = arith.constant 0 : index
    %36 = vector.load %arg8[%35, %c0_15] : memref<32x256xf32, #tpu.memory_space<vmem>>, vector<8x128xf32>
    tpu.vector_store %arg8[%35, %c0_15], %34 {strides = array<i32>} : memref<32x256xf32, #tpu.memory_space<vmem>>, vector<8x128xf32>,
    %37 = arith.index_cast %10 : i32 to index
    %c128 = arith.constant 128 : index
    %38 = vector.load %arg7[%37, %c128] : memref<96x256xf32, #tpu.memory_space<vmem>>, vector<8x128xf32>
    %39 = arith.truncf %38 : vector<8x128xf32> to vector<8x128xbf16>
    %cst_16 = arith.constant dense<0.000000e+00> : vector<256x128xf32>
    %40 = tpu.matmul %14, %39, %cst_16 {dimension_numbers = #tpu.dot_dimension_numbers<[0], [0], [1], [1], [0, 1, 1, 1], [], []>} : vector<8x256xbf16>, vector<8x128xbf16>, vector<256x128xf32> -> vector<256x128xf32>
    %cst_17 = arith.constant dense<0xFF800000> : vector<128xf32>
    %41 = vector.multi_reduction <maximumf>, %40, %cst_17 [0] : vector<256x128xf32> to vector<128xf32>
    %42 = vector.shape_cast %41 : vector<128xf32> to vector<1x128xf32>
    %43 = vector.broadcast %42 : vector<1x128xf32> to vector<256x128xf32>
    %44 = arith.subf %40, %43 : vector<256x128xf32>
    %45 = math.exp %44 : vector<256x128xf32>
    %cst_18 = arith.constant dense<0.000000e+00> : vector<128xf32>
    %46 = vector.multi_reduction <add>, %45, %cst_18 [0] : vector<256x128xf32> to vector<128xf32>
    %47 = vector.shape_cast %46 : vector<128xf32> to vector<1x128xf32>
    %48 = arith.truncf %45 : vector<256x128xf32> to vector<256x128xbf16>
    %cst_19 = arith.constant dense<0.000000e+00> : vector<8x128xf32>
    %49 = tpu.matmul %18, %48, %cst_19 {dimension_numbers = #tpu.dot_dimension_numbers<[1], [0], [0], [1], [0, 0, 1, 1], [], []>} : vector<8x256xbf16>, vector<256x128xbf16>, vector<8x128xf32> -> vector<8x128xf32>
    %50 = tpu.reciprocal %47 {approx = true} : vector<1x128xf32> -> vector<1x128xf32>
    %51 = vector.broadcast %50 : vector<1x128xf32> to vector<8x128xf32>
    %52 = arith.mulf %49, %51 : vector<8x128xf32>
    %53 = arith.index_cast %10 : i32 to index
    %c128_20 = arith.constant 128 : index
    %54 = vector.load %arg8[%53, %c128_20] : memref<32x256xf32, #tpu.memory_space<vmem>>, vector<8x128xf32>
    tpu.vector_store %arg8[%53, %c128_20], %52 {strides = array<i32>} : memref<32x256xf32, #tpu.memory_space<vmem>>, vector<8x128xf32>,
    %c1_i32 = arith.constant 1 : i32
    %c8_i32_21 = arith.constant 8 : i32
    %55 = arith.muli %c1_i32, %c8_i32_21 : i32
    %56 = tpu.assume_multiple %55, 8 : i32
    %c32_i32_22 = arith.constant 32 : i32
    %57 = arith.addi %c32_i32_22, %56 : i32
    %58 = arith.index_cast %57 : i32 to index
    %c0_23 = arith.constant 0 : index
    %59 = vector.load %arg7[%58, %c0_23] : memref<96x256xf32, #tpu.memory_space<vmem>>, vector<8x256xf32>
    %60 = arith.truncf %59 : vector<8x256xf32> to vector<8x256xbf16>
    %c64_i32_24 = arith.constant 64 : i32
    %61 = arith.addi %c64_i32_24, %56 : i32
    %62 = arith.index_cast %61 : i32 to index
    %c0_25 = arith.constant 0 : index
    %63 = vector.load %arg7[%62, %c0_25] : memref<96x256xf32, #tpu.memory_space<vmem>>, vector<8x256xf32>
    %64 = arith.truncf %63 : vector<8x256xf32> to vector<8x256xbf16>
    %65 = arith.index_cast %56 : i32 to index
    %c0_26 = arith.constant 0 : index
    %66 = vector.load %arg7[%65, %c0_26] : memref<96x256xf32, #tpu.memory_space<vmem>>, vector<8x128xf32>
    %67 = arith.truncf %66 : vector<8x128xf32> to vector<8x128xbf16>
    %cst_27 = arith.constant dense<0.000000e+00> : vector<256x128xf32>
    %68 = tpu.matmul %60, %67, %cst_27 {dimension_numbers = #tpu.dot_dimension_numbers<[0], [0], [1], [1], [0, 1, 1, 1], [], []>} : vector<8x256xbf16>, vector<8x128xbf16>, vector<256x128xf32> -> vector<256x128xf32>
    %cst_28 = arith.constant dense<0xFF800000> : vector<128xf32>
    %69 = vector.multi_reduction <maximumf>, %68, %cst_28 [0] : vector<256x128xf32> to vector<128xf32>
    %70 = vector.shape_cast %69 : vector<128xf32> to vector<1x128xf32>
    %71 = vector.broadcast %70 : vector<1x128xf32> to vector<256x128xf32>
    %72 = arith.subf %68, %71 : vector<256x128xf32>
    %73 = math.exp %72 : vector<256x128xf32>
    %cst_29 = arith.constant dense<0.000000e+00> : vector<128xf32>
    %74 = vector.multi_reduction <add>, %73, %cst_29 [0] : vector<256x128xf32> to vector<128xf32>
    %75 = vector.shape_cast %74 : vector<128xf32> to vector<1x128xf32>
    %76 = arith.truncf %73 : vector<256x128xf32> to vector<256x128xbf16>
    %cst_30 = arith.constant dense<0.000000e+00> : vector<8x128xf32>
    %77 = tpu.matmul %64, %76, %cst_30 {dimension_numbers = #tpu.dot_dimension_numbers<[1], [0], [0], [1], [0, 0, 1, 1], [], []>} : vector<8x256xbf16>, vector<256x128xbf16>, vector<8x128xf32> -> vector<8x128xf32>
    %78 = tpu.reciprocal %75 {approx = true} : vector<1x128xf32> -> vector<1x128xf32>
    %79 = vector.broadcast %78 : vector<1x128xf32> to vector<8x128xf32>
    %80 = arith.mulf %77, %79 : vector<8x128xf32>
    %81 = arith.index_cast %56 : i32 to index
    %c0_31 = arith.constant 0 : index
    %82 = vector.load %arg8[%81, %c0_31] : memref<32x256xf32, #tpu.memory_space<vmem>>, vector<8x128xf32>
    tpu.vector_store %arg8[%81, %c0_31], %80 {strides = array<i32>} : memref<32x256xf32, #tpu.memory_space<vmem>>, vector<8x128xf32>,
    %83 = arith.index_cast %56 : i32 to index
    %c128_32 = arith.constant 128 : index
    %84 = vector.load %arg7[%83, %c128_32] : memref<96x256xf32, #tpu.memory_space<vmem>>, vector<8x128xf32>
    %85 = arith.truncf %84 : vector<8x128xf32> to vector<8x128xbf16>
    %cst_33 = arith.constant dense<0.000000e+00> : vector<256x128xf32>
    %86 = tpu.matmul %60, %85, %cst_33 {dimension_numbers = #tpu.dot_dimension_numbers<[0], [0], [1], [1], [0, 1, 1, 1], [], []>} : vector<8x256xbf16>, vector<8x128xbf16>, vector<256x128xf32> -> vector<256x128xf32>
    %cst_34 = arith.constant dense<0xFF800000> : vector<128xf32>
    %87 = vector.multi_reduction <maximumf>, %86, %cst_34 [0] : vector<256x128xf32> to vector<128xf32>
    %88 = vector.shape_cast %87 : vector<128xf32> to vector<1x128xf32>
    %89 = vector.broadcast %88 : vector<1x128xf32> to vector<256x128xf32>
    %90 = arith.subf %86, %89 : vector<256x128xf32>
    %91 = math.exp %90 : vector<256x128xf32>
    %cst_35 = arith.constant dense<0.000000e+00> : vector<128xf32>
    %92 = vector.multi_reduction <add>, %91, %cst_35 [0] : vector<256x128xf32> to vector<128xf32>
    %93 = vector.shape_cast %92 : vector<128xf32> to vector<1x128xf32>
    %94 = arith.truncf %91 : vector<256x128xf32> to vector<256x128xbf16>
    %cst_36 = arith.constant dense<0.000000e+00> : vector<8x128xf32>
    %95 = tpu.matmul %64, %94, %cst_36 {dimension_numbers = #tpu.dot_dimension_numbers<[1], [0], [0], [1], [0, 0, 1, 1], [], []>} : vector<8x256xbf16>, vector<256x128xbf16>, vector<8x128xf32> -> vector<8x128xf32>
    %96 = tpu.reciprocal %93 {approx = true} : vector<1x128xf32> -> vector<1x128xf32>
    %97 = vector.broadcast %96 : vector<1x128xf32> to vector<8x128xf32>
    %98 = arith.mulf %95, %97 : vector<8x128xf32>
    %99 = arith.index_cast %56 : i32 to index
    %c128_37 = arith.constant 128 : index
    %100 = vector.load %arg8[%99, %c128_37] : memref<32x256xf32, #tpu.memory_space<vmem>>, vector<8x128xf32>
    tpu.vector_store %arg8[%99, %c128_37], %98 {strides = array<i32>} : memref<32x256xf32, #tpu.memory_space<vmem>>, vector<8x128xf32>,
    %c2_i32 = arith.constant 2 : i32
    %c8_i32_38 = arith.constant 8 : i32
    %101 = arith.muli %c2_i32, %c8_i32_38 : i32
    %102 = tpu.assume_multiple %101, 8 : i32
    %c32_i32_39 = arith.constant 32 : i32
    %103 = arith.addi %c32_i32_39, %102 : i32
    %104 = arith.index_cast %103 : i32 to index
    %c0_40 = arith.constant 0 : index
    %105 = vector.load %arg7[%104, %c0_40] : memref<96x256xf32, #tpu.memory_space<vmem>>, vector<8x256xf32>
    %106 = arith.truncf %105 : vector<8x256xf32> to vector<8x256xbf16>
    %c64_i32_41 = arith.constant 64 : i32
    %107 = arith.addi %c64_i32_41, %102 : i32
    %108 = arith.index_cast %107 : i32 to index
    %c0_42 = arith.constant 0 : index
    %109 = vector.load %arg7[%108, %c0_42] : memref<96x256xf32, #tpu.memory_space<vmem>>, vector<8x256xf32>
    %110 = arith.truncf %109 : vector<8x256xf32> to vector<8x256xbf16>
    %111 = arith.index_cast %102 : i32 to index
    %c0_43 = arith.constant 0 : index
    %112 = vector.load %arg7[%111, %c0_43] : memref<96x256xf32, #tpu.memory_space<vmem>>, vector<8x128xf32>
    %113 = arith.truncf %112 : vector<8x128xf32> to vector<8x128xbf16>
    %cst_44 = arith.constant dense<0.000000e+00> : vector<256x128xf32>
    %114 = tpu.matmul %106, %113, %cst_44 {dimension_numbers = #tpu.dot_dimension_numbers<[0], [0], [1], [1], [0, 1, 1, 1], [], []>} : vector<8x256xbf16>, vector<8x128xbf16>, vector<256x128xf32> -> vector<256x128xf32>
    %cst_45 = arith.constant dense<0xFF800000> : vector<128xf32>
    %115 = vector.multi_reduction <maximumf>, %114, %cst_45 [0] : vector<256x128xf32> to vector<128xf32>
    %116 = vector.shape_cast %115 : vector<128xf32> to vector<1x128xf32>
    %117 = vector.broadcast %116 : vector<1x128xf32> to vector<256x128xf32>
    %118 = arith.subf %114, %117 : vector<256x128xf32>
    %119 = math.exp %118 : vector<256x128xf32>
    %cst_46 = arith.constant dense<0.000000e+00> : vector<128xf32>
    %120 = vector.multi_reduction <add>, %119, %cst_46 [0] : vector<256x128xf32> to vector<128xf32>
    %121 = vector.shape_cast %120 : vector<128xf32> to vector<1x128xf32>
    %122 = arith.truncf %119 : vector<256x128xf32> to vector<256x128xbf16>
    %cst_47 = arith.constant dense<0.000000e+00> : vector<8x128xf32>
    %123 = tpu.matmul %110, %122, %cst_47 {dimension_numbers = #tpu.dot_dimension_numbers<[1], [0], [0], [1], [0, 0, 1, 1], [], []>} : vector<8x256xbf16>, vector<256x128xbf16>, vector<8x128xf32> -> vector<8x128xf32>
    %124 = tpu.reciprocal %121 {approx = true} : vector<1x128xf32> -> vector<1x128xf32>
    %125 = vector.broadcast %124 : vector<1x128xf32> to vector<8x128xf32>
    %126 = arith.mulf %123, %125 : vector<8x128xf32>
    %127 = arith.index_cast %102 : i32 to index
    %c0_48 = arith.constant 0 : index
    %128 = vector.load %arg8[%127, %c0_48] : memref<32x256xf32, #tpu.memory_space<vmem>>, vector<8x128xf32>
    tpu.vector_store %arg8[%127, %c0_48], %126 {strides = array<i32>} : memref<32x256xf32, #tpu.memory_space<vmem>>, vector<8x128xf32>,
    %129 = arith.index_cast %102 : i32 to index
    %c128_49 = arith.constant 128 : index
    %130 = vector.load %arg7[%129, %c128_49] : memref<96x256xf32, #tpu.memory_space<vmem>>, vector<8x128xf32>
    %131 = arith.truncf %130 : vector<8x128xf32> to vector<8x128xbf16>
    %cst_50 = arith.constant dense<0.000000e+00> : vector<256x128xf32>
    %132 = tpu.matmul %106, %131, %cst_50 {dimension_numbers = #tpu.dot_dimension_numbers<[0], [0], [1], [1], [0, 1, 1, 1], [], []>} : vector<8x256xbf16>, vector<8x128xbf16>, vector<256x128xf32> -> vector<256x128xf32>
    %cst_51 = arith.constant dense<0xFF800000> : vector<128xf32>
    %133 = vector.multi_reduction <maximumf>, %132, %cst_51 [0] : vector<256x128xf32> to vector<128xf32>
    %134 = vector.shape_cast %133 : vector<128xf32> to vector<1x128xf32>
    %135 = vector.broadcast %134 : vector<1x128xf32> to vector<256x128xf32>
    %136 = arith.subf %132, %135 : vector<256x128xf32>
    %137 = math.exp %136 : vector<256x128xf32>
    %cst_52 = arith.constant dense<0.000000e+00> : vector<128xf32>
    %138 = vector.multi_reduction <add>, %137, %cst_52 [0] : vector<256x128xf32> to vector<128xf32>
    %139 = vector.shape_cast %138 : vector<128xf32> to vector<1x128xf32>
    %140 = arith.truncf %137 : vector<256x128xf32> to vector<256x128xbf16>
    %cst_53 = arith.constant dense<0.000000e+00> : vector<8x128xf32>
    %141 = tpu.matmul %110, %140, %cst_53 {dimension_numbers = #tpu.dot_dimension_numbers<[1], [0], [0], [1], [0, 0, 1, 1], [], []>} : vector<8x256xbf16>, vector<256x128xbf16>, vector<8x128xf32> -> vector<8x128xf32>
    %142 = tpu.reciprocal %139 {approx = true} : vector<1x128xf32> -> vector<1x128xf32>
    %143 = vector.broadcast %142 : vector<1x128xf32> to vector<8x128xf32>
    %144 = arith.mulf %141, %143 : vector<8x128xf32>
    %145 = arith.index_cast %102 : i32 to index
    %c128_54 = arith.constant 128 : index
    %146 = vector.load %arg8[%145, %c128_54] : memref<32x256xf32, #tpu.memory_space<vmem>>, vector<8x128xf32>
    tpu.vector_store %arg8[%145, %c128_54], %144 {strides = array<i32>} : memref<32x256xf32, #tpu.memory_space<vmem>>, vector<8x128xf32>,
    %c3_i32 = arith.constant 3 : i32
    %c8_i32_55 = arith.constant 8 : i32
    %147 = arith.muli %c3_i32, %c8_i32_55 : i32
    %148 = tpu.assume_multiple %147, 8 : i32
    %c32_i32_56 = arith.constant 32 : i32
    %149 = arith.addi %c32_i32_56, %148 : i32
    %150 = arith.index_cast %149 : i32 to index
    %c0_57 = arith.constant 0 : index
    %151 = vector.load %arg7[%150, %c0_57] : memref<96x256xf32, #tpu.memory_space<vmem>>, vector<8x256xf32>
    %152 = arith.truncf %151 : vector<8x256xf32> to vector<8x256xbf16>
    %c64_i32_58 = arith.constant 64 : i32
    %153 = arith.addi %c64_i32_58, %148 : i32
    %154 = arith.index_cast %153 : i32 to index
    %c0_59 = arith.constant 0 : index
    %155 = vector.load %arg7[%154, %c0_59] : memref<96x256xf32, #tpu.memory_space<vmem>>, vector<8x256xf32>
    %156 = arith.truncf %155 : vector<8x256xf32> to vector<8x256xbf16>
    %157 = arith.index_cast %148 : i32 to index
    %c0_60 = arith.constant 0 : index
    %158 = vector.load %arg7[%157, %c0_60] : memref<96x256xf32, #tpu.memory_space<vmem>>, vector<8x128xf32>
    %159 = arith.truncf %158 : vector<8x128xf32> to vector<8x128xbf16>
    %cst_61 = arith.constant dense<0.000000e+00> : vector<256x128xf32>
    %160 = tpu.matmul %152, %159, %cst_61 {dimension_numbers = #tpu.dot_dimension_numbers<[0], [0], [1], [1], [0, 1, 1, 1], [], []>} : vector<8x256xbf16>, vector<8x128xbf16>, vector<256x128xf32> -> vector<256x128xf32>
    %cst_62 = arith.constant dense<0xFF800000> : vector<128xf32>
    %161 = vector.multi_reduction <maximumf>, %160, %cst_62 [0] : vector<256x128xf32> to vector<128xf32>
    %162 = vector.shape_cast %161 : vector<128xf32> to vector<1x128xf32>
    %163 = vector.broadcast %162 : vector<1x128xf32> to vector<256x128xf32>
    %164 = arith.subf %160, %163 : vector<256x128xf32>
    %165 = math.exp %164 : vector<256x128xf32>
    %cst_63 = arith.constant dense<0.000000e+00> : vector<128xf32>
    %166 = vector.multi_reduction <add>, %165, %cst_63 [0] : vector<256x128xf32> to vector<128xf32>
    %167 = vector.shape_cast %166 : vector<128xf32> to vector<1x128xf32>
    %168 = arith.truncf %165 : vector<256x128xf32> to vector<256x128xbf16>
    %cst_64 = arith.constant dense<0.000000e+00> : vector<8x128xf32>
    %169 = tpu.matmul %156, %168, %cst_64 {dimension_numbers = #tpu.dot_dimension_numbers<[1], [0], [0], [1], [0, 0, 1, 1], [], []>} : vector<8x256xbf16>, vector<256x128xbf16>, vector<8x128xf32> -> vector<8x128xf32>
    %170 = tpu.reciprocal %167 {approx = true} : vector<1x128xf32> -> vector<1x128xf32>
    %171 = vector.broadcast %170 : vector<1x128xf32> to vector<8x128xf32>
    %172 = arith.mulf %169, %171 : vector<8x128xf32>
    %173 = arith.index_cast %148 : i32 to index
    %c0_65 = arith.constant 0 : index
    %174 = vector.load %arg8[%173, %c0_65] : memref<32x256xf32, #tpu.memory_space<vmem>>, vector<8x128xf32>
    tpu.vector_store %arg8[%173, %c0_65], %172 {strides = array<i32>} : memref<32x256xf32, #tpu.memory_space<vmem>>, vector<8x128xf32>,
    %175 = arith.index_cast %148 : i32 to index
    %c128_66 = arith.constant 128 : index
    %176 = vector.load %arg7[%175, %c128_66] : memref<96x256xf32, #tpu.memory_space<vmem>>, vector<8x128xf32>
    %177 = arith.truncf %176 : vector<8x128xf32> to vector<8x128xbf16>
    %cst_67 = arith.constant dense<0.000000e+00> : vector<256x128xf32>
    %178 = tpu.matmul %152, %177, %cst_67 {dimension_numbers = #tpu.dot_dimension_numbers<[0], [0], [1], [1], [0, 1, 1, 1], [], []>} : vector<8x256xbf16>, vector<8x128xbf16>, vector<256x128xf32> -> vector<256x128xf32>
    %cst_68 = arith.constant dense<0xFF800000> : vector<128xf32>
    %179 = vector.multi_reduction <maximumf>, %178, %cst_68 [0] : vector<256x128xf32> to vector<128xf32>
    %180 = vector.shape_cast %179 : vector<128xf32> to vector<1x128xf32>
    %181 = vector.broadcast %180 : vector<1x128xf32> to vector<256x128xf32>
    %182 = arith.subf %178, %181 : vector<256x128xf32>
    %183 = math.exp %182 : vector<256x128xf32>
    %cst_69 = arith.constant dense<0.000000e+00> : vector<128xf32>
    %184 = vector.multi_reduction <add>, %183, %cst_69 [0] : vector<256x128xf32> to vector<128xf32>
    %185 = vector.shape_cast %184 : vector<128xf32> to vector<1x128xf32>
    %186 = arith.truncf %183 : vector<256x128xf32> to vector<256x128xbf16>
    %cst_70 = arith.constant dense<0.000000e+00> : vector<8x128xf32>
    %187 = tpu.matmul %156, %186, %cst_70 {dimension_numbers = #tpu.dot_dimension_numbers<[1], [0], [0], [1], [0, 0, 1, 1], [], []>} : vector<8x256xbf16>, vector<256x128xbf16>, vector<8x128xf32> -> vector<8x128xf32>
    %188 = tpu.reciprocal %185 {approx = true} : vector<1x128xf32> -> vector<1x128xf32>
    %189 = vector.broadcast %188 : vector<1x128xf32> to vector<8x128xf32>
    %190 = arith.mulf %187, %189 : vector<8x128xf32>
    %191 = arith.index_cast %148 : i32 to index
    %c128_71 = arith.constant 128 : index
    %192 = vector.load %arg8[%191, %c128_71] : memref<32x256xf32, #tpu.memory_space<vmem>>, vector<8x128xf32>
    tpu.vector_store %arg8[%191, %c128_71], %190 {strides = array<i32>} : memref<32x256xf32, #tpu.memory_space<vmem>>, vector<8x128xf32>,
    %c4_i32 = arith.constant 4 : i32
    %c0_72 = arith.constant 0 : index
    %c0_73 = arith.constant 0 : index
    %193 = vector.load %arg4[%c0_72, %c0_73] : memref<32x32xbf16, #tpu.memory_space<vmem>>, vector<32x32xbf16>
    %c0_74 = arith.constant 0 : index
    %c0_75 = arith.constant 0 : index
    %194 = vector.load %arg8[%c0_74, %c0_75] : memref<32x256xf32, #tpu.memory_space<vmem>>, vector<32x256xf32>
    %195 = arith.truncf %194 : vector<32x256xf32> to vector<32x256xbf16>
    %cst_76 = arith.constant dense<0.000000e+00> : vector<32x256xf32>
    %196 = tpu.matmul %193, %195, %cst_76 {dimension_numbers = #tpu.dot_dimension_numbers<[1], [0], [0], [1], [0, 0, 1, 1], [], []>} : vector<32x32xbf16>, vector<32x256xbf16>, vector<32x256xf32> -> vector<32x256xf32>
    %c0_77 = arith.constant 0 : index
    %c0_78 = arith.constant 0 : index
    %197 = vector.load %arg5[%c0_77, %c0_78] : memref<32x1xf32, #tpu.memory_space<vmem>>, vector<32x1xf32>
    %198 = vector.broadcast %197 : vector<32x1xf32> to vector<32x256xf32>
    %199 = arith.addf %196, %198 : vector<32x256xf32>
    %c0_79 = arith.constant 0 : index
    %c0_80 = arith.constant 0 : index
    %c0_81 = arith.constant 0 : index
    %200 = vector.load %arg6[%c0_79, %c0_80, %c0_81] : memref<1x32x256xf32, #tpu.memory_space<vmem>>, vector<1x32x256xf32>
    %201 = vector.shape_cast %200 : vector<1x32x256xf32> to vector<32x256xf32>
    %202 = vector.shape_cast %199 : vector<32x256xf32> to vector<1x32x256xf32>
    tpu.vector_store %arg6[%c0_79, %c0_80, %c0_81], %202 {strides = array<i32>} : memref<1x32x256xf32, #tpu.memory_space<vmem>>, vector<1x32x256xf32>,
    return
  }
  func.func @transform_0(%arg0: i32) -> (i32, i32, i32) {
    %c0_i32 = arith.constant 0 : i32
    %c0_i32_0 = arith.constant 0 : i32
    %c0_i32_1 = arith.constant 0 : i32
    return %arg0, %c0_i32, %c0_i32_0 : i32, i32, i32
  }
  func.func @transform_1(%arg0: i32) -> (i32, i32) {
    %c0_i32 = arith.constant 0 : i32
    %c0_i32_0 = arith.constant 0 : i32
    %c0_i32_1 = arith.constant 0 : i32
    return %c0_i32, %c0_i32_0 : i32, i32
  }
  func.func @transform_2(%arg0: i32) -> (i32, i32) {
    %c0_i32 = arith.constant 0 : i32
    %c0_i32_0 = arith.constant 0 : i32
    %c0_i32_1 = arith.constant 0 : i32
    return %c0_i32, %c0_i32_0 : i32, i32
  }
  func.func @transform_3(%arg0: i32) -> (i32, i32) {
    %c0_i32 = arith.constant 0 : i32
    %c0_i32_0 = arith.constant 0 : i32
    %c0_i32_1 = arith.constant 0 : i32
    return %c0_i32, %c0_i32_0 : i32, i32
  }
  func.func @transform_4(%arg0: i32) -> (i32, i32) {
    %c0_i32 = arith.constant 0 : i32
    %c0_i32_0 = arith.constant 0 : i32
    %c0_i32_1 = arith.constant 0 : i32
    return %c0_i32, %c0_i32_0 : i32, i32
  }
  func.func @transform_5(%arg0: i32) -> (i32, i32, i32) {
    %c0_i32 = arith.constant 0 : i32
    %c0_i32_0 = arith.constant 0 : i32
    %c0_i32_1 = arith.constant 0 : i32
    return %arg0, %c0_i32, %c0_i32_0 : i32, i32, i32
  }
}

</mosaic_0001>

<llo_original>
// kernel: tpu_custom_call.1
$region0: #{tpu_custom_call.1}
  #allocation0 [shape = 'u32[]', space=smem, size = 0x4, offset = 0x4, fixed_abs, tag = 'smem constant byte address 0x4 - core index']
  #allocation1 [shape = 'u32[144,128]{1,0:T(1,128)}', space=vmem, size = 0x12000, scoped, tag = 'internal scratch']
  #allocation2 [shape = 'f32[96,256]{1,0:T(8,128)}', space=vmem, size = 0x18000, scoped, tag = 'scratch operand']
  #allocation3 [shape = 'f32[32,256]{1,0:T(8,128)}', space=vmem, size = 0x8000, scoped, tag = 'scratch operand']
  %s0 = inlined_call_operand.vmem [shape: f32[2,32,256], index: 0, kind: input, shape index: {}]
  %s1 = inlined_call_operand.vmem [shape: bf16[96,32], index: 1, kind: input, shape index: {}]
  %s2 = inlined_call_operand.vmem [shape: f32[96,1], index: 2, kind: input, shape index: {}]
  %s3 = inlined_call_operand.vmem [shape: bf16[32,32], index: 3, kind: input, shape index: {}]
  %s4 = inlined_call_operand.vmem [shape: f32[32,1], index: 4, kind: input, shape index: {}]
  %s5 = inlined_call_operand.hbm [shape: f32[2,32,256], index: 5, kind: output, shape index: {}]
  %s6 = sld [smem:[#allocation0]]
  $region53: #{tpu_custom_call.1} parent=0
    _
  %s8 = ssub.s32 1, %s6
  %s9 = scalar_select 0, %s8, %s6
  $region1: #{tpu_custom_call.1} parent=0
    #allocation4 [shape = 'u8[65536]{0}', space=vmem, size = 0x10000, scoped, tag = 'output window, operand 0']
    #allocation5 [shape = 's32[2]{0}', space=sflag, size = 0x8, scoped, tag = 'scoped memory for tpu_custom_call.1']
    %10 = vsyncpa [#allocation5], 0
    %s11 = scalar_lea.sflag [#allocation5], 1
    %12 = vsyncpa %s11, 0
    loop: start=0, step=1, limit=4
    $region2: #{tpu_custom_call.1} parent=1 // loop_pre_header
      _
    $region3: #{tpu_custom_call.1} parent=1 // loop_header
      %s14 = sphi 0, %s18
      %p15 = scmp.ge.s32.totalorder %s14, 4
      %s24 = sphi 0, %s26
      %s27 = sphi 0, %s24
      %s28 = sphi 0, %s27
      %s44 = sphi 0, %s28
      %s48 = sphi 0, %s48
      %s50 = sphi 0, %s48
      %s51 = sphi 0, %s50
      %s65 = sphi 0, %s51
      %s69 = sphi 0, %s69
      %s71 = sphi 0, %s69
      %s72 = sphi 0, %s71
      %s86 = sphi 0, %s72
      %s90 = sphi 0, %s90
      %s92 = sphi 0, %s90
      %s93 = sphi 0, %s92
      %s107 = sphi 0, %s93
      %s111 = sphi 0, %s111
      %s113 = sphi 0, %s111
      %s114 = sphi 0, %s113
      %s128 = sphi 0, %s114
      %s134 = sphi 0, %s136
      %s137 = sphi 0, %s134
      %s138 = sphi 0, %s137
      %s154 = sphi 0, %s138
    $region4: #{tpu_custom_call.1} parent=1 // loop_header_branch
      %17 = sbr.rel (%p15) target = $region8
    $region5: #{tpu_custom_call.1} parent=1 // loop_body
      %s19 = ssub.s32 %s14, 1
      %s20 = ssub.s32 %s14, 2
      %s21 = sadd.s32 %s14, 1
      %s22 = ssub.s32 %s14, %s21
      %p23 = scmp.eq.s32.totalorder %s22, 0
      %s25 = sadd.s32 %s24, 1
      %s26 = scalar_select %p23, %s24, %s25
      %p29 = pneg %p23
      %p30 = scmp.eq.s32.totalorder %s14, 1
      %p31 = por %p29, %p30
      %p32 = scmp.ne.s32.totalorder %s24, %s27
      %p33 = scmp.eq.s32.totalorder %s14, 0
      %p34 = por %p32, %p33
      %p35 = scmp.ne.s32.totalorder %s24, %s27
      %p36 = scmp.eq.s32.totalorder %s19, 1
      %p37 = por %p35, %p36
      %p38 = scmp.ne.s32.totalorder %s27, %s28
      %p39 = scmp.eq.s32.totalorder %s19, 0
      %p40 = por %p38, %p39
      %p41 = scmp.ne.s32.totalorder %s27, %s28
      %p42 = scmp.eq.s32.totalorder %s20, 1
      %p43 = por %p41, %p42
      %p45 = scmp.ne.s32.totalorder %s28, %s44
      %p46 = scmp.eq.s32.totalorder %s20, 0
      %p47 = por %p45, %p46
      %s49 = sadd.s32 %s48, 1
      %p52 = scmp.eq.s32.totalorder %s14, 1
      %p53 = scmp.ne.s32.totalorder %s48, %s50
      %p54 = scmp.eq.s32.totalorder %s14, 0
      %p55 = por %p53, %p54
      %p56 = scmp.ne.s32.totalorder %s48, %s50
      %p57 = scmp.eq.s32.totalorder %s19, 1
      %p58 = por %p56, %p57
      %p59 = scmp.ne.s32.totalorder %s50, %s51
      %p60 = scmp.eq.s32.totalorder %s19, 0
      %p61 = por %p59, %p60
      %p62 = scmp.ne.s32.totalorder %s50, %s51
      %p63 = scmp.eq.s32.totalorder %s20, 1
      %p64 = por %p62, %p63
      %p66 = scmp.ne.s32.totalorder %s51, %s65
      %p67 = scmp.eq.s32.totalorder %s20, 0
      %p68 = por %p66, %p67
      %s70 = sadd.s32 %s69, 1
      %p73 = scmp.eq.s32.totalorder %s14, 1
      %p74 = scmp.ne.s32.totalorder %s69, %s71
      %p75 = scmp.eq.s32.totalorder %s14, 0
      %p76 = por %p74, %p75
      %p77 = scmp.ne.s32.totalorder %s69, %s71
      %p78 = scmp.eq.s32.totalorder %s19, 1
      %p79 = por %p77, %p78
      %p80 = scmp.ne.s32.totalorder %s71, %s72
      %p81 = scmp.eq.s32.totalorder %s19, 0
      %p82 = por %p80, %p81
      %p83 = scmp.ne.s32.totalorder %s71, %s72
      %p84 = scmp.eq.s32.totalorder %s20, 1
      %p85 = por %p83, %p84
      %p87 = scmp.ne.s32.totalorder %s72, %s86
      %p88 = scmp.eq.s32.totalorder %s20, 0
      %p89 = por %p87, %p88
      %s91 = sadd.s32 %s90, 1
      %p94 = scmp.eq.s32.totalorder %s14, 1
      %p95 = scmp.ne.s32.totalorder %s90, %s92
      %p96 = scmp.eq.s32.totalorder %s14, 0
      %p97 = por %p95, %p96
      %p98 = scmp.ne.s32.totalorder %s90, %s92
      %p99 = scmp.eq.s32.totalorder %s19, 1
      %p100 = por %p98, %p99
      %p101 = scmp.ne.s32.totalorder %s92, %s93
      %p102 = scmp.eq.s32.totalorder %s19, 0
      %p103 = por %p101, %p102
      %p104 = scmp.ne.s32.totalorder %s92, %s93
      %p105 = scmp.eq.s32.totalorder %s20, 1
      %p106 = por %p104, %p105
      %p108 = scmp.ne.s32.totalorder %s93, %s107
      %p109 = scmp.eq.s32.totalorder %s20, 0
      %p110 = por %p108, %p109
      %s112 = sadd.s32 %s111, 1
      %p115 = scmp.eq.s32.totalorder %s14, 1
      %p116 = scmp.ne.s32.totalorder %s111, %s113
      %p117 = scmp.eq.s32.totalorder %s14, 0
      %p118 = por %p116, %p117
      %p119 = scmp.ne.s32.totalorder %s111, %s113
      %p120 = scmp.eq.s32.totalorder %s19, 1
      %p121 = por %p119, %p120
      %p122 = scmp.ne.s32.totalorder %s113, %s114
      %p123 = scmp.eq.s32.totalorder %s19, 0
      %p124 = por %p122, %p123
      %p125 = scmp.ne.s32.totalorder %s113, %s114
      %p126 = scmp.eq.s32.totalorder %s20, 1
      %p127 = por %p125, %p126
      %p129 = scmp.ne.s32.totalorder %s114, %s128
      %p130 = scmp.eq.s32.totalorder %s20, 0
      %p131 = por %p129, %p130
      %s132 = ssub.s32 %s14, %s21
      %p133 = scmp.eq.s32.totalorder %s132, 0
      %s135 = sadd.s32 %s134, 1
      %s136 = scalar_select %p133, %s134, %s135
      %p139 = pneg %p133
      %p140 = scmp.eq.s32.totalorder %s14, 1
      %p141 = por %p139, %p140
      %p142 = scmp.ne.s32.totalorder %s134, %s137
      %p143 = scmp.eq.s32.totalorder %s14, 0
      %p144 = por %p142, %p143
      %p145 = scmp.ne.s32.totalorder %s134, %s137
      %p146 = scmp.eq.s32.totalorder %s19, 1
      %p147 = por %p145, %p146
      %p148 = scmp.ne.s32.totalorder %s137, %s138
      %p149 = scmp.eq.s32.totalorder %s19, 0
      %p150 = por %p148, %p149
      %p151 = scmp.ne.s32.totalorder %s137, %s138
      %p152 = scmp.eq.s32.totalorder %s20, 1
      %p153 = por %p151, %p152
      %p155 = scmp.ne.s32.totalorder %s138, %s154
      %p156 = scmp.eq.s32.totalorder %s20, 0
      %p157 = por %p155, %p156
      %p158 = scmp.le.s32.totalorder 1, %s14
      %p159 = scmp.lt.s32.totalorder %s14, 3
      %p160 = pnand %p158, %p159
      %p161 = pneg %p160
      // Predicated region
      $region9: #{tpu_custom_call.1} parent=5 // pred_check
        _
      $region10: #{tpu_custom_call.1} parent=5 // pred_check_branch
        %163 = sbr.rel (%p160) target = $region12
      $region11: #{tpu_custom_call.1} parent=5 // pred_region
        %s164 = ssub.s32 %s14, 1
        // Predicated region
        $region13: #{tpu_custom_call.1} parent=11 // pred_check
          %p165 = pneg %p61
        $region14: #{tpu_custom_call.1} parent=11 // pred_check_branch
          %167 = sbr.rel (%p165) target = $region16
        $region15: #{tpu_custom_call.1} parent=11 // pred_region
          _
        $region16: #{tpu_custom_call.1} parent=11 // pred_fallthru
          _
        // Predicated region
        $region17: #{tpu_custom_call.1} parent=11 // pred_check
          %p168 = pneg %p82
        $region18: #{tpu_custom_call.1} parent=11 // pred_check_branch
          %170 = sbr.rel (%p168) target = $region20
        $region19: #{tpu_custom_call.1} parent=11 // pred_region
          _
        $region20: #{tpu_custom_call.1} parent=11 // pred_fallthru
          _
        // Predicated region
        $region21: #{tpu_custom_call.1} parent=11 // pred_check
          %p171 = pneg %p103
        $region22: #{tpu_custom_call.1} parent=11 // pred_check_branch
          %173 = sbr.rel (%p171) target = $region24
        $region23: #{tpu_custom_call.1} parent=11 // pred_region
          _
        $region24: #{tpu_custom_call.1} parent=11 // pred_fallthru
          _
        // Predicated region
        $region25: #{tpu_custom_call.1} parent=11 // pred_check
          %p174 = pneg %p124
        $region26: #{tpu_custom_call.1} parent=11 // pred_check_branch
          %176 = sbr.rel (%p174) target = $region28
        $region27: #{tpu_custom_call.1} parent=11 // pred_region
          _
        $region28: #{tpu_custom_call.1} parent=11 // pred_fallthru
          _
      $region12: #{tpu_custom_call.1} parent=5 // pred_fallthru
        _
      %p177 = scmp.lt.s32.totalorder %s14, 2
      // Predicated region
      $region29: #{tpu_custom_call.1} parent=5 // pred_check
        %p178 = pneg %p177
      $region30: #{tpu_custom_call.1} parent=5 // pred_check_branch
        %180 = sbr.rel (%p178) target = $region32
      $region31: #{tpu_custom_call.1} parent=5 // pred_region
        // Predicated region
        $region33: #{tpu_custom_call.1} parent=31 // pred_check
          %p181 = pneg %p34
        $region34: #{tpu_custom_call.1} parent=31 // pred_check_branch
          %183 = sbr.rel (%p181) target = $region36
        $region35: #{tpu_custom_call.1} parent=31 // pred_region
          %p184 = scmp.lt.s32.totalorder %s14, 1
          %s185 = scalar_select %p184, %s14, 1
          %s186 = smul.addr %s185, 8
          %s187 = smul.addr %s186, 8
          %s188 = scalar_lea.vmem %s0, %s187
        $region36: #{tpu_custom_call.1} parent=31 // pred_fallthru
          _
      $region32: #{tpu_custom_call.1} parent=5 // pred_fallthru
        _
      %p189 = scmp.le.s32.totalorder 1, %s14
      %p190 = scmp.lt.s32.totalorder %s14, 3
      %p191 = pnand %p189, %p190
      %p192 = pneg %p191
      // Predicated region
      $region37: #{tpu_custom_call.1} parent=5 // pred_check
        _
      $region38: #{tpu_custom_call.1} parent=5 // pred_check_branch
        %194 = sbr.rel (%p191) target = $region40
      $region39: #{tpu_custom_call.1} parent=5 // pred_region
        %s195 = ssub.s32 %s14, 1
        %p196 = scmp.lt.s32.totalorder %s19, 1
        %s197 = scalar_select %p196, %s19, 1
        %s198 = smul.addr %s197, 8
        %s199 = smul.addr %s198, 8
        %s200 = scalar_lea.vmem %s0, %s199
        %p201 = pneg %p40
        %p202 = pneg %p37
        %p203 = pneg %p61
        %p204 = pneg %p58
        %p205 = pneg %p82
        %p206 = pneg %p79
        %p207 = pneg %p103
        %p208 = pneg %p100
        %p209 = pneg %p124
        %p210 = pneg %p121
        %p211 = pneg %p150
        %p212 = pneg %p147
        %s213 = sand.u32 %s137, 1
        %s214 = scalar_lea.sflag [#allocation5], %s213
        %s215 = sand.u32 %s137, 1
        %s216 = smul.addr %s215, 64
        %s217 = scalar_lea.vmem [#allocation4], %s216
        %p218 = scmp.lt.s32.totalorder %s19, 1
        %s219 = scalar_select %p218, %s19, 1
        %s220 = smul.addr %s219, 8
        %s221 = smul.addr %s220, 8
        %s222 = scalar_lea.vmem %s0, %s221
        %v224 = vld [vmem:[%s222] sm:$0xff]
        %v225 = vld [vmem:[%s222 + $0x8] sm:$0xff]
        %v226 = vld [vmem:[%s222 + $0x10] sm:$0xff]
        %v227 = vld [vmem:[%s222 + $0x18] sm:$0xff]
        %v228 = vld [vmem:[%s222 + $0x20] sm:$0xff]
        %v229 = vld [vmem:[%s222 + $0x28] sm:$0xff]
        %v230 = vld [vmem:[%s222 + $0x30] sm:$0xff]
        %v231 = vld [vmem:[%s222 + $0x38] sm:$0xff]
        %v232 = vpack.c.bf16 %v226, %v224
        %v233 = vpack.c.bf16 %v227, %v225
        %v234 = vpack.c.bf16 %v230, %v228
        %v235 = vpack.c.bf16 %v231, %v229
        %v236 = vld [vmem:[%s1] sm:$0xf]
        %v237 = vld [vmem:[%s1 + $0x4] sm:$0xf]
        %v238 = vld [vmem:[%s1 + $0x8] sm:$0xf]
        %v239 = vld [vmem:[%s1 + $0xc] sm:$0xf]
        %v240 = vld [vmem:[%s1 + $0x10] sm:$0xf]
        %v241 = vld [vmem:[%s1 + $0x14] sm:$0xf]
        %v242 = vld [vmem:[%s1 + $0x18] sm:$0xf]
        %v243 = vld [vmem:[%s1 + $0x1c] sm:$0xf]
        %v244 = vld [vmem:[%s1 + $0x20] sm:$0xf]
        %v245 = vld [vmem:[%s1 + $0x24] sm:$0xf]
        %v246 = vld [vmem:[%s1 + $0x28] sm:$0xf]
        %v247 = vld [vmem:[%s1 + $0x2c] sm:$0xf]
        %v248 = vld [vmem:[%s2] sm:$0xff]
        %v249 = vld [vmem:[%s2 + $0x8] sm:$0xff]
        %v250 = vld [vmem:[%s2 + $0x10] sm:$0xff]
        %v251 = vld [vmem:[%s2 + $0x18] sm:$0xff]
        %v252 = vld [vmem:[%s2 + $0x20] sm:$0xff]
        %v253 = vld [vmem:[%s2 + $0x28] sm:$0xff]
        %v254 = vld [vmem:[%s2 + $0x30] sm:$0xff]
        %v255 = vld [vmem:[%s2 + $0x38] sm:$0xff]
        %v256 = vld [vmem:[%s2 + $0x40] sm:$0xff]
        %v257 = vld [vmem:[%s2 + $0x48] sm:$0xff]
        %v258 = vld [vmem:[%s2 + $0x50] sm:$0xff]
        %v259 = vld [vmem:[%s2 + $0x58] sm:$0xff]
        %261 = vset.pattern.permute.xlu0 0
        %262 = vperm.xlu0 %261, %v248
        %v263 = vpop.permute.xlu0 %262
        %266 = vset.pattern.permute.xlu0 0
        %267 = vperm.xlu0 %266, %v249
        %v268 = vpop.permute.xlu0 %267
        %271 = vset.pattern.permute.xlu0 0
        %272 = vperm.xlu0 %271, %v250
        %v273 = vpop.permute.xlu0 %272
        %276 = vset.pattern.permute.xlu0 0
        %277 = vperm.xlu0 %276, %v251
        %v278 = vpop.permute.xlu0 %277
        %281 = vset.pattern.permute.xlu0 0
        %282 = vperm.xlu0 %281, %v252
        %v283 = vpop.permute.xlu0 %282
        %286 = vset.pattern.permute.xlu0 0
        %287 = vperm.xlu0 %286, %v253
        %v288 = vpop.permute.xlu0 %287
        %291 = vset.pattern.permute.xlu0 0
        %292 = vperm.xlu0 %291, %v254
        %v293 = vpop.permute.xlu0 %292
        %296 = vset.pattern.permute.xlu0 0
        %297 = vperm.xlu0 %296, %v255
        %v298 = vpop.permute.xlu0 %297
        %301 = vset.pattern.permute.xlu0 0
        %302 = vperm.xlu0 %301, %v256
        %v303 = vpop.permute.xlu0 %302
        %306 = vset.pattern.permute.xlu0 0
        %307 = vperm.xlu0 %306, %v257
        %v308 = vpop.permute.xlu0 %307
        %311 = vset.pattern.permute.xlu0 0
        %312 = vperm.xlu0 %311, %v258
        %v313 = vpop.permute.xlu0 %312
        %316 = vset.pattern.permute.xlu0 0
        %317 = vperm.xlu0 %316, %v259
        %v318 = vpop.permute.xlu0 %317
        %v332 = vunpack.c.l.b16 %v236
        %v333 = vunpack.c.l.b16 %v237
        %v334 = vunpack.c.l.b16 %v238
        %v335 = vunpack.c.l.b16 %v239
        %v336 = vunpack.c.l.b16 %v240
        %v337 = vunpack.c.l.b16 %v241
        %v338 = vunpack.c.l.b16 %v242
        %v339 = vunpack.c.l.b16 %v243
        %v340 = vunpack.c.l.b16 %v244
        %v341 = vunpack.c.l.b16 %v245
        %v342 = vunpack.c.l.b16 %v246
        %v343 = vunpack.c.l.b16 %v247
        %v344 = vpack.c.b16 %v333, %v332
        %v345 = vpack.c.b16 %v335, %v334
        %v346 = vpack.c.b16 %v337, %v336
        %v347 = vpack.c.b16 %v339, %v338
        %v348 = vpack.c.b16 %v341, %v340
        %v349 = vpack.c.b16 %v343, %v342
        %vm350 = vcmask 261120
        %v352 = vsel %vm350, %v344, 0
        %v355 = vsel %vm350, %v345, 0
        %v358 = vsel %vm350, %v346, 0
        %v361 = vsel %vm350, %v347, 0
        %v364 = vsel %vm350, %v348, 0
        %v367 = vsel %vm350, %v349, 0
        %369 = vmatprep.subr.bf16.mxu0 0
        %370 = vmatpush1.bf16.msra.mxu0 0
        %371 = vmatprep.subr.bf16.mxu0 0
        %372 = vmatpush1.bf16.msra.mxu0 0
        %373 = vmatprep.subr.bf16.mxu0 0
        %374 = vmatpush1.bf16.msra.mxu0 0
        %375 = vmatprep.subr.bf16.mxu0 0
        %376 = vmatpush1.bf16.msra.mxu0 0
        %377 = vmatprep.subr.bf16.mxu0 0
        %378 = vmatpush1.bf16.msra.mxu0 0
        %379 = vmatprep.subr.bf16.mxu0 0
        %380 = vmatpush1.bf16.msra.mxu0 0
        %381 = vmatprep.subr.bf16.mxu0 %v235
        %382 = vmatpush1.bf16.msra.mxu0 %v234
        %383 = vmatprep.subr.bf16.mxu0 %v233
        %384 = vmatpush1.bf16.msra.mxu0 %v232
        %385 = vmatprep.subr.bf16.mxu0 0
        %386 = vmatpush2.bf16.msra.mxu0 0
        %387 = vmatprep.subr.bf16.mxu0 0
        %388 = vmatpush2.bf16.msra.mxu0 0
        %389 = vmatprep.subr.bf16.mxu0 0
        %390 = vmatpush2.bf16.msra.mxu0 0
        %391 = vmatprep.subr.bf16.mxu0 0
        %392 = vmatpush2.bf16.msra.mxu0 0
        %393 = vmatprep.subr.bf16.mxu0 0
        %394 = vmatpush2.bf16.msra.mxu0 0
        %395 = vmatprep.subr.bf16.mxu0 0
        %396 = vmatpush2.bf16.msra.mxu0 0
        %397 = vmatprep.subr.bf16.mxu0 0
        %398 = vmatpush2.bf16.msra.mxu0 0
        %399 = vmatprep.subr.bf16.mxu0 0
        %400 = vmatpush2.bf16.msra.mxu0 0
        %401 = vmatprep.mubr.bf16.mxu0 0
        %402 = vmatmul.mubr.bf16.gmra.mxu0 %v352
        %v403 = vpop.f32.mrf.mxu0
        %v404 = vadd.f32 %v263, %v403
        %v405 = vpop.f32.mrf.mxu0
        %v406 = vadd.f32 %v263, %v405
        %v407 = vpop.f32.mrf.mxu0
        %v408 = vadd.f32 %v268, %v407
        %v409 = vpop.f32.mrf.mxu0
        %v410 = vadd.f32 %v268, %v409
        %411 = vmatprep.mubr.bf16.mxu0 0
        %412 = vmatmul.mubr.bf16.gmra.mxu0 %v355
        %v413 = vpop.f32.mrf.mxu0
        %v414 = vadd.f32 %v273, %v413
        %v415 = vpop.f32.mrf.mxu0
        %v416 = vadd.f32 %v273, %v415
        %v417 = vpop.f32.mrf.mxu0
        %v418 = vadd.f32 %v278, %v417
        %v419 = vpop.f32.mrf.mxu0
        %v420 = vadd.f32 %v278, %v419
        %421 = vmatprep.mubr.bf16.mxu0 0
        %422 = vmatmul.mubr.bf16.gmra.mxu0 %v358
        %v423 = vpop.f32.mrf.mxu0
        %v424 = vadd.f32 %v283, %v423
        %v425 = vpop.f32.mrf.mxu0
        %v426 = vadd.f32 %v283, %v425
        %v427 = vpop.f32.mrf.mxu0
        %v428 = vadd.f32 %v288, %v427
        %v429 = vpop.f32.mrf.mxu0
        %v430 = vadd.f32 %v288, %v429
        %431 = vmatprep.mubr.bf16.mxu0 0
        %432 = vmatmul.mubr.bf16.gmra.mxu0 %v361
        %v433 = vpop.f32.mrf.mxu0
        %v434 = vadd.f32 %v293, %v433
        %v435 = vpop.f32.mrf.mxu0
        %v436 = vadd.f32 %v293, %v435
        %v437 = vpop.f32.mrf.mxu0
        %v438 = vadd.f32 %v298, %v437
        %v439 = vpop.f32.mrf.mxu0
        %v440 = vadd.f32 %v298, %v439
        %441 = vmatprep.mubr.bf16.mxu0 0
        %442 = vmatmul.mubr.bf16.gmra.mxu0 %v364
        %v443 = vpop.f32.mrf.mxu0
        %v444 = vadd.f32 %v303, %v443
        %v445 = vpop.f32.mrf.mxu0
        %v446 = vadd.f32 %v303, %v445
        %v447 = vpop.f32.mrf.mxu0
        %v448 = vadd.f32 %v308, %v447
        %v449 = vpop.f32.mrf.mxu0
        %v450 = vadd.f32 %v308, %v449
        %451 = vmatprep.mubr.bf16.mxu0 0
        %452 = vmatmul.mubr.bf16.gmra.mxu0 %v367
        %v453 = vpop.f32.mrf.mxu0
        %v454 = vadd.f32 %v313, %v453
        %v455 = vpop.f32.mrf.mxu0
        %v456 = vadd.f32 %v313, %v455
        %v457 = vpop.f32.mrf.mxu0
        %v458 = vadd.f32 %v318, %v457
        %v459 = vpop.f32.mrf.mxu0
        %v460 = vadd.f32 %v318, %v459
        %461 = vdwg.mxu0
        %462 = vst [vmem:[#allocation2] sm:$0xff] %v404
        %463 = vst [vmem:[#allocation2 + $0x8] sm:$0xff] %v406
        %464 = vst [vmem:[#allocation2 + $0x10] sm:$0xff] %v408
        %465 = vst [vmem:[#allocation2 + $0x18] sm:$0xff] %v410
        %466 = vst [vmem:[#allocation2 + $0x20] sm:$0xff] %v414
        %467 = vst [vmem:[#allocation2 + $0x28] sm:$0xff] %v416
        %468 = vst [vmem:[#allocation2 + $0x30] sm:$0xff] %v418
        %469 = vst [vmem:[#allocation2 + $0x38] sm:$0xff] %v420
        %470 = vst [vmem:[#allocation2 + $0x40] sm:$0xff] %v424
        %471 = vst [vmem:[#allocation2 + $0x48] sm:$0xff] %v426
        %472 = vst [vmem:[#allocation2 + $0x50] sm:$0xff] %v428
        %473 = vst [vmem:[#allocation2 + $0x58] sm:$0xff] %v430
        %474 = vst [vmem:[#allocation2 + $0x60] sm:$0xff] %v434
        %475 = vst [vmem:[#allocation2 + $0x68] sm:$0xff] %v436
        %476 = vst [vmem:[#allocation2 + $0x70] sm:$0xff] %v438
        %477 = vst [vmem:[#allocation2 + $0x78] sm:$0xff] %v440
        %478 = vst [vmem:[#allocation2 + $0x80] sm:$0xff] %v444
        %479 = vst [vmem:[#allocation2 + $0x88] sm:$0xff] %v446
        %480 = vst [vmem:[#allocation2 + $0x90] sm:$0xff] %v448
        %481 = vst [vmem:[#allocation2 + $0x98] sm:$0xff] %v450
        %482 = vst [vmem:[#allocation2 + $0xa0] sm:$0xff] %v454
        %483 = vst [vmem:[#allocation2 + $0xa8] sm:$0xff] %v456
        %484 = vst [vmem:[#allocation2 + $0xb0] sm:$0xff] %v458
        %485 = vst [vmem:[#allocation2 + $0xb8] sm:$0xff] %v460
        %s486 = sadd.s32 0, 32
        %s487 = sshra.s32 %s486, 3
        %s488 = sand.u32 %s486, 7
        %s489 = smul.u32 %s487, 2
        %s490 = smul.addr %s489, 8
        %s491 = scalar_lea.vmem [#allocation2], %s490
        %v492 = vld [vmem:[%s491] sm:$0xff]
        %v493 = vld [vmem:[%s491 + $0x8] sm:$0xff]
        %v494 = vpack.c.bf16 %v492, %v492
        %v495 = vpack.c.bf16 %v493, %v493
        %s496 = sadd.s32 0, 64
        %s497 = sshra.s32 %s496, 3
        %s498 = sand.u32 %s496, 7
        %s499 = smul.u32 %s497, 2
        %s500 = smul.addr %s499, 8
        %s501 = scalar_lea.vmem [#allocation2], %s500
        %v502 = vld [vmem:[%s501] sm:$0xff]
        %v503 = vld [vmem:[%s501 + $0x8] sm:$0xff]
        %v504 = vpack.c.bf16 %v502, %v502
        %v505 = vpack.c.bf16 %v503, %v503
        %s506 = smul.u32 0, 2
        %s507 = smul.addr %s506, 8
        %s508 = scalar_lea.vmem [#allocation2], %s507
        %v509 = vld [vmem:[%s508] sm:$0xff]
        %v510 = vpack.c.bf16 %v509, %v509
        %511 = vxpose.xlu0.c.b16.start [1/8] %v494, 128
        %512 = vxpose.xlu0.c.b16.cont [2/8] 0, 128
        %513 = vxpose.xlu0.c.b16.cont [3/8] 0, 128
        %514 = vxpose.xlu0.c.b16.cont [4/8] 0, 128
        %515 = vxpose.xlu0.c.b16.cont [5/8] 0, 128
        %516 = vxpose.xlu0.c.b16.cont [6/8] 0, 128
        %517 = vxpose.xlu0.c.b16.cont [7/8] 0, 128
        %518 = vxpose.xlu0.c.b16.end [8/8] 0, 128
        %v519 = vpop.trf.xlu0
        %v520 = vpop.trf.xlu0
        %v521 = vpop.trf.xlu0
        %v522 = vpop.trf.xlu0
        %v523 = vpop.trf.xlu0
        %v524 = vpop.trf.xlu0
        %v525 = vpop.trf.xlu0
        %v526 = vpop.trf.xlu0
        %527 = vxpose.xlu0.c.b16.start [1/8] %v495, 128
        %528 = vxpose.xlu0.c.b16.cont [2/8] 0, 128
        %529 = vxpose.xlu0.c.b16.cont [3/8] 0, 128
        %530 = vxpose.xlu0.c.b16.cont [4/8] 0, 128
        %531 = vxpose.xlu0.c.b16.cont [5/8] 0, 128
        %532 = vxpose.xlu0.c.b16.cont [6/8] 0, 128
        %533 = vxpose.xlu0.c.b16.cont [7/8] 0, 128
        %534 = vxpose.xlu0.c.b16.end [8/8] 0, 128
        %v535 = vpop.trf.xlu0
        %v536 = vpop.trf.xlu0
        %v537 = vpop.trf.xlu0
        %v538 = vpop.trf.xlu0
        %v539 = vpop.trf.xlu0
        %v540 = vpop.trf.xlu0
        %v541 = vpop.trf.xlu0
        %v542 = vpop.trf.xlu0
        %vm543 = vcmask 64512
        %v545 = vsel %vm543, %v519, 0
        %v548 = vsel %vm543, %v520, 0
        %v551 = vsel %vm543, %v521, 0
        %v554 = vsel %vm543, %v522, 0
        %v557 = vsel %vm543, %v523, 0
        %v560 = vsel %vm543, %v524, 0
        %v563 = vsel %vm543, %v525, 0
        %v566 = vsel %vm543, %v526, 0
        %v569 = vsel %vm543, %v535, 0
        %v572 = vsel %vm543, %v536, 0
        %v575 = vsel %vm543, %v537, 0
        %v578 = vsel %vm543, %v538, 0
        %v581 = vsel %vm543, %v539, 0
        %v584 = vsel %vm543, %v540, 0
        %v587 = vsel %vm543, %v541, 0
        %v590 = vsel %vm543, %v542, 0
        %vm592 = vcmask 1043456
        %v594 = vsel %vm592, %v510, 0
        %596 = vmatprep.subr.bf16.mxu0 0
        %597 = vmatpush1.bf16.msra.mxu0 0
        %598 = vmatprep.subr.bf16.mxu0 0
        %599 = vmatpush1.bf16.msra.mxu0 0
        %600 = vmatprep.subr.bf16.mxu0 0
        %601 = vmatpush1.bf16.msra.mxu0 0
        %602 = vmatprep.subr.bf16.mxu0 0
        %603 = vmatpush1.bf16.msra.mxu0 0
        %604 = vmatprep.subr.bf16.mxu0 0
        %605 = vmatpush1.bf16.msra.mxu0 0
        %606 = vmatprep.subr.bf16.mxu0 0
        %607 = vmatpush1.bf16.msra.mxu0 0
        %608 = vmatprep.subr.bf16.mxu0 0
        %609 = vmatpush1.bf16.msra.mxu0 0
        %610 = vmatprep.subr.bf16.mxu0 0
        %611 = vmatpush1.bf16.msra.mxu0 %v594
        %612 = vmatprep.subr.bf16.mxu0 0
        %613 = vmatpush2.bf16.msra.mxu0 0
        %614 = vmatprep.subr.bf16.mxu0 0
        %615 = vmatpush2.bf16.msra.mxu0 0
        %616 = vmatprep.subr.bf16.mxu0 0
        %617 = vmatpush2.bf16.msra.mxu0 0
        %618 = vmatprep.subr.bf16.mxu0 0
        %619 = vmatpush2.bf16.msra.mxu0 0
        %620 = vmatprep.subr.bf16.mxu0 0
        %621 = vmatpush2.bf16.msra.mxu0 0
        %622 = vmatprep.subr.bf16.mxu0 0
        %623 = vmatpush2.bf16.msra.mxu0 0
        %624 = vmatprep.subr.bf16.mxu0 0
        %625 = vmatpush2.bf16.msra.mxu0 0
        %626 = vmatprep.subr.bf16.mxu0 0
        %627 = vmatpush2.bf16.msra.mxu0 0
        %628 = vmatprep.mubr.bf16.mxu0 0
        %629 = vmatmul.mubr.bf16.gmra.mxu0 %v545
        %v630 = vpop.f32.mrf.mxu0
        %v631 = vadd.f32 0.0, %v630
        %v632 = vpop.f32.mrf.mxu0
        %v633 = vpop.f32.mrf.mxu0
        %v634 = vadd.f32 0.0, %v633
        %v635 = vpop.f32.mrf.mxu0
        %636 = vmatprep.mubr.bf16.mxu0 0
        %637 = vmatmul.mubr.bf16.gmra.mxu0 %v548
        %v638 = vpop.f32.mrf.mxu0
        %v639 = vadd.f32 0.0, %v638
        %v640 = vpop.f32.mrf.mxu0
        %v641 = vpop.f32.mrf.mxu0
        %v642 = vadd.f32 0.0, %v641
        %v643 = vpop.f32.mrf.mxu0
        %644 = vmatprep.mubr.bf16.mxu0 0
        %645 = vmatmul.mubr.bf16.gmra.mxu0 %v551
        %v646 = vpop.f32.mrf.mxu0
        %v647 = vadd.f32 0.0, %v646
        %v648 = vpop.f32.mrf.mxu0
        %v649 = vpop.f32.mrf.mxu0
        %v650 = vadd.f32 0.0, %v649
        %v651 = vpop.f32.mrf.mxu0
        %652 = vmatprep.mubr.bf16.mxu0 0
        %653 = vmatmul.mubr.bf16.gmra.mxu0 %v554
        %v654 = vpop.f32.mrf.mxu0
        %v655 = vadd.f32 0.0, %v654
        %v656 = vpop.f32.mrf.mxu0
        %v657 = vpop.f32.mrf.mxu0
        %v658 = vadd.f32 0.0, %v657
        %v659 = vpop.f32.mrf.mxu0
        %660 = vmatprep.mubr.bf16.mxu0 0
        %661 = vmatmul.mubr.bf16.gmra.mxu0 %v557
        %v662 = vpop.f32.mrf.mxu0
        %v663 = vadd.f32 0.0, %v662
        %v664 = vpop.f32.mrf.mxu0
        %v665 = vpop.f32.mrf.mxu0
        %v666 = vadd.f32 0.0, %v665
        %v667 = vpop.f32.mrf.mxu0
        %668 = vmatprep.mubr.bf16.mxu0 0
        %669 = vmatmul.mubr.bf16.gmra.mxu0 %v560
        %v670 = vpop.f32.mrf.mxu0
        %v671 = vadd.f32 0.0, %v670
        %v672 = vpop.f32.mrf.mxu0
        %v673 = vpop.f32.mrf.mxu0
        %v674 = vadd.f32 0.0, %v673
        %v675 = vpop.f32.mrf.mxu0
        %676 = vmatprep.mubr.bf16.mxu0 0
        %677 = vmatmul.mubr.bf16.gmra.mxu0 %v563
        %v678 = vpop.f32.mrf.mxu0
        %v679 = vadd.f32 0.0, %v678
        %v680 = vpop.f32.mrf.mxu0
        %v681 = vpop.f32.mrf.mxu0
        %v682 = vadd.f32 0.0, %v681
        %v683 = vpop.f32.mrf.mxu0
        %684 = vmatprep.mubr.bf16.mxu0 0
        %685 = vmatmul.mubr.bf16.gmra.mxu0 %v566
        %v686 = vpop.f32.mrf.mxu0
        %v687 = vadd.f32 0.0, %v686
        %v688 = vpop.f32.mrf.mxu0
        %v689 = vpop.f32.mrf.mxu0
        %v690 = vadd.f32 0.0, %v689
        %v691 = vpop.f32.mrf.mxu0
        %692 = vmatprep.mubr.bf16.mxu0 0
        %693 = vmatmul.mubr.bf16.gmra.mxu0 %v569
        %v694 = vpop.f32.mrf.mxu0
        %v695 = vadd.f32 0.0, %v694
        %v696 = vpop.f32.mrf.mxu0
        %v697 = vpop.f32.mrf.mxu0
        %v698 = vadd.f32 0.0, %v697
        %v699 = vpop.f32.mrf.mxu0
        %700 = vmatprep.mubr.bf16.mxu0 0
        %701 = vmatmul.mubr.bf16.gmra.mxu0 %v572
        %v702 = vpop.f32.mrf.mxu0
        %v703 = vadd.f32 0.0, %v702
        %v704 = vpop.f32.mrf.mxu0
        %v705 = vpop.f32.mrf.mxu0
        %v706 = vadd.f32 0.0, %v705
        %v707 = vpop.f32.mrf.mxu0
        %708 = vmatprep.mubr.bf16.mxu0 0
        %709 = vmatmul.mubr.bf16.gmra.mxu0 %v575
        %v710 = vpop.f32.mrf.mxu0
        %v711 = vadd.f32 0.0, %v710
        %v712 = vpop.f32.mrf.mxu0
        %v713 = vpop.f32.mrf.mxu0
        %v714 = vadd.f32 0.0, %v713
        %v715 = vpop.f32.mrf.mxu0
        %716 = vmatprep.mubr.bf16.mxu0 0
        %717 = vmatmul.mubr.bf16.gmra.mxu0 %v578
        %v718 = vpop.f32.mrf.mxu0
        %v719 = vadd.f32 0.0, %v718
        %v720 = vpop.f32.mrf.mxu0
        %v721 = vpop.f32.mrf.mxu0
        %v722 = vadd.f32 0.0, %v721
        %v723 = vpop.f32.mrf.mxu0
        %724 = vmatprep.mubr.bf16.mxu0 0
        %725 = vmatmul.mubr.bf16.gmra.mxu0 %v581
        %v726 = vpop.f32.mrf.mxu0
        %v727 = vadd.f32 0.0, %v726
        %v728 = vpop.f32.mrf.mxu0
        %v729 = vpop.f32.mrf.mxu0
        %v730 = vadd.f32 0.0, %v729
        %v731 = vpop.f32.mrf.mxu0
        %732 = vmatprep.mubr.bf16.mxu0 0
        %733 = vmatmul.mubr.bf16.gmra.mxu0 %v584
        %v734 = vpop.f32.mrf.mxu0
        %v735 = vadd.f32 0.0, %v734
        %v736 = vpop.f32.mrf.mxu0
        %v737 = vpop.f32.mrf.mxu0
        %v738 = vadd.f32 0.0, %v737
        %v739 = vpop.f32.mrf.mxu0
        %740 = vmatprep.mubr.bf16.mxu0 0
        %741 = vmatmul.mubr.bf16.gmra.mxu0 %v587
        %v742 = vpop.f32.mrf.mxu0
        %v743 = vadd.f32 0.0, %v742
        %v744 = vpop.f32.mrf.mxu0
        %v745 = vpop.f32.mrf.mxu0
        %v746 = vadd.f32 0.0, %v745
        %v747 = vpop.f32.mrf.mxu0
        %748 = vmatprep.mubr.bf16.mxu0 0
        %749 = vmatmul.mubr.bf16.gmra.mxu0 %v590
        %v750 = vpop.f32.mrf.mxu0
        %v751 = vadd.f32 0.0, %v750
        %v752 = vpop.f32.mrf.mxu0
        %v753 = vpop.f32.mrf.mxu0
        %v754 = vadd.f32 0.0, %v753
        %v755 = vpop.f32.mrf.mxu0
        %756 = vdwg.mxu0
        %v757 = vmax.f32 %v631, %v647
        %v758 = vmax.f32 %v634, %v650
        %v759 = vmax.f32 %v639, %v655
        %v760 = vmax.f32 %v642, %v658
        %v761 = vmax.f32 %v757, %v663
        %v762 = vmax.f32 %v758, %v666
        %v763 = vmax.f32 %v759, %v671
        %v764 = vmax.f32 %v760, %v674
        %v765 = vmax.f32 %v761, %v679
        %v766 = vmax.f32 %v762, %v682
        %v767 = vmax.f32 %v763, %v687
        %v768 = vmax.f32 %v764, %v690
        %v769 = vmax.f32 %v765, %v695
        %v770 = vmax.f32 %v766, %v698
        %v771 = vmax.f32 %v767, %v703
        %v772 = vmax.f32 %v768, %v706
        %v773 = vmax.f32 %v769, %v711
        %v774 = vmax.f32 %v770, %v714
        %v775 = vmax.f32 %v771, %v719
        %v776 = vmax.f32 %v772, %v722
        %v777 = vmax.f32 %v773, %v727
        %v778 = vmax.f32 %v774, %v730
        %v779 = vmax.f32 %v775, %v735
        %v780 = vmax.f32 %v776, %v738
        %v781 = vmax.f32 %v777, %v743
        %v782 = vmax.f32 %v778, %v746
        %v783 = vmax.f32 %v779, %v751
        %v784 = vmax.f32 %v780, %v754
        %v785 = vmax.f32 %v781, %v782
        %v786 = vmax.f32 %v783, %v784
        %v787 = vmax.f32 %v785, %v786
        %v788 = vrot.slane %v787, 4
        %v789 = vmax.f32 %v787, %v788
        %v790 = vrot.slane %v789, 2
        %v791 = vmax.f32 %v789, %v790
        %v792 = vrot.slane %v791, 1
        %v793 = vmax.f32 %v791, %v792
        %v794 = vsub.f32 %v631, %v793
        %v795 = vsub.f32 %v634, %v793
        %v796 = vsub.f32 %v639, %v793
        %v797 = vsub.f32 %v642, %v793
        %v798 = vsub.f32 %v647, %v793
        %v799 = vsub.f32 %v650, %v793
        %v800 = vsub.f32 %v655, %v793
        %v801 = vsub.f32 %v658, %v793
        %v802 = vsub.f32 %v663, %v793
        %v803 = vsub.f32 %v666, %v793
        %v804 = vsub.f32 %v671, %v793
        %v805 = vsub.f32 %v674, %v793
        %v806 = vsub.f32 %v679, %v793
        %v807 = vsub.f32 %v682, %v793
        %v808 = vsub.f32 %v687, %v793
        %v809 = vsub.f32 %v690, %v793
        %v810 = vsub.f32 %v695, %v793
        %v811 = vsub.f32 %v698, %v793
        %v812 = vsub.f32 %v703, %v793
        %v813 = vsub.f32 %v706, %v793
        %v814 = vsub.f32 %v711, %v793
        %v815 = vsub.f32 %v714, %v793
        %v816 = vsub.f32 %v719, %v793
        %v817 = vsub.f32 %v722, %v793
        %v818 = vsub.f32 %v727, %v793
        %v819 = vsub.f32 %v730, %v793
        %v820 = vsub.f32 %v735, %v793
        %v821 = vsub.f32 %v738, %v793
        %v822 = vsub.f32 %v743, %v793
        %v823 = vsub.f32 %v746, %v793
        %v824 = vsub.f32 %v751, %v793
        %v825 = vsub.f32 %v754, %v793
        %v826 = vmul.f32 %v794, 1.442695
        %v827 = vpow.pop %v826
        %v828 = vmul.f32 %v795, 1.442695
        %v829 = vpow.pop %v828
        %v830 = vmul.f32 %v796, 1.442695
        %v831 = vpow.pop %v830
        %v832 = vmul.f32 %v797, 1.442695
        %v833 = vpow.pop %v832
        %v834 = vmul.f32 %v798, 1.442695
        %v835 = vpow.pop %v834
        %v836 = vmul.f32 %v799, 1.442695
        %v837 = vpow.pop %v836
        %v838 = vmul.f32 %v800, 1.442695
        %v839 = vpow.pop %v838
        %v840 = vmul.f32 %v801, 1.442695
        %v841 = vpow.pop %v840
        %v842 = vmul.f32 %v802, 1.442695
        %v843 = vpow.pop %v842
        %v844 = vmul.f32 %v803, 1.442695
        %v845 = vpow.pop %v844
        %v846 = vmul.f32 %v804, 1.442695
        %v847 = vpow.pop %v846
        %v848 = vmul.f32 %v805, 1.442695
        %v849 = vpow.pop %v848
        %v850 = vmul.f32 %v806, 1.442695
        %v851 = vpow.pop %v850
        %v852 = vmul.f32 %v807, 1.442695
        %v853 = vpow.pop %v852
        %v854 = vmul.f32 %v808, 1.442695
        %v855 = vpow.pop %v854
        %v856 = vmul.f32 %v809, 1.442695
        %v857 = vpow.pop %v856
        %v858 = vmul.f32 %v810, 1.442695
        %v859 = vpow.pop %v858
        %v860 = vmul.f32 %v811, 1.442695
        %v861 = vpow.pop %v860
        %v862 = vmul.f32 %v812, 1.442695
        %v863 = vpow.pop %v862
        %v864 = vmul.f32 %v813, 1.442695
        %v865 = vpow.pop %v864
        %v866 = vmul.f32 %v814, 1.442695
        %v867 = vpow.pop %v866
        %v868 = vmul.f32 %v815, 1.442695
        %v869 = vpow.pop %v868
        %v870 = vmul.f32 %v816, 1.442695
        %v871 = vpow.pop %v870
        %v872 = vmul.f32 %v817, 1.442695
        %v873 = vpow.pop %v872
        %v874 = vmul.f32 %v818, 1.442695
        %v875 = vpow.pop %v874
        %v876 = vmul.f32 %v819, 1.442695
        %v877 = vpow.pop %v876
        %v878 = vmul.f32 %v820, 1.442695
        %v879 = vpow.pop %v878
        %v880 = vmul.f32 %v821, 1.442695
        %v881 = vpow.pop %v880
        %v882 = vmul.f32 %v822, 1.442695
        %v883 = vpow.pop %v882
        %v884 = vmul.f32 %v823, 1.442695
        %v885 = vpow.pop %v884
        %v886 = vmul.f32 %v824, 1.442695
        %v887 = vpow.pop %v886
        %v888 = vmul.f32 %v825, 1.442695
        %v889 = vpow.pop %v888
        %v890 = vadd.f32 %v827, %v829
        %v891 = vadd.f32 %v890, %v831
        %v892 = vadd.f32 %v891, %v833
        %v893 = vadd.f32 %v892, %v835
        %v894 = vadd.f32 %v893, %v837
        %v895 = vadd.f32 %v894, %v839
        %v896 = vadd.f32 %v895, %v841
        %v897 = vadd.f32 %v896, %v843
        %v898 = vadd.f32 %v897, %v845
        %v899 = vadd.f32 %v898, %v847
        %v900 = vadd.f32 %v899, %v849
        %v901 = vadd.f32 %v900, %v851
        %v902 = vadd.f32 %v901, %v853
        %v903 = vadd.f32 %v902, %v855
        %v904 = vadd.f32 %v903, %v857
        %v905 = vadd.f32 %v904, %v859
        %v906 = vadd.f32 %v905, %v861
        %v907 = vadd.f32 %v906, %v863
        %v908 = vadd.f32 %v907, %v865
        %v909 = vadd.f32 %v908, %v867
        %v910 = vadd.f32 %v909, %v869
        %v911 = vadd.f32 %v910, %v871
        %v912 = vadd.f32 %v911, %v873
        %v913 = vadd.f32 %v912, %v875
        %v914 = vadd.f32 %v913, %v877
        %v915 = vadd.f32 %v914, %v879
        %v916 = vadd.f32 %v915, %v881
        %v917 = vadd.f32 %v916, %v883
        %v918 = vadd.f32 %v917, %v885
        %v919 = vadd.f32 %v918, %v887
        %v920 = vadd.f32 %v919, %v889
        %v921 = vrot.slane %v920, 4
        %v922 = vadd.f32 %v920, %v921
        %v923 = vrot.slane %v922, 2
        %v924 = vadd.f32 %v922, %v923
        %v925 = vrot.slane %v924, 1
        %v926 = vadd.f32 %v924, %v925
        %v927 = vpack.c.bf16 %v829, %v827
        %v928 = vpack.c.bf16 %v833, %v831
        %v929 = vpack.c.bf16 %v837, %v835
        %v930 = vpack.c.bf16 %v841, %v839
        %v931 = vpack.c.bf16 %v845, %v843
        %v932 = vpack.c.bf16 %v849, %v847
        %v933 = vpack.c.bf16 %v853, %v851
        %v934 = vpack.c.bf16 %v857, %v855
        %v935 = vpack.c.bf16 %v861, %v859
        %v936 = vpack.c.bf16 %v865, %v863
        %v937 = vpack.c.bf16 %v869, %v867
        %v938 = vpack.c.bf16 %v873, %v871
        %v939 = vpack.c.bf16 %v877, %v875
        %v940 = vpack.c.bf16 %v881, %v879
        %v941 = vpack.c.bf16 %v885, %v883
        %v942 = vpack.c.bf16 %v889, %v887
        %943 = vmatprep.subr.bf16.mxu0 0
        %944 = vmatpush1.bf16.msra.mxu0 %v934
        %945 = vmatprep.subr.bf16.mxu0 0
        %946 = vmatpush1.bf16.msra.mxu0 %v933
        %947 = vmatprep.subr.bf16.mxu0 0
        %948 = vmatpush1.bf16.msra.mxu0 %v932
        %949 = vmatprep.subr.bf16.mxu0 0
        %950 = vmatpush1.bf16.msra.mxu0 %v931
        %951 = vmatprep.subr.bf16.mxu0 0
        %952 = vmatpush1.bf16.msra.mxu0 %v930
        %953 = vmatprep.subr.bf16.mxu0 0
        %954 = vmatpush1.bf16.msra.mxu0 %v929
        %955 = vmatprep.subr.bf16.mxu0 0
        %956 = vmatpush1.bf16.msra.mxu0 %v928
        %957 = vmatprep.subr.bf16.mxu0 0
        %958 = vmatpush1.bf16.msra.mxu0 %v927
        %959 = vmatprep.subr.bf16.mxu0 0
        %960 = vmatpush2.bf16.msra.mxu0 %v942
        %961 = vmatprep.subr.bf16.mxu0 0
        %962 = vmatpush2.bf16.msra.mxu0 %v941
        %963 = vmatprep.subr.bf16.mxu0 0
        %964 = vmatpush2.bf16.msra.mxu0 %v940
        %965 = vmatprep.subr.bf16.mxu0 0
        %966 = vmatpush2.bf16.msra.mxu0 %v939
        %967 = vmatprep.subr.bf16.mxu0 0
        %968 = vmatpush2.bf16.msra.mxu0 %v938
        %969 = vmatprep.subr.bf16.mxu0 0
        %970 = vmatpush2.bf16.msra.mxu0 %v937
        %971 = vmatprep.subr.bf16.mxu0 0
        %972 = vmatpush2.bf16.msra.mxu0 %v936
        %973 = vmatprep.subr.bf16.mxu0 0
        %974 = vmatpush2.bf16.msra.mxu0 %v935
        %975 = vmatprep.mubr.bf16.mxu0 %v505
        %976 = vmatmul.mubr.bf16.gmra.mxu0 %v504
        %v977 = vpop.f32.mrf.mxu0
        %v978 = vadd.f32 0.0, %v977
        %v979 = vpop.f32.mrf.mxu0
        %v980 = vpop.f32.mrf.mxu0
        %v981 = vpop.f32.mrf.mxu0
        %982 = vdwg.mxu0
        %v983 = vrcp.pop %v926
        %v984 = vmul.f32 %v978, %v983
        %s985 = smul.addr %s506, 8
        %s986 = scalar_lea.vmem [#allocation3], %s985
        %987 = vst [vmem:[%s986] sm:$0xff] %v984
        %v988 = vld [vmem:[%s508 + $0x8] sm:$0xff]
        %v989 = vpack.c.bf16 %v988, %v988
        %v991 = vsel %vm592, %v989, 0
        %993 = vmatprep.subr.bf16.mxu0 0
        %994 = vmatpush1.bf16.msra.mxu0 0
        %995 = vmatprep.subr.bf16.mxu0 0
        %996 = vmatpush1.bf16.msra.mxu0 0
        %997 = vmatprep.subr.bf16.mxu0 0
        %998 = vmatpush1.bf16.msra.mxu0 0
        %999 = vmatprep.subr.bf16.mxu0 0
        %1000 = vmatpush1.bf16.msra.mxu0 0
        %1001 = vmatprep.subr.bf16.mxu0 0
        %1002 = vmatpush1.bf16.msra.mxu0 0
        %1003 = vmatprep.subr.bf16.mxu0 0
        %1004 = vmatpush1.bf16.msra.mxu0 0
        %1005 = vmatprep.subr.bf16.mxu0 0
        %1006 = vmatpush1.bf16.msra.mxu0 0
        %1007 = vmatprep.subr.bf16.mxu0 0
        %1008 = vmatpush1.bf16.msra.mxu0 %v991
        %1009 = vmatprep.subr.bf16.mxu0 0
        %1010 = vmatpush2.bf16.msra.mxu0 0
        %1011 = vmatprep.subr.bf16.mxu0 0
        %1012 = vmatpush2.bf16.msra.mxu0 0
        %1013 = vmatprep.subr.bf16.mxu0 0
        %1014 = vmatpush2.bf16.msra.mxu0 0
        %1015 = vmatprep.subr.bf16.mxu0 0
        %1016 = vmatpush2.bf16.msra.mxu0 0
        %1017 = vmatprep.subr.bf16.mxu0 0
        %1018 = vmatpush2.bf16.msra.mxu0 0
        %1019 = vmatprep.subr.bf16.mxu0 0
        %1020 = vmatpush2.bf16.msra.mxu0 0
        %1021 = vmatprep.subr.bf16.mxu0 0
        %1022 = vmatpush2.bf16.msra.mxu0 0
        %1023 = vmatprep.subr.bf16.mxu0 0
        %1024 = vmatpush2.bf16.msra.mxu0 0
        %1025 = vmatprep.mubr.bf16.mxu0 0
        %1026 = vmatmul.mubr.bf16.gmra.mxu0 %v545
        %v1027 = vpop.f32.mrf.mxu0
        %v1028 = vadd.f32 0.0, %v1027
        %v1029 = vpop.f32.mrf.mxu0
        %v1030 = vpop.f32.mrf.mxu0
        %v1031 = vadd.f32 0.0, %v1030
        %v1032 = vpop.f32.mrf.mxu0
        %1033 = vmatprep.mubr.bf16.mxu0 0
        %1034 = vmatmul.mubr.bf16.gmra.mxu0 %v548
        %v1035 = vpop.f32.mrf.mxu0
        %v1036 = vadd.f32 0.0, %v1035
        %v1037 = vpop.f32.mrf.mxu0
        %v1038 = vpop.f32.mrf.mxu0
        %v1039 = vadd.f32 0.0, %v1038
        %v1040 = vpop.f32.mrf.mxu0
        %1041 = vmatprep.mubr.bf16.mxu0 0
        %1042 = vmatmul.mubr.bf16.gmra.mxu0 %v551
        %v1043 = vpop.f32.mrf.mxu0
        %v1044 = vadd.f32 0.0, %v1043
        %v1045 = vpop.f32.mrf.mxu0
        %v1046 = vpop.f32.mrf.mxu0
        %v1047 = vadd.f32 0.0, %v1046
        %v1048 = vpop.f32.mrf.mxu0
        %1049 = vmatprep.mubr.bf16.mxu0 0
        %1050 = vmatmul.mubr.bf16.gmra.mxu0 %v554
        %v1051 = vpop.f32.mrf.mxu0
        %v1052 = vadd.f32 0.0, %v1051
        %v1053 = vpop.f32.mrf.mxu0
        %v1054 = vpop.f32.mrf.mxu0
        %v1055 = vadd.f32 0.0, %v1054
        %v1056 = vpop.f32.mrf.mxu0
        %1057 = vmatprep.mubr.bf16.mxu0 0
        %1058 = vmatmul.mubr.bf16.gmra.mxu0 %v557
        %v1059 = vpop.f32.mrf.mxu0
        %v1060 = vadd.f32 0.0, %v1059
        %v1061 = vpop.f32.mrf.mxu0
        %v1062 = vpop.f32.mrf.mxu0
        %v1063 = vadd.f32 0.0, %v1062
        %v1064 = vpop.f32.mrf.mxu0
        %1065 = vmatprep.mubr.bf16.mxu0 0
        %1066 = vmatmul.mubr.bf16.gmra.mxu0 %v560
        %v1067 = vpop.f32.mrf.mxu0
        %v1068 = vadd.f32 0.0, %v1067
        %v1069 = vpop.f32.mrf.mxu0
        %v1070 = vpop.f32.mrf.mxu0
        %v1071 = vadd.f32 0.0, %v1070
        %v1072 = vpop.f32.mrf.mxu0
        %1073 = vmatprep.mubr.bf16.mxu0 0
        %1074 = vmatmul.mubr.bf16.gmra.mxu0 %v563
        %v1075 = vpop.f32.mrf.mxu0
        %v1076 = vadd.f32 0.0, %v1075
        %v1077 = vpop.f32.mrf.mxu0
        %v1078 = vpop.f32.mrf.mxu0
        %v1079 = vadd.f32 0.0, %v1078
        %v1080 = vpop.f32.mrf.mxu0
        %1081 = vmatprep.mubr.bf16.mxu0 0
        %1082 = vmatmul.mubr.bf16.gmra.mxu0 %v566
        %v1083 = vpop.f32.mrf.mxu0
        %v1084 = vadd.f32 0.0, %v1083
        %v1085 = vpop.f32.mrf.mxu0
        %v1086 = vpop.f32.mrf.mxu0
        %v1087 = vadd.f32 0.0, %v1086
        %v1088 = vpop.f32.mrf.mxu0
        %1089 = vmatprep.mubr.bf16.mxu0 0
        %1090 = vmatmul.mubr.bf16.gmra.mxu0 %v569
        %v1091 = vpop.f32.mrf.mxu0
        %v1092 = vadd.f32 0.0, %v1091
        %v1093 = vpop.f32.mrf.mxu0
        %v1094 = vpop.f32.mrf.mxu0
        %v1095 = vadd.f32 0.0, %v1094
        %v1096 = vpop.f32.mrf.mxu0
        %1097 = vmatprep.mubr.bf16.mxu0 0
        %1098 = vmatmul.mubr.bf16.gmra.mxu0 %v572
        %v1099 = vpop.f32.mrf.mxu0
        %v1100 = vadd.f32 0.0, %v1099
        %v1101 = vpop.f32.mrf.mxu0
        %v1102 = vpop.f32.mrf.mxu0
        %v1103 = vadd.f32 0.0, %v1102
        %v1104 = vpop.f32.mrf.mxu0
        %1105 = vmatprep.mubr.bf16.mxu0 0
        %1106 = vmatmul.mubr.bf16.gmra.mxu0 %v575
        %v1107 = vpop.f32.mrf.mxu0
        %v1108 = vadd.f32 0.0, %v1107
        %v1109 = vpop.f32.mrf.mxu0
        %v1110 = vpop.f32.mrf.mxu0
        %v1111 = vadd.f32 0.0, %v1110
        %v1112 = vpop.f32.mrf.mxu0
        %1113 = vmatprep.mubr.bf16.mxu0 0
        %1114 = vmatmul.mubr.bf16.gmra.mxu0 %v578
        %v1115 = vpop.f32.mrf.mxu0
        %v1116 = vadd.f32 0.0, %v1115
        %v1117 = vpop.f32.mrf.mxu0
        %v1118 = vpop.f32.mrf.mxu0
        %v1119 = vadd.f32 0.0, %v1118
        %v1120 = vpop.f32.mrf.mxu0
        %1121 = vmatprep.mubr.bf16.mxu0 0
        %1122 = vmatmul.mubr.bf16.gmra.mxu0 %v581
        %v1123 = vpop.f32.mrf.mxu0
        %v1124 = vadd.f32 0.0, %v1123
        %v1125 = vpop.f32.mrf.mxu0
        %v1126 = vpop.f32.mrf.mxu0
        %v1127 = vadd.f32 0.0, %v1126
        %v1128 = vpop.f32.mrf.mxu0
        %1129 = vmatprep.mubr.bf16.mxu0 0
        %1130 = vmatmul.mubr.bf16.gmra.mxu0 %v584
        %v1131 = vpop.f32.mrf.mxu0
        %v1132 = vadd.f32 0.0, %v1131
        %v1133 = vpop.f32.mrf.mxu0
        %v1134 = vpop.f32.mrf.mxu0
        %v1135 = vadd.f32 0.0, %v1134
        %v1136 = vpop.f32.mrf.mxu0
        %1137 = vmatprep.mubr.bf16.mxu0 0
        %1138 = vmatmul.mubr.bf16.gmra.mxu0 %v587
        %v1139 = vpop.f32.mrf.mxu0
        %v1140 = vadd.f32 0.0, %v1139
        %v1141 = vpop.f32.mrf.mxu0
        %v1142 = vpop.f32.mrf.mxu0
        %v1143 = vadd.f32 0.0, %v1142
        %v1144 = vpop.f32.mrf.mxu0
        %1145 = vmatprep.mubr.bf16.mxu0 0
        %1146 = vmatmul.mubr.bf16.gmra.mxu0 %v590
        %v1147 = vpop.f32.mrf.mxu0
        %v1148 = vadd.f32 0.0, %v1147
        %v1149 = vpop.f32.mrf.mxu0
        %v1150 = vpop.f32.mrf.mxu0
        %v1151 = vadd.f32 0.0, %v1150
        %v1152 = vpop.f32.mrf.mxu0
        %1153 = vdwg.mxu0
        %v1154 = vmax.f32 %v1028, %v1044
        %v1155 = vmax.f32 %v1031, %v1047
        %v1156 = vmax.f32 %v1036, %v1052
        %v1157 = vmax.f32 %v1039, %v1055
        %v1158 = vmax.f32 %v1154, %v1060
        %v1159 = vmax.f32 %v1155, %v1063
        %v1160 = vmax.f32 %v1156, %v1068
        %v1161 = vmax.f32 %v1157, %v1071
        %v1162 = vmax.f32 %v1158, %v1076
        %v1163 = vmax.f32 %v1159, %v1079
        %v1164 = vmax.f32 %v1160, %v1084
        %v1165 = vmax.f32 %v1161, %v1087
        %v1166 = vmax.f32 %v1162, %v1092
        %v1167 = vmax.f32 %v1163, %v1095
        %v1168 = vmax.f32 %v1164, %v1100
        %v1169 = vmax.f32 %v1165, %v1103
        %v1170 = vmax.f32 %v1166, %v1108
        %v1171 = vmax.f32 %v1167, %v1111
        %v1172 = vmax.f32 %v1168, %v1116
        %v1173 = vmax.f32 %v1169, %v1119
        %v1174 = vmax.f32 %v1170, %v1124
        %v1175 = vmax.f32 %v1171, %v1127
        %v1176 = vmax.f32 %v1172, %v1132
        %v1177 = vmax.f32 %v1173, %v1135
        %v1178 = vmax.f32 %v1174, %v1140
        %v1179 = vmax.f32 %v1175, %v1143
        %v1180 = vmax.f32 %v1176, %v1148
        %v1181 = vmax.f32 %v1177, %v1151
        %v1182 = vmax.f32 %v1178, %v1179
        %v1183 = vmax.f32 %v1180, %v1181
        %v1184 = vmax.f32 %v1182, %v1183
        %v1185 = vrot.slane %v1184, 4
        %v1186 = vmax.f32 %v1184, %v1185
        %v1187 = vrot.slane %v1186, 2
        %v1188 = vmax.f32 %v1186, %v1187
        %v1189 = vrot.slane %v1188, 1
        %v1190 = vmax.f32 %v1188, %v1189
        %v1191 = vsub.f32 %v1028, %v1190
        %v1192 = vsub.f32 %v1031, %v1190
        %v1193 = vsub.f32 %v1036, %v1190
        %v1194 = vsub.f32 %v1039, %v1190
        %v1195 = vsub.f32 %v1044, %v1190
        %v1196 = vsub.f32 %v1047, %v1190
        %v1197 = vsub.f32 %v1052, %v1190
        %v1198 = vsub.f32 %v1055, %v1190
        %v1199 = vsub.f32 %v1060, %v1190
        %v1200 = vsub.f32 %v1063, %v1190
        %v1201 = vsub.f32 %v1068, %v1190
        %v1202 = vsub.f32 %v1071, %v1190
        %v1203 = vsub.f32 %v1076, %v1190
        %v1204 = vsub.f32 %v1079, %v1190
        %v1205 = vsub.f32 %v1084, %v1190
        %v1206 = vsub.f32 %v1087, %v1190
        %v1207 = vsub.f32 %v1092, %v1190
        %v1208 = vsub.f32 %v1095, %v1190
        %v1209 = vsub.f32 %v1100, %v1190
        %v1210 = vsub.f32 %v1103, %v1190
        %v1211 = vsub.f32 %v1108, %v1190
        %v1212 = vsub.f32 %v1111, %v1190
        %v1213 = vsub.f32 %v1116, %v1190
        %v1214 = vsub.f32 %v1119, %v1190
        %v1215 = vsub.f32 %v1124, %v1190
        %v1216 = vsub.f32 %v1127, %v1190
        %v1217 = vsub.f32 %v1132, %v1190
        %v1218 = vsub.f32 %v1135, %v1190
        %v1219 = vsub.f32 %v1140, %v1190
        %v1220 = vsub.f32 %v1143, %v1190
        %v1221 = vsub.f32 %v1148, %v1190
        %v1222 = vsub.f32 %v1151, %v1190
        %v1223 = vmul.f32 %v1191, 1.442695
        %v1224 = vpow.pop %v1223
        %v1225 = vmul.f32 %v1192, 1.442695
        %v1226 = vpow.pop %v1225
        %v1227 = vmul.f32 %v1193, 1.442695
        %v1228 = vpow.pop %v1227
        %v1229 = vmul.f32 %v1194, 1.442695
        %v1230 = vpow.pop %v1229
        %v1231 = vmul.f32 %v1195, 1.442695
        %v1232 = vpow.pop %v1231
        %v1233 = vmul.f32 %v1196, 1.442695
        %v1234 = vpow.pop %v1233
        %v1235 = vmul.f32 %v1197, 1.442695
        %v1236 = vpow.pop %v1235
        %v1237 = vmul.f32 %v1198, 1.442695
        %v1238 = vpow.pop %v1237
        %v1239 = vmul.f32 %v1199, 1.442695
        %v1240 = vpow.pop %v1239
        %v1241 = vmul.f32 %v1200, 1.442695
        %v1242 = vpow.pop %v1241
        %v1243 = vmul.f32 %v1201, 1.442695
        %v1244 = vpow.pop %v1243
        %v1245 = vmul.f32 %v1202, 1.442695
        %v1246 = vpow.pop %v1245
        %v1247 = vmul.f32 %v1203, 1.442695
        %v1248 = vpow.pop %v1247
        %v1249 = vmul.f32 %v1204, 1.442695
        %v1250 = vpow.pop %v1249
        %v1251 = vmul.f32 %v1205, 1.442695
        %v1252 = vpow.pop %v1251
        %v1253 = vmul.f32 %v1206, 1.442695
        %v1254 = vpow.pop %v1253
        %v1255 = vmul.f32 %v1207, 1.442695
        %v1256 = vpow.pop %v1255
        %v1257 = vmul.f32 %v1208, 1.442695
        %v1258 = vpow.pop %v1257
        %v1259 = vmul.f32 %v1209, 1.442695
        %v1260 = vpow.pop %v1259
        %v1261 = vmul.f32 %v1210, 1.442695
        %v1262 = vpow.pop %v1261
        %v1263 = vmul.f32 %v1211, 1.442695
        %v1264 = vpow.pop %v1263
        %v1265 = vmul.f32 %v1212, 1.442695
        %v1266 = vpow.pop %v1265
        %v1267 = vmul.f32 %v1213, 1.442695
        %v1268 = vpow.pop %v1267
        %v1269 = vmul.f32 %v1214, 1.442695
        %v1270 = vpow.pop %v1269
        %v1271 = vmul.f32 %v1215, 1.442695
        %v1272 = vpow.pop %v1271
        %v1273 = vmul.f32 %v1216, 1.442695
        %v1274 = vpow.pop %v1273
        %v1275 = vmul.f32 %v1217, 1.442695
        %v1276 = vpow.pop %v1275
        %v1277 = vmul.f32 %v1218, 1.442695
        %v1278 = vpow.pop %v1277
        %v1279 = vmul.f32 %v1219, 1.442695
        %v1280 = vpow.pop %v1279
        %v1281 = vmul.f32 %v1220, 1.442695
        %v1282 = vpow.pop %v1281
        %v1283 = vmul.f32 %v1221, 1.442695
        %v1284 = vpow.pop %v1283
        %v1285 = vmul.f32 %v1222, 1.442695
        %v1286 = vpow.pop %v1285
        %v1287 = vadd.f32 %v1224, %v1226
        %v1288 = vadd.f32 %v1287, %v1228
        %v1289 = vadd.f32 %v1288, %v1230
        %v1290 = vadd.f32 %v1289, %v1232
        %v1291 = vadd.f32 %v1290, %v1234
        %v1292 = vadd.f32 %v1291, %v1236
        %v1293 = vadd.f32 %v1292, %v1238
        %v1294 = vadd.f32 %v1293, %v1240
        %v1295 = vadd.f32 %v1294, %v1242
        %v1296 = vadd.f32 %v1295, %v1244
        %v1297 = vadd.f32 %v1296, %v1246
        %v1298 = vadd.f32 %v1297, %v1248
        %v1299 = vadd.f32 %v1298, %v1250
        %v1300 = vadd.f32 %v1299, %v1252
        %v1301 = vadd.f32 %v1300, %v1254
        %v1302 = vadd.f32 %v1301, %v1256
        %v1303 = vadd.f32 %v1302, %v1258
        %v1304 = vadd.f32 %v1303, %v1260
        %v1305 = vadd.f32 %v1304, %v1262
        %v1306 = vadd.f32 %v1305, %v1264
        %v1307 = vadd.f32 %v1306, %v1266
        %v1308 = vadd.f32 %v1307, %v1268
        %v1309 = vadd.f32 %v1308, %v1270
        %v1310 = vadd.f32 %v1309, %v1272
        %v1311 = vadd.f32 %v1310, %v1274
        %v1312 = vadd.f32 %v1311, %v1276
        %v1313 = vadd.f32 %v1312, %v1278
        %v1314 = vadd.f32 %v1313, %v1280
        %v1315 = vadd.f32 %v1314, %v1282
        %v1316 = vadd.f32 %v1315, %v1284
        %v1317 = vadd.f32 %v1316, %v1286
        %v1318 = vrot.slane %v1317, 4
        %v1319 = vadd.f32 %v1317, %v1318
        %v1320 = vrot.slane %v1319, 2
        %v1321 = vadd.f32 %v1319, %v1320
        %v1322 = vrot.slane %v1321, 1
        %v1323 = vadd.f32 %v1321, %v1322
        %v1324 = vpack.c.bf16 %v1226, %v1224
        %v1325 = vpack.c.bf16 %v1230, %v1228
        %v1326 = vpack.c.bf16 %v1234, %v1232
        %v1327 = vpack.c.bf16 %v1238, %v1236
        %v1328 = vpack.c.bf16 %v1242, %v1240
        %v1329 = vpack.c.bf16 %v1246, %v1244
        %v1330 = vpack.c.bf16 %v1250, %v1248
        %v1331 = vpack.c.bf16 %v1254, %v1252
        %v1332 = vpack.c.bf16 %v1258, %v1256
        %v1333 = vpack.c.bf16 %v1262, %v1260
        %v1334 = vpack.c.bf16 %v1266, %v1264
        %v1335 = vpack.c.bf16 %v1270, %v1268
        %v1336 = vpack.c.bf16 %v1274, %v1272
        %v1337 = vpack.c.bf16 %v1278, %v1276
        %v1338 = vpack.c.bf16 %v1282, %v1280
        %v1339 = vpack.c.bf16 %v1286, %v1284
        %1340 = vmatprep.subr.bf16.mxu0 0
        %1341 = vmatpush1.bf16.msra.mxu0 %v1331
        %1342 = vmatprep.subr.bf16.mxu0 0
        %1343 = vmatpush1.bf16.msra.mxu0 %v1330
        %1344 = vmatprep.subr.bf16.mxu0 0
        %1345 = vmatpush1.bf16.msra.mxu0 %v1329
        %1346 = vmatprep.subr.bf16.mxu0 0
        %1347 = vmatpush1.bf16.msra.mxu0 %v1328
        %1348 = vmatprep.subr.bf16.mxu0 0
        %1349 = vmatpush1.bf16.msra.mxu0 %v1327
        %1350 = vmatprep.subr.bf16.mxu0 0
        %1351 = vmatpush1.bf16.msra.mxu0 %v1326
        %1352 = vmatprep.subr.bf16.mxu0 0
        %1353 = vmatpush1.bf16.msra.mxu0 %v1325
        %1354 = vmatprep.subr.bf16.mxu0 0
        %1355 = vmatpush1.bf16.msra.mxu0 %v1324
        %1356 = vmatprep.subr.bf16.mxu0 0
        %1357 = vmatpush2.bf16.msra.mxu0 %v1339
        %1358 = vmatprep.subr.bf16.mxu0 0
        %1359 = vmatpush2.bf16.msra.mxu0 %v1338
        %1360 = vmatprep.subr.bf16.mxu0 0
        %1361 = vmatpush2.bf16.msra.mxu0 %v1337
        %1362 = vmatprep.subr.bf16.mxu0 0
        %1363 = vmatpush2.bf16.msra.mxu0 %v1336
        %1364 = vmatprep.subr.bf16.mxu0 0
        %1365 = vmatpush2.bf16.msra.mxu0 %v1335
        %1366 = vmatprep.subr.bf16.mxu0 0
        %1367 = vmatpush2.bf16.msra.mxu0 %v1334
        %1368 = vmatprep.subr.bf16.mxu0 0
        %1369 = vmatpush2.bf16.msra.mxu0 %v1333
        %1370 = vmatprep.subr.bf16.mxu0 0
        %1371 = vmatpush2.bf16.msra.mxu0 %v1332
        %1372 = vmatprep.mubr.bf16.mxu0 %v505
        %1373 = vmatmul.mubr.bf16.gmra.mxu0 %v504
        %v1374 = vpop.f32.mrf.mxu0
        %v1375 = vadd.f32 0.0, %v1374
        %v1376 = vpop.f32.mrf.mxu0
        %v1377 = vpop.f32.mrf.mxu0
        %v1378 = vpop.f32.mrf.mxu0
        %1379 = vdwg.mxu0
        %v1380 = vrcp.pop %v1323
        %v1381 = vmul.f32 %v1375, %v1380
        %1382 = vst [vmem:[%s986 + $0x8] sm:$0xff] %v1381
        %s1383 = sadd.s32 8, 32
        %s1384 = sshra.s32 %s1383, 3
        %s1385 = sand.u32 %s1383, 7
        %s1386 = smul.u32 %s1384, 2
        %s1387 = smul.addr %s1386, 8
        %s1388 = scalar_lea.vmem [#allocation2], %s1387
        %v1389 = vld [vmem:[%s1388] sm:$0xff]
        %v1390 = vld [vmem:[%s1388 + $0x8] sm:$0xff]
        %v1391 = vpack.c.bf16 %v1389, %v1389
        %v1392 = vpack.c.bf16 %v1390, %v1390
        %s1393 = sadd.s32 8, 64
        %s1394 = sshra.s32 %s1393, 3
        %s1395 = sand.u32 %s1393, 7
        %s1396 = smul.u32 %s1394, 2
        %s1397 = smul.addr %s1396, 8
        %s1398 = scalar_lea.vmem [#allocation2], %s1397
        %v1399 = vld [vmem:[%s1398] sm:$0xff]
        %v1400 = vld [vmem:[%s1398 + $0x8] sm:$0xff]
        %v1401 = vpack.c.bf16 %v1399, %v1399
        %v1402 = vpack.c.bf16 %v1400, %v1400
        %s1403 = smul.u32 1, 2
        %s1404 = smul.addr %s1403, 8
        %s1405 = scalar_lea.vmem [#allocation2], %s1404
        %v1406 = vld [vmem:[%s1405] sm:$0xff]
        %v1407 = vpack.c.bf16 %v1406, %v1406
        %1408 = vxpose.xlu0.c.b16.start [1/8] %v1391, 128
        %1409 = vxpose.xlu0.c.b16.cont [2/8] 0, 128
        %1410 = vxpose.xlu0.c.b16.cont [3/8] 0, 128
        %1411 = vxpose.xlu0.c.b16.cont [4/8] 0, 128
        %1412 = vxpose.xlu0.c.b16.cont [5/8] 0, 128
        %1413 = vxpose.xlu0.c.b16.cont [6/8] 0, 128
        %1414 = vxpose.xlu0.c.b16.cont [7/8] 0, 128
        %1415 = vxpose.xlu0.c.b16.end [8/8] 0, 128
        %v1416 = vpop.trf.xlu0
        %v1417 = vpop.trf.xlu0
        %v1418 = vpop.trf.xlu0
        %v1419 = vpop.trf.xlu0
        %v1420 = vpop.trf.xlu0
        %v1421 = vpop.trf.xlu0
        %v1422 = vpop.trf.xlu0
        %v1423 = vpop.trf.xlu0
        %1424 = vxpose.xlu0.c.b16.start [1/8] %v1392, 128
        %1425 = vxpose.xlu0.c.b16.cont [2/8] 0, 128
        %1426 = vxpose.xlu0.c.b16.cont [3/8] 0, 128
        %1427 = vxpose.xlu0.c.b16.cont [4/8] 0, 128
        %1428 = vxpose.xlu0.c.b16.cont [5/8] 0, 128
        %1429 = vxpose.xlu0.c.b16.cont [6/8] 0, 128
        %1430 = vxpose.xlu0.c.b16.cont [7/8] 0, 128
        %1431 = vxpose.xlu0.c.b16.end [8/8] 0, 128
        %v1432 = vpop.trf.xlu0
        %v1433 = vpop.trf.xlu0
        %v1434 = vpop.trf.xlu0
        %v1435 = vpop.trf.xlu0
        %v1436 = vpop.trf.xlu0
        %v1437 = vpop.trf.xlu0
        %v1438 = vpop.trf.xlu0
        %v1439 = vpop.trf.xlu0
        %v1441 = vsel %vm543, %v1416, 0
        %v1444 = vsel %vm543, %v1417, 0
        %v1447 = vsel %vm543, %v1418, 0
        %v1450 = vsel %vm543, %v1419, 0
        %v1453 = vsel %vm543, %v1420, 0
        %v1456 = vsel %vm543, %v1421, 0
        %v1459 = vsel %vm543, %v1422, 0
        %v1462 = vsel %vm543, %v1423, 0
        %v1465 = vsel %vm543, %v1432, 0
        %v1468 = vsel %vm543, %v1433, 0
        %v1471 = vsel %vm543, %v1434, 0
        %v1474 = vsel %vm543, %v1435, 0
        %v1477 = vsel %vm543, %v1436, 0
        %v1480 = vsel %vm543, %v1437, 0
        %v1483 = vsel %vm543, %v1438, 0
        %v1486 = vsel %vm543, %v1439, 0
        %v1489 = vsel %vm592, %v1407, 0
        %1491 = vmatprep.subr.bf16.mxu0 0
        %1492 = vmatpush1.bf16.msra.mxu0 0
        %1493 = vmatprep.subr.bf16.mxu0 0
        %1494 = vmatpush1.bf16.msra.mxu0 0
        %1495 = vmatprep.subr.bf16.mxu0 0
        %1496 = vmatpush1.bf16.msra.mxu0 0
        %1497 = vmatprep.subr.bf16.mxu0 0
        %1498 = vmatpush1.bf16.msra.mxu0 0
        %1499 = vmatprep.subr.bf16.mxu0 0
        %1500 = vmatpush1.bf16.msra.mxu0 0
        %1501 = vmatprep.subr.bf16.mxu0 0
        %1502 = vmatpush1.bf16.msra.mxu0 0
        %1503 = vmatprep.subr.bf16.mxu0 0
        %1504 = vmatpush1.bf16.msra.mxu0 0
        %1505 = vmatprep.subr.bf16.mxu0 0
        %1506 = vmatpush1.bf16.msra.mxu0 %v1489
        %1507 = vmatprep.subr.bf16.mxu0 0
        %1508 = vmatpush2.bf16.msra.mxu0 0
        %1509 = vmatprep.subr.bf16.mxu0 0
        %1510 = vmatpush2.bf16.msra.mxu0 0
        %1511 = vmatprep.subr.bf16.mxu0 0
        %1512 = vmatpush2.bf16.msra.mxu0 0
        %1513 = vmatprep.subr.bf16.mxu0 0
        %1514 = vmatpush2.bf16.msra.mxu0 0
        %1515 = vmatprep.subr.bf16.mxu0 0
        %1516 = vmatpush2.bf16.msra.mxu0 0
        %1517 = vmatprep.subr.bf16.mxu0 0
        %1518 = vmatpush2.bf16.msra.mxu0 0
        %1519 = vmatprep.subr.bf16.mxu0 0
        %1520 = vmatpush2.bf16.msra.mxu0 0
        %1521 = vmatprep.subr.bf16.mxu0 0
        %1522 = vmatpush2.bf16.msra.mxu0 0
        %1523 = vmatprep.mubr.bf16.mxu0 0
        %1524 = vmatmul.mubr.bf16.gmra.mxu0 %v1441
        %v1525 = vpop.f32.mrf.mxu0
        %v1526 = vadd.f32 0.0, %v1525
        %v1527 = vpop.f32.mrf.mxu0
        %v1528 = vpop.f32.mrf.mxu0
        %v1529 = vadd.f32 0.0, %v1528
        %v1530 = vpop.f32.mrf.mxu0
        %1531 = vmatprep.mubr.bf16.mxu0 0
        %1532 = vmatmul.mubr.bf16.gmra.mxu0 %v1444
        %v1533 = vpop.f32.mrf.mxu0
        %v1534 = vadd.f32 0.0, %v1533
        %v1535 = vpop.f32.mrf.mxu0
        %v1536 = vpop.f32.mrf.mxu0
        %v1537 = vadd.f32 0.0, %v1536
        %v1538 = vpop.f32.mrf.mxu0
        %1539 = vmatprep.mubr.bf16.mxu0 0
        %1540 = vmatmul.mubr.bf16.gmra.mxu0 %v1447
        %v1541 = vpop.f32.mrf.mxu0
        %v1542 = vadd.f32 0.0, %v1541
        %v1543 = vpop.f32.mrf.mxu0
        %v1544 = vpop.f32.mrf.mxu0
        %v1545 = vadd.f32 0.0, %v1544
        %v1546 = vpop.f32.mrf.mxu0
        %1547 = vmatprep.mubr.bf16.mxu0 0
        %1548 = vmatmul.mubr.bf16.gmra.mxu0 %v1450
        %v1549 = vpop.f32.mrf.mxu0
        %v1550 = vadd.f32 0.0, %v1549
        %v1551 = vpop.f32.mrf.mxu0
        %v1552 = vpop.f32.mrf.mxu0
        %v1553 = vadd.f32 0.0, %v1552
        %v1554 = vpop.f32.mrf.mxu0
        %1555 = vmatprep.mubr.bf16.mxu0 0
        %1556 = vmatmul.mubr.bf16.gmra.mxu0 %v1453
        %v1557 = vpop.f32.mrf.mxu0
        %v1558 = vadd.f32 0.0, %v1557
        %v1559 = vpop.f32.mrf.mxu0
        %v1560 = vpop.f32.mrf.mxu0
        %v1561 = vadd.f32 0.0, %v1560
        %v1562 = vpop.f32.mrf.mxu0
        %1563 = vmatprep.mubr.bf16.mxu0 0
        %1564 = vmatmul.mubr.bf16.gmra.mxu0 %v1456
        %v1565 = vpop.f32.mrf.mxu0
        %v1566 = vadd.f32 0.0, %v1565
        %v1567 = vpop.f32.mrf.mxu0
        %v1568 = vpop.f32.mrf.mxu0
        %v1569 = vadd.f32 0.0, %v1568
        %v1570 = vpop.f32.mrf.mxu0
        %1571 = vmatprep.mubr.bf16.mxu0 0
        %1572 = vmatmul.mubr.bf16.gmra.mxu0 %v1459
        %v1573 = vpop.f32.mrf.mxu0
        %v1574 = vadd.f32 0.0, %v1573
        %v1575 = vpop.f32.mrf.mxu0
        %v1576 = vpop.f32.mrf.mxu0
        %v1577 = vadd.f32 0.0, %v1576
        %v1578 = vpop.f32.mrf.mxu0
        %1579 = vmatprep.mubr.bf16.mxu0 0
        %1580 = vmatmul.mubr.bf16.gmra.mxu0 %v1462
        %v1581 = vpop.f32.mrf.mxu0
        %v1582 = vadd.f32 0.0, %v1581
        %v1583 = vpop.f32.mrf.mxu0
        %v1584 = vpop.f32.mrf.mxu0
        %v1585 = vadd.f32 0.0, %v1584
        %v1586 = vpop.f32.mrf.mxu0
        %1587 = vmatprep.mubr.bf16.mxu0 0
        %1588 = vmatmul.mubr.bf16.gmra.mxu0 %v1465
        %v1589 = vpop.f32.mrf.mxu0
        %v1590 = vadd.f32 0.0, %v1589
        %v1591 = vpop.f32.mrf.mxu0
        %v1592 = vpop.f32.mrf.mxu0
        %v1593 = vadd.f32 0.0, %v1592
        %v1594 = vpop.f32.mrf.mxu0
        %1595 = vmatprep.mubr.bf16.mxu0 0
        %1596 = vmatmul.mubr.bf16.gmra.mxu0 %v1468
        %v1597 = vpop.f32.mrf.mxu0
        %v1598 = vadd.f32 0.0, %v1597
        %v1599 = vpop.f32.mrf.mxu0
        %v1600 = vpop.f32.mrf.mxu0
        %v1601 = vadd.f32 0.0, %v1600
        %v1602 = vpop.f32.mrf.mxu0
        %1603 = vmatprep.mubr.bf16.mxu0 0
        %1604 = vmatmul.mubr.bf16.gmra.mxu0 %v1471
        %v1605 = vpop.f32.mrf.mxu0
        %v1606 = vadd.f32 0.0, %v1605
        %v1607 = vpop.f32.mrf.mxu0
        %v1608 = vpop.f32.mrf.mxu0
        %v1609 = vadd.f32 0.0, %v1608
        %v1610 = vpop.f32.mrf.mxu0
        %1611 = vmatprep.mubr.bf16.mxu0 0
        %1612 = vmatmul.mubr.bf16.gmra.mxu0 %v1474
        %v1613 = vpop.f32.mrf.mxu0
        %v1614 = vadd.f32 0.0, %v1613
        %v1615 = vpop.f32.mrf.mxu0
        %v1616 = vpop.f32.mrf.mxu0
        %v1617 = vadd.f32 0.0, %v1616
        %v1618 = vpop.f32.mrf.mxu0
        %1619 = vmatprep.mubr.bf16.mxu0 0
        %1620 = vmatmul.mubr.bf16.gmra.mxu0 %v1477
        %v1621 = vpop.f32.mrf.mxu0
        %v1622 = vadd.f32 0.0, %v1621
        %v1623 = vpop.f32.mrf.mxu0
        %v1624 = vpop.f32.mrf.mxu0
        %v1625 = vadd.f32 0.0, %v1624
        %v1626 = vpop.f32.mrf.mxu0
        %1627 = vmatprep.mubr.bf16.mxu0 0
        %1628 = vmatmul.mubr.bf16.gmra.mxu0 %v1480
        %v1629 = vpop.f32.mrf.mxu0
        %v1630 = vadd.f32 0.0, %v1629
        %v1631 = vpop.f32.mrf.mxu0
        %v1632 = vpop.f32.mrf.mxu0
        %v1633 = vadd.f32 0.0, %v1632
        %v1634 = vpop.f32.mrf.mxu0
        %1635 = vmatprep.mubr.bf16.mxu0 0
        %1636 = vmatmul.mubr.bf16.gmra.mxu0 %v1483
        %v1637 = vpop.f32.mrf.mxu0
        %v1638 = vadd.f32 0.0, %v1637
        %v1639 = vpop.f32.mrf.mxu0
        %v1640 = vpop.f32.mrf.mxu0
        %v1641 = vadd.f32 0.0, %v1640
        %v1642 = vpop.f32.mrf.mxu0
        %1643 = vmatprep.mubr.bf16.mxu0 0
        %1644 = vmatmul.mubr.bf16.gmra.mxu0 %v1486
        %v1645 = vpop.f32.mrf.mxu0
        %v1646 = vadd.f32 0.0, %v1645
        %v1647 = vpop.f32.mrf.mxu0
        %v1648 = vpop.f32.mrf.mxu0
        %v1649 = vadd.f32 0.0, %v1648
        %v1650 = vpop.f32.mrf.mxu0
        %1651 = vdwg.mxu0
        %v1652 = vmax.f32 %v1526, %v1542
        %v1653 = vmax.f32 %v1529, %v1545
        %v1654 = vmax.f32 %v1534, %v1550
        %v1655 = vmax.f32 %v1537, %v1553
        %v1656 = vmax.f32 %v1652, %v1558
        %v1657 = vmax.f32 %v1653, %v1561
        %v1658 = vmax.f32 %v1654, %v1566
        %v1659 = vmax.f32 %v1655, %v1569
        %v1660 = vmax.f32 %v1656, %v1574
        %v1661 = vmax.f32 %v1657, %v1577
        %v1662 = vmax.f32 %v1658, %v1582
        %v1663 = vmax.f32 %v1659, %v1585
        %v1664 = vmax.f32 %v1660, %v1590
        %v1665 = vmax.f32 %v1661, %v1593
        %v1666 = vmax.f32 %v1662, %v1598
        %v1667 = vmax.f32 %v1663, %v1601
        %v1668 = vmax.f32 %v1664, %v1606
        %v1669 = vmax.f32 %v1665, %v1609
        %v1670 = vmax.f32 %v1666, %v1614
        %v1671 = vmax.f32 %v1667, %v1617
        %v1672 = vmax.f32 %v1668, %v1622
        %v1673 = vmax.f32 %v1669, %v1625
        %v1674 = vmax.f32 %v1670, %v1630
        %v1675 = vmax.f32 %v1671, %v1633
        %v1676 = vmax.f32 %v1672, %v1638
        %v1677 = vmax.f32 %v1673, %v1641
        %v1678 = vmax.f32 %v1674, %v1646
        %v1679 = vmax.f32 %v1675, %v1649
        %v1680 = vmax.f32 %v1676, %v1677
        %v1681 = vmax.f32 %v1678, %v1679
        %v1682 = vmax.f32 %v1680, %v1681
        %v1683 = vrot.slane %v1682, 4
        %v1684 = vmax.f32 %v1682, %v1683
        %v1685 = vrot.slane %v1684, 2
        %v1686 = vmax.f32 %v1684, %v1685
        %v1687 = vrot.slane %v1686, 1
        %v1688 = vmax.f32 %v1686, %v1687
        %v1689 = vsub.f32 %v1526, %v1688
        %v1690 = vsub.f32 %v1529, %v1688
        %v1691 = vsub.f32 %v1534, %v1688
        %v1692 = vsub.f32 %v1537, %v1688
        %v1693 = vsub.f32 %v1542, %v1688
        %v1694 = vsub.f32 %v1545, %v1688
        %v1695 = vsub.f32 %v1550, %v1688
        %v1696 = vsub.f32 %v1553, %v1688
        %v1697 = vsub.f32 %v1558, %v1688
        %v1698 = vsub.f32 %v1561, %v1688
        %v1699 = vsub.f32 %v1566, %v1688
        %v1700 = vsub.f32 %v1569, %v1688
        %v1701 = vsub.f32 %v1574, %v1688
        %v1702 = vsub.f32 %v1577, %v1688
        %v1703 = vsub.f32 %v1582, %v1688
        %v1704 = vsub.f32 %v1585, %v1688
        %v1705 = vsub.f32 %v1590, %v1688
        %v1706 = vsub.f32 %v1593, %v1688
        %v1707 = vsub.f32 %v1598, %v1688
        %v1708 = vsub.f32 %v1601, %v1688
        %v1709 = vsub.f32 %v1606, %v1688
        %v1710 = vsub.f32 %v1609, %v1688
        %v1711 = vsub.f32 %v1614, %v1688
        %v1712 = vsub.f32 %v1617, %v1688
        %v1713 = vsub.f32 %v1622, %v1688
        %v1714 = vsub.f32 %v1625, %v1688
        %v1715 = vsub.f32 %v1630, %v1688
        %v1716 = vsub.f32 %v1633, %v1688
        %v1717 = vsub.f32 %v1638, %v1688
        %v1718 = vsub.f32 %v1641, %v1688
        %v1719 = vsub.f32 %v1646, %v1688
        %v1720 = vsub.f32 %v1649, %v1688
        %v1721 = vmul.f32 %v1689, 1.442695
        %v1722 = vpow.pop %v1721
        %v1723 = vmul.f32 %v1690, 1.442695
        %v1724 = vpow.pop %v1723
        %v1725 = vmul.f32 %v1691, 1.442695
        %v1726 = vpow.pop %v1725
        %v1727 = vmul.f32 %v1692, 1.442695
        %v1728 = vpow.pop %v1727
        %v1729 = vmul.f32 %v1693, 1.442695
        %v1730 = vpow.pop %v1729
        %v1731 = vmul.f32 %v1694, 1.442695
        %v1732 = vpow.pop %v1731
        %v1733 = vmul.f32 %v1695, 1.442695
        %v1734 = vpow.pop %v1733
        %v1735 = vmul.f32 %v1696, 1.442695
        %v1736 = vpow.pop %v1735
        %v1737 = vmul.f32 %v1697, 1.442695
        %v1738 = vpow.pop %v1737
        %v1739 = vmul.f32 %v1698, 1.442695
        %v1740 = vpow.pop %v1739
        %v1741 = vmul.f32 %v1699, 1.442695
        %v1742 = vpow.pop %v1741
        %v1743 = vmul.f32 %v1700, 1.442695
        %v1744 = vpow.pop %v1743
        %v1745 = vmul.f32 %v1701, 1.442695
        %v1746 = vpow.pop %v1745
        %v1747 = vmul.f32 %v1702, 1.442695
        %v1748 = vpow.pop %v1747
        %v1749 = vmul.f32 %v1703, 1.442695
        %v1750 = vpow.pop %v1749
        %v1751 = vmul.f32 %v1704, 1.442695
        %v1752 = vpow.pop %v1751
        %v1753 = vmul.f32 %v1705, 1.442695
        %v1754 = vpow.pop %v1753
        %v1755 = vmul.f32 %v1706, 1.442695
        %v1756 = vpow.pop %v1755
        %v1757 = vmul.f32 %v1707, 1.442695
        %v1758 = vpow.pop %v1757
        %v1759 = vmul.f32 %v1708, 1.442695
        %v1760 = vpow.pop %v1759
        %v1761 = vmul.f32 %v1709, 1.442695
        %v1762 = vpow.pop %v1761
        %v1763 = vmul.f32 %v1710, 1.442695
        %v1764 = vpow.pop %v1763
        %v1765 = vmul.f32 %v1711, 1.442695
        %v1766 = vpow.pop %v1765
        %v1767 = vmul.f32 %v1712, 1.442695
        %v1768 = vpow.pop %v1767
        %v1769 = vmul.f32 %v1713, 1.442695
        %v1770 = vpow.pop %v1769
        %v1771 = vmul.f32 %v1714, 1.442695
        %v1772 = vpow.pop %v1771
        %v1773 = vmul.f32 %v1715, 1.442695
        %v1774 = vpow.pop %v1773
        %v1775 = vmul.f32 %v1716, 1.442695
        %v1776 = vpow.pop %v1775
        %v1777 = vmul.f32 %v1717, 1.442695
        %v1778 = vpow.pop %v1777
        %v1779 = vmul.f32 %v1718, 1.442695
        %v1780 = vpow.pop %v1779
        %v1781 = vmul.f32 %v1719, 1.442695
        %v1782 = vpow.pop %v1781
        %v1783 = vmul.f32 %v1720, 1.442695
        %v1784 = vpow.pop %v1783
        %v1785 = vadd.f32 %v1722, %v1724
        %v1786 = vadd.f32 %v1785, %v1726
        %v1787 = vadd.f32 %v1786, %v1728
        %v1788 = vadd.f32 %v1787, %v1730
        %v1789 = vadd.f32 %v1788, %v1732
        %v1790 = vadd.f32 %v1789, %v1734
        %v1791 = vadd.f32 %v1790, %v1736
        %v1792 = vadd.f32 %v1791, %v1738
        %v1793 = vadd.f32 %v1792, %v1740
        %v1794 = vadd.f32 %v1793, %v1742
        %v1795 = vadd.f32 %v1794, %v1744
        %v1796 = vadd.f32 %v1795, %v1746
        %v1797 = vadd.f32 %v1796, %v1748
        %v1798 = vadd.f32 %v1797, %v1750
        %v1799 = vadd.f32 %v1798, %v1752
        %v1800 = vadd.f32 %v1799, %v1754
        %v1801 = vadd.f32 %v1800, %v1756
        %v1802 = vadd.f32 %v1801, %v1758
        %v1803 = vadd.f32 %v1802, %v1760
        %v1804 = vadd.f32 %v1803, %v1762
        %v1805 = vadd.f32 %v1804, %v1764
        %v1806 = vadd.f32 %v1805, %v1766
        %v1807 = vadd.f32 %v1806, %v1768
        %v1808 = vadd.f32 %v1807, %v1770
        %v1809 = vadd.f32 %v1808, %v1772
        %v1810 = vadd.f32 %v1809, %v1774
        %v1811 = vadd.f32 %v1810, %v1776
        %v1812 = vadd.f32 %v1811, %v1778
        %v1813 = vadd.f32 %v1812, %v1780
        %v1814 = vadd.f32 %v1813, %v1782
        %v1815 = vadd.f32 %v1814, %v1784
        %v1816 = vrot.slane %v1815, 4
        %v1817 = vadd.f32 %v1815, %v1816
        %v1818 = vrot.slane %v1817, 2
        %v1819 = vadd.f32 %v1817, %v1818
        %v1820 = vrot.slane %v1819, 1
        %v1821 = vadd.f32 %v1819, %v1820
        %v1822 = vpack.c.bf16 %v1724, %v1722
        %v1823 = vpack.c.bf16 %v1728, %v1726
        %v1824 = vpack.c.bf16 %v1732, %v1730
        %v1825 = vpack.c.bf16 %v1736, %v1734
        %v1826 = vpack.c.bf16 %v1740, %v1738
        %v1827 = vpack.c.bf16 %v1744, %v1742
        %v1828 = vpack.c.bf16 %v1748, %v1746
        %v1829 = vpack.c.bf16 %v1752, %v1750
        %v1830 = vpack.c.bf16 %v1756, %v1754
        %v1831 = vpack.c.bf16 %v1760, %v1758
        %v1832 = vpack.c.bf16 %v1764, %v1762
        %v1833 = vpack.c.bf16 %v1768, %v1766
        %v1834 = vpack.c.bf16 %v1772, %v1770
        %v1835 = vpack.c.bf16 %v1776, %v1774
        %v1836 = vpack.c.bf16 %v1780, %v1778
        %v1837 = vpack.c.bf16 %v1784, %v1782
        %1838 = vmatprep.subr.bf16.mxu0 0
        %1839 = vmatpush1.bf16.msra.mxu0 %v1829
        %1840 = vmatprep.subr.bf16.mxu0 0
        %1841 = vmatpush1.bf16.msra.mxu0 %v1828
        %1842 = vmatprep.subr.bf16.mxu0 0
        %1843 = vmatpush1.bf16.msra.mxu0 %v1827
        %1844 = vmatprep.subr.bf16.mxu0 0
        %1845 = vmatpush1.bf16.msra.mxu0 %v1826
        %1846 = vmatprep.subr.bf16.mxu0 0
        %1847 = vmatpush1.bf16.msra.mxu0 %v1825
        %1848 = vmatprep.subr.bf16.mxu0 0
        %1849 = vmatpush1.bf16.msra.mxu0 %v1824
        %1850 = vmatprep.subr.bf16.mxu0 0
        %1851 = vmatpush1.bf16.msra.mxu0 %v1823
        %1852 = vmatprep.subr.bf16.mxu0 0
        %1853 = vmatpush1.bf16.msra.mxu0 %v1822
        %1854 = vmatprep.subr.bf16.mxu0 0
        %1855 = vmatpush2.bf16.msra.mxu0 %v1837
        %1856 = vmatprep.subr.bf16.mxu0 0
        %1857 = vmatpush2.bf16.msra.mxu0 %v1836
        %1858 = vmatprep.subr.bf16.mxu0 0
        %1859 = vmatpush2.bf16.msra.mxu0 %v1835
        %1860 = vmatprep.subr.bf16.mxu0 0
        %1861 = vmatpush2.bf16.msra.mxu0 %v1834
        %1862 = vmatprep.subr.bf16.mxu0 0
        %1863 = vmatpush2.bf16.msra.mxu0 %v1833
        %1864 = vmatprep.subr.bf16.mxu0 0
        %1865 = vmatpush2.bf16.msra.mxu0 %v1832
        %1866 = vmatprep.subr.bf16.mxu0 0
        %1867 = vmatpush2.bf16.msra.mxu0 %v1831
        %1868 = vmatprep.subr.bf16.mxu0 0
        %1869 = vmatpush2.bf16.msra.mxu0 %v1830
        %1870 = vmatprep.mubr.bf16.mxu0 %v1402
        %1871 = vmatmul.mubr.bf16.gmra.mxu0 %v1401
        %v1872 = vpop.f32.mrf.mxu0
        %v1873 = vadd.f32 0.0, %v1872
        %v1874 = vpop.f32.mrf.mxu0
        %v1875 = vpop.f32.mrf.mxu0
        %v1876 = vpop.f32.mrf.mxu0
        %1877 = vdwg.mxu0
        %v1878 = vrcp.pop %v1821
        %v1879 = vmul.f32 %v1873, %v1878
        %s1880 = smul.addr %s1403, 8
        %s1881 = scalar_lea.vmem [#allocation3], %s1880
        %1882 = vst [vmem:[%s1881] sm:$0xff] %v1879
        %v1883 = vld [vmem:[%s1405 + $0x8] sm:$0xff]
        %v1884 = vpack.c.bf16 %v1883, %v1883
        %v1886 = vsel %vm592, %v1884, 0
        %1888 = vmatprep.subr.bf16.mxu0 0
        %1889 = vmatpush1.bf16.msra.mxu0 0
        %1890 = vmatprep.subr.bf16.mxu0 0
        %1891 = vmatpush1.bf16.msra.mxu0 0
        %1892 = vmatprep.subr.bf16.mxu0 0
        %1893 = vmatpush1.bf16.msra.mxu0 0
        %1894 = vmatprep.subr.bf16.mxu0 0
        %1895 = vmatpush1.bf16.msra.mxu0 0
        %1896 = vmatprep.subr.bf16.mxu0 0
        %1897 = vmatpush1.bf16.msra.mxu0 0
        %1898 = vmatprep.subr.bf16.mxu0 0
        %1899 = vmatpush1.bf16.msra.mxu0 0
        %1900 = vmatprep.subr.bf16.mxu0 0
        %1901 = vmatpush1.bf16.msra.mxu0 0
        %1902 = vmatprep.subr.bf16.mxu0 0
        %1903 = vmatpush1.bf16.msra.mxu0 %v1886
        %1904 = vmatprep.subr.bf16.mxu0 0
        %1905 = vmatpush2.bf16.msra.mxu0 0
        %1906 = vmatprep.subr.bf16.mxu0 0
        %1907 = vmatpush2.bf16.msra.mxu0 0
        %1908 = vmatprep.subr.bf16.mxu0 0
        %1909 = vmatpush2.bf16.msra.mxu0 0
        %1910 = vmatprep.subr.bf16.mxu0 0
        %1911 = vmatpush2.bf16.msra.mxu0 0
        %1912 = vmatprep.subr.bf16.mxu0 0
        %1913 = vmatpush2.bf16.msra.mxu0 0
        %1914 = vmatprep.subr.bf16.mxu0 0
        %1915 = vmatpush2.bf16.msra.mxu0 0
        %1916 = vmatprep.subr.bf16.mxu0 0
        %1917 = vmatpush2.bf16.msra.mxu0 0
        %1918 = vmatprep.subr.bf16.mxu0 0
        %1919 = vmatpush2.bf16.msra.mxu0 0
        %1920 = vmatprep.mubr.bf16.mxu0 0
        %1921 = vmatmul.mubr.bf16.gmra.mxu0 %v1441
        %v1922 = vpop.f32.mrf.mxu0
        %v1923 = vadd.f32 0.0, %v1922
        %v1924 = vpop.f32.mrf.mxu0
        %v1925 = vpop.f32.mrf.mxu0
        %v1926 = vadd.f32 0.0, %v1925
        %v1927 = vpop.f32.mrf.mxu0
        %1928 = vmatprep.mubr.bf16.mxu0 0
        %1929 = vmatmul.mubr.bf16.gmra.mxu0 %v1444
        %v1930 = vpop.f32.mrf.mxu0
        %v1931 = vadd.f32 0.0, %v1930
        %v1932 = vpop.f32.mrf.mxu0
        %v1933 = vpop.f32.mrf.mxu0
        %v1934 = vadd.f32 0.0, %v1933
        %v1935 = vpop.f32.mrf.mxu0
        %1936 = vmatprep.mubr.bf16.mxu0 0
        %1937 = vmatmul.mubr.bf16.gmra.mxu0 %v1447
        %v1938 = vpop.f32.mrf.mxu0
        %v1939 = vadd.f32 0.0, %v1938
        %v1940 = vpop.f32.mrf.mxu0
        %v1941 = vpop.f32.mrf.mxu0
        %v1942 = vadd.f32 0.0, %v1941
        %v1943 = vpop.f32.mrf.mxu0
        %1944 = vmatprep.mubr.bf16.mxu0 0
        %1945 = vmatmul.mubr.bf16.gmra.mxu0 %v1450
        %v1946 = vpop.f32.mrf.mxu0
        %v1947 = vadd.f32 0.0, %v1946
        %v1948 = vpop.f32.mrf.mxu0
        %v1949 = vpop.f32.mrf.mxu0
        %v1950 = vadd.f32 0.0, %v1949
        %v1951 = vpop.f32.mrf.mxu0
        %1952 = vmatprep.mubr.bf16.mxu0 0
        %1953 = vmatmul.mubr.bf16.gmra.mxu0 %v1453
        %v1954 = vpop.f32.mrf.mxu0
        %v1955 = vadd.f32 0.0, %v1954
        %v1956 = vpop.f32.mrf.mxu0
        %v1957 = vpop.f32.mrf.mxu0
        %v1958 = vadd.f32 0.0, %v1957
        %v1959 = vpop.f32.mrf.mxu0
        %1960 = vmatprep.mubr.bf16.mxu0 0
        %1961 = vmatmul.mubr.bf16.gmra.mxu0 %v1456
        %v1962 = vpop.f32.mrf.mxu0
        %v1963 = vadd.f32 0.0, %v1962
        %v1964 = vpop.f32.mrf.mxu0
        %v1965 = vpop.f32.mrf.mxu0
        %v1966 = vadd.f32 0.0, %v1965
        %v1967 = vpop.f32.mrf.mxu0
        %1968 = vmatprep.mubr.bf16.mxu0 0
        %1969 = vmatmul.mubr.bf16.gmra.mxu0 %v1459
        %v1970 = vpop.f32.mrf.mxu0
        %v1971 = vadd.f32 0.0, %v1970
        %v1972 = vpop.f32.mrf.mxu0
        %v1973 = vpop.f32.mrf.mxu0
        %v1974 = vadd.f32 0.0, %v1973
        %v1975 = vpop.f32.mrf.mxu0
        %1976 = vmatprep.mubr.bf16.mxu0 0
        %1977 = vmatmul.mubr.bf16.gmra.mxu0 %v1462
        %v1978 = vpop.f32.mrf.mxu0
        %v1979 = vadd.f32 0.0, %v1978
        %v1980 = vpop.f32.mrf.mxu0
        %v1981 = vpop.f32.mrf.mxu0
        %v1982 = vadd.f32 0.0, %v1981
        %v1983 = vpop.f32.mrf.mxu0
        %1984 = vmatprep.mubr.bf16.mxu0 0
        %1985 = vmatmul.mubr.bf16.gmra.mxu0 %v1465
        %v1986 = vpop.f32.mrf.mxu0
        %v1987 = vadd.f32 0.0, %v1986
        %v1988 = vpop.f32.mrf.mxu0
        %v1989 = vpop.f32.mrf.mxu0
        %v1990 = vadd.f32 0.0, %v1989
        %v1991 = vpop.f32.mrf.mxu0
        %1992 = vmatprep.mubr.bf16.mxu0 0
        %1993 = vmatmul.mubr.bf16.gmra.mxu0 %v1468
        %v1994 = vpop.f32.mrf.mxu0
        %v1995 = vadd.f32 0.0, %v1994
        %v1996 = vpop.f32.mrf.mxu0
        %v1997 = vpop.f32.mrf.mxu0
        %v1998 = vadd.f32 0.0, %v1997
        %v1999 = vpop.f32.mrf.mxu0
        %2000 = vmatprep.mubr.bf16.mxu0 0
        %2001 = vmatmul.mubr.bf16.gmra.mxu0 %v1471
        %v2002 = vpop.f32.mrf.mxu0
        %v2003 = vadd.f32 0.0, %v2002
        %v2004 = vpop.f32.mrf.mxu0
        %v2005 = vpop.f32.mrf.mxu0
        %v2006 = vadd.f32 0.0, %v2005
        %v2007 = vpop.f32.mrf.mxu0
        %2008 = vmatprep.mubr.bf16.mxu0 0
        %2009 = vmatmul.mubr.bf16.gmra.mxu0 %v1474
        %v2010 = vpop.f32.mrf.mxu0
        %v2011 = vadd.f32 0.0, %v2010
        %v2012 = vpop.f32.mrf.mxu0
        %v2013 = vpop.f32.mrf.mxu0
        %v2014 = vadd.f32 0.0, %v2013
        %v2015 = vpop.f32.mrf.mxu0
        %2016 = vmatprep.mubr.bf16.mxu0 0
        %2017 = vmatmul.mubr.bf16.gmra.mxu0 %v1477
        %v2018 = vpop.f32.mrf.mxu0
        %v2019 = vadd.f32 0.0, %v2018
        %v2020 = vpop.f32.mrf.mxu0
        %v2021 = vpop.f32.mrf.mxu0
        %v2022 = vadd.f32 0.0, %v2021
        %v2023 = vpop.f32.mrf.mxu0
        %2024 = vmatprep.mubr.bf16.mxu0 0
        %2025 = vmatmul.mubr.bf16.gmra.mxu0 %v1480
        %v2026 = vpop.f32.mrf.mxu0
        %v2027 = vadd.f32 0.0, %v2026
        %v2028 = vpop.f32.mrf.mxu0
        %v2029 = vpop.f32.mrf.mxu0
        %v2030 = vadd.f32 0.0, %v2029
        %v2031 = vpop.f32.mrf.mxu0
        %2032 = vmatprep.mubr.bf16.mxu0 0
        %2033 = vmatmul.mubr.bf16.gmra.mxu0 %v1483
        %v2034 = vpop.f32.mrf.mxu0
        %v2035 = vadd.f32 0.0, %v2034
        %v2036 = vpop.f32.mrf.mxu0
        %v2037 = vpop.f32.mrf.mxu0
        %v2038 = vadd.f32 0.0, %v2037
        %v2039 = vpop.f32.mrf.mxu0
        %2040 = vmatprep.mubr.bf16.mxu0 0
        %2041 = vmatmul.mubr.bf16.gmra.mxu0 %v1486
        %v2042 = vpop.f32.mrf.mxu0
        %v2043 = vadd.f32 0.0, %v2042
        %v2044 = vpop.f32.mrf.mxu0
        %v2045 = vpop.f32.mrf.mxu0
        %v2046 = vadd.f32 0.0, %v2045
        %v2047 = vpop.f32.mrf.mxu0
        %2048 = vdwg.mxu0
        %v2049 = vmax.f32 %v1923, %v1939
        %v2050 = vmax.f32 %v1926, %v1942
        %v2051 = vmax.f32 %v1931, %v1947
        %v2052 = vmax.f32 %v1934, %v1950
        %v2053 = vmax.f32 %v2049, %v1955
        %v2054 = vmax.f32 %v2050, %v1958
        %v2055 = vmax.f32 %v2051, %v1963
        %v2056 = vmax.f32 %v2052, %v1966
        %v2057 = vmax.f32 %v2053, %v1971
        %v2058 = vmax.f32 %v2054, %v1974
        %v2059 = vmax.f32 %v2055, %v1979
        %v2060 = vmax.f32 %v2056, %v1982
        %v2061 = vmax.f32 %v2057, %v1987
        %v2062 = vmax.f32 %v2058, %v1990
        %v2063 = vmax.f32 %v2059, %v1995
        %v2064 = vmax.f32 %v2060, %v1998
        %v2065 = vmax.f32 %v2061, %v2003
        %v2066 = vmax.f32 %v2062, %v2006
        %v2067 = vmax.f32 %v2063, %v2011
        %v2068 = vmax.f32 %v2064, %v2014
        %v2069 = vmax.f32 %v2065, %v2019
        %v2070 = vmax.f32 %v2066, %v2022
        %v2071 = vmax.f32 %v2067, %v2027
        %v2072 = vmax.f32 %v2068, %v2030
        %v2073 = vmax.f32 %v2069, %v2035
        %v2074 = vmax.f32 %v2070, %v2038
        %v2075 = vmax.f32 %v2071, %v2043
        %v2076 = vmax.f32 %v2072, %v2046
        %v2077 = vmax.f32 %v2073, %v2074
        %v2078 = vmax.f32 %v2075, %v2076
        %v2079 = vmax.f32 %v2077, %v2078
        %v2080 = vrot.slane %v2079, 4
        %v2081 = vmax.f32 %v2079, %v2080
        %v2082 = vrot.slane %v2081, 2
        %v2083 = vmax.f32 %v2081, %v2082
        %v2084 = vrot.slane %v2083, 1
        %v2085 = vmax.f32 %v2083, %v2084
        %v2086 = vsub.f32 %v1923, %v2085
        %v2087 = vsub.f32 %v1926, %v2085
        %v2088 = vsub.f32 %v1931, %v2085
        %v2089 = vsub.f32 %v1934, %v2085
        %v2090 = vsub.f32 %v1939, %v2085
        %v2091 = vsub.f32 %v1942, %v2085
        %v2092 = vsub.f32 %v1947, %v2085
        %v2093 = vsub.f32 %v1950, %v2085
        %v2094 = vsub.f32 %v1955, %v2085
        %v2095 = vsub.f32 %v1958, %v2085
        %v2096 = vsub.f32 %v1963, %v2085
        %v2097 = vsub.f32 %v1966, %v2085
        %v2098 = vsub.f32 %v1971, %v2085
        %v2099 = vsub.f32 %v1974, %v2085
        %v2100 = vsub.f32 %v1979, %v2085
        %v2101 = vsub.f32 %v1982, %v2085
        %v2102 = vsub.f32 %v1987, %v2085
        %v2103 = vsub.f32 %v1990, %v2085
        %v2104 = vsub.f32 %v1995, %v2085
        %v2105 = vsub.f32 %v1998, %v2085
        %v2106 = vsub.f32 %v2003, %v2085
        %v2107 = vsub.f32 %v2006, %v2085
        %v2108 = vsub.f32 %v2011, %v2085
        %v2109 = vsub.f32 %v2014, %v2085
        %v2110 = vsub.f32 %v2019, %v2085
        %v2111 = vsub.f32 %v2022, %v2085
        %v2112 = vsub.f32 %v2027, %v2085
        %v2113 = vsub.f32 %v2030, %v2085
        %v2114 = vsub.f32 %v2035, %v2085
        %v2115 = vsub.f32 %v2038, %v2085
        %v2116 = vsub.f32 %v2043, %v2085
        %v2117 = vsub.f32 %v2046, %v2085
        %v2118 = vmul.f32 %v2086, 1.442695
        %v2119 = vpow.pop %v2118
        %v2120 = vmul.f32 %v2087, 1.442695
        %v2121 = vpow.pop %v2120
        %v2122 = vmul.f32 %v2088, 1.442695
        %v2123 = vpow.pop %v2122
        %v2124 = vmul.f32 %v2089, 1.442695
        %v2125 = vpow.pop %v2124
        %v2126 = vmul.f32 %v2090, 1.442695
        %v2127 = vpow.pop %v2126
        %v2128 = vmul.f32 %v2091, 1.442695
        %v2129 = vpow.pop %v2128
        %v2130 = vmul.f32 %v2092, 1.442695
        %v2131 = vpow.pop %v2130
        %v2132 = vmul.f32 %v2093, 1.442695
        %v2133 = vpow.pop %v2132
        %v2134 = vmul.f32 %v2094, 1.442695
        %v2135 = vpow.pop %v2134
        %v2136 = vmul.f32 %v2095, 1.442695
        %v2137 = vpow.pop %v2136
        %v2138 = vmul.f32 %v2096, 1.442695
        %v2139 = vpow.pop %v2138
        %v2140 = vmul.f32 %v2097, 1.442695
        %v2141 = vpow.pop %v2140
        %v2142 = vmul.f32 %v2098, 1.442695
        %v2143 = vpow.pop %v2142
        %v2144 = vmul.f32 %v2099, 1.442695
        %v2145 = vpow.pop %v2144
        %v2146 = vmul.f32 %v2100, 1.442695
        %v2147 = vpow.pop %v2146
        %v2148 = vmul.f32 %v2101, 1.442695
        %v2149 = vpow.pop %v2148
        %v2150 = vmul.f32 %v2102, 1.442695
        %v2151 = vpow.pop %v2150
        %v2152 = vmul.f32 %v2103, 1.442695
        %v2153 = vpow.pop %v2152
        %v2154 = vmul.f32 %v2104, 1.442695
        %v2155 = vpow.pop %v2154
        %v2156 = vmul.f32 %v2105, 1.442695
        %v2157 = vpow.pop %v2156
        %v2158 = vmul.f32 %v2106, 1.442695
        %v2159 = vpow.pop %v2158
        %v2160 = vmul.f32 %v2107, 1.442695
        %v2161 = vpow.pop %v2160
        %v2162 = vmul.f32 %v2108, 1.442695
        %v2163 = vpow.pop %v2162
        %v2164 = vmul.f32 %v2109, 1.442695
        %v2165 = vpow.pop %v2164
        %v2166 = vmul.f32 %v2110, 1.442695
        %v2167 = vpow.pop %v2166
        %v2168 = vmul.f32 %v2111, 1.442695
        %v2169 = vpow.pop %v2168
        %v2170 = vmul.f32 %v2112, 1.442695
        %v2171 = vpow.pop %v2170
        %v2172 = vmul.f32 %v2113, 1.442695
        %v2173 = vpow.pop %v2172
        %v2174 = vmul.f32 %v2114, 1.442695
        %v2175 = vpow.pop %v2174
        %v2176 = vmul.f32 %v2115, 1.442695
        %v2177 = vpow.pop %v2176
        %v2178 = vmul.f32 %v2116, 1.442695
        %v2179 = vpow.pop %v2178
        %v2180 = vmul.f32 %v2117, 1.442695
        %v2181 = vpow.pop %v2180
        %v2182 = vadd.f32 %v2119, %v2121
        %v2183 = vadd.f32 %v2182, %v2123
        %v2184 = vadd.f32 %v2183, %v2125
        %v2185 = vadd.f32 %v2184, %v2127
        %v2186 = vadd.f32 %v2185, %v2129
        %v2187 = vadd.f32 %v2186, %v2131
        %v2188 = vadd.f32 %v2187, %v2133
        %v2189 = vadd.f32 %v2188, %v2135
        %v2190 = vadd.f32 %v2189, %v2137
        %v2191 = vadd.f32 %v2190, %v2139
        %v2192 = vadd.f32 %v2191, %v2141
        %v2193 = vadd.f32 %v2192, %v2143
        %v2194 = vadd.f32 %v2193, %v2145
        %v2195 = vadd.f32 %v2194, %v2147
        %v2196 = vadd.f32 %v2195, %v2149
        %v2197 = vadd.f32 %v2196, %v2151
        %v2198 = vadd.f32 %v2197, %v2153
        %v2199 = vadd.f32 %v2198, %v2155
        %v2200 = vadd.f32 %v2199, %v2157
        %v2201 = vadd.f32 %v2200, %v2159
        %v2202 = vadd.f32 %v2201, %v2161
        %v2203 = vadd.f32 %v2202, %v2163
        %v2204 = vadd.f32 %v2203, %v2165
        %v2205 = vadd.f32 %v2204, %v2167
        %v2206 = vadd.f32 %v2205, %v2169
        %v2207 = vadd.f32 %v2206, %v2171
        %v2208 = vadd.f32 %v2207, %v2173
        %v2209 = vadd.f32 %v2208, %v2175
        %v2210 = vadd.f32 %v2209, %v2177
        %v2211 = vadd.f32 %v2210, %v2179
        %v2212 = vadd.f32 %v2211, %v2181
        %v2213 = vrot.slane %v2212, 4
        %v2214 = vadd.f32 %v2212, %v2213
        %v2215 = vrot.slane %v2214, 2
        %v2216 = vadd.f32 %v2214, %v2215
        %v2217 = vrot.slane %v2216, 1
        %v2218 = vadd.f32 %v2216, %v2217
        %v2219 = vpack.c.bf16 %v2121, %v2119
        %v2220 = vpack.c.bf16 %v2125, %v2123
        %v2221 = vpack.c.bf16 %v2129, %v2127
        %v2222 = vpack.c.bf16 %v2133, %v2131
        %v2223 = vpack.c.bf16 %v2137, %v2135
        %v2224 = vpack.c.bf16 %v2141, %v2139
        %v2225 = vpack.c.bf16 %v2145, %v2143
        %v2226 = vpack.c.bf16 %v2149, %v2147
        %v2227 = vpack.c.bf16 %v2153, %v2151
        %v2228 = vpack.c.bf16 %v2157, %v2155
        %v2229 = vpack.c.bf16 %v2161, %v2159
        %v2230 = vpack.c.bf16 %v2165, %v2163
        %v2231 = vpack.c.bf16 %v2169, %v2167
        %v2232 = vpack.c.bf16 %v2173, %v2171
        %v2233 = vpack.c.bf16 %v2177, %v2175
        %v2234 = vpack.c.bf16 %v2181, %v2179
        %2235 = vmatprep.subr.bf16.mxu0 0
        %2236 = vmatpush1.bf16.msra.mxu0 %v2226
        %2237 = vmatprep.subr.bf16.mxu0 0
        %2238 = vmatpush1.bf16.msra.mxu0 %v2225
        %2239 = vmatprep.subr.bf16.mxu0 0
        %2240 = vmatpush1.bf16.msra.mxu0 %v2224
        %2241 = vmatprep.subr.bf16.mxu0 0
        %2242 = vmatpush1.bf16.msra.mxu0 %v2223
        %2243 = vmatprep.subr.bf16.mxu0 0
        %2244 = vmatpush1.bf16.msra.mxu0 %v2222
        %2245 = vmatprep.subr.bf16.mxu0 0
        %2246 = vmatpush1.bf16.msra.mxu0 %v2221
        %2247 = vmatprep.subr.bf16.mxu0 0
        %2248 = vmatpush1.bf16.msra.mxu0 %v2220
        %2249 = vmatprep.subr.bf16.mxu0 0
        %2250 = vmatpush1.bf16.msra.mxu0 %v2219
        %2251 = vmatprep.subr.bf16.mxu0 0
        %2252 = vmatpush2.bf16.msra.mxu0 %v2234
        %2253 = vmatprep.subr.bf16.mxu0 0
        %2254 = vmatpush2.bf16.msra.mxu0 %v2233
        %2255 = vmatprep.subr.bf16.mxu0 0
        %2256 = vmatpush2.bf16.msra.mxu0 %v2232
        %2257 = vmatprep.subr.bf16.mxu0 0
        %2258 = vmatpush2.bf16.msra.mxu0 %v2231
        %2259 = vmatprep.subr.bf16.mxu0 0
        %2260 = vmatpush2.bf16.msra.mxu0 %v2230
        %2261 = vmatprep.subr.bf16.mxu0 0
        %2262 = vmatpush2.bf16.msra.mxu0 %v2229
        %2263 = vmatprep.subr.bf16.mxu0 0
        %2264 = vmatpush2.bf16.msra.mxu0 %v2228
        %2265 = vmatprep.subr.bf16.mxu0 0
        %2266 = vmatpush2.bf16.msra.mxu0 %v2227
        %2267 = vmatprep.mubr.bf16.mxu0 %v1402
        %2268 = vmatmul.mubr.bf16.gmra.mxu0 %v1401
        %v2269 = vpop.f32.mrf.mxu0
        %v2270 = vadd.f32 0.0, %v2269
        %v2271 = vpop.f32.mrf.mxu0
        %v2272 = vpop.f32.mrf.mxu0
        %v2273 = vpop.f32.mrf.mxu0
        %2274 = vdwg.mxu0
        %v2275 = vrcp.pop %v2218
        %v2276 = vmul.f32 %v2270, %v2275
        %2277 = vst [vmem:[%s1881 + $0x8] sm:$0xff] %v2276
        %s2278 = sadd.s32 16, 32
        %s2279 = sshra.s32 %s2278, 3
        %s2280 = sand.u32 %s2278, 7
        %s2281 = smul.u32 %s2279, 2
        %s2282 = smul.addr %s2281, 8
        %s2283 = scalar_lea.vmem [#allocation2], %s2282
        %v2284 = vld [vmem:[%s2283] sm:$0xff]
        %v2285 = vld [vmem:[%s2283 + $0x8] sm:$0xff]
        %v2286 = vpack.c.bf16 %v2284, %v2284
        %v2287 = vpack.c.bf16 %v2285, %v2285
        %s2288 = sadd.s32 16, 64
        %s2289 = sshra.s32 %s2288, 3
        %s2290 = sand.u32 %s2288, 7
        %s2291 = smul.u32 %s2289, 2
        %s2292 = smul.addr %s2291, 8
        %s2293 = scalar_lea.vmem [#allocation2], %s2292
        %v2294 = vld [vmem:[%s2293] sm:$0xff]
        %v2295 = vld [vmem:[%s2293 + $0x8] sm:$0xff]
        %v2296 = vpack.c.bf16 %v2294, %v2294
        %v2297 = vpack.c.bf16 %v2295, %v2295
        %s2298 = smul.u32 2, 2
        %s2299 = smul.addr %s2298, 8
        %s2300 = scalar_lea.vmem [#allocation2], %s2299
        %v2301 = vld [vmem:[%s2300] sm:$0xff]
        %v2302 = vpack.c.bf16 %v2301, %v2301
        %2303 = vxpose.xlu0.c.b16.start [1/8] %v2286, 128
        %2304 = vxpose.xlu0.c.b16.cont [2/8] 0, 128
        %2305 = vxpose.xlu0.c.b16.cont [3/8] 0, 128
        %2306 = vxpose.xlu0.c.b16.cont [4/8] 0, 128
        %2307 = vxpose.xlu0.c.b16.cont [5/8] 0, 128
        %2308 = vxpose.xlu0.c.b16.cont [6/8] 0, 128
        %2309 = vxpose.xlu0.c.b16.cont [7/8] 0, 128
        %2310 = vxpose.xlu0.c.b16.end [8/8] 0, 128
        %v2311 = vpop.trf.xlu0
        %v2312 = vpop.trf.xlu0
        %v2313 = vpop.trf.xlu0
        %v2314 = vpop.trf.xlu0
        %v2315 = vpop.trf.xlu0
        %v2316 = vpop.trf.xlu0
        %v2317 = vpop.trf.xlu0
        %v2318 = vpop.trf.xlu0
        %2319 = vxpose.xlu0.c.b16.start [1/8] %v2287, 128
        %2320 = vxpose.xlu0.c.b16.cont [2/8] 0, 128
        %2321 = vxpose.xlu0.c.b16.cont [3/8] 0, 128
        %2322 = vxpose.xlu0.c.b16.cont [4/8] 0, 128
        %2323 = vxpose.xlu0.c.b16.cont [5/8] 0, 128
        %2324 = vxpose.xlu0.c.b16.cont [6/8] 0, 128
        %2325 = vxpose.xlu0.c.b16.cont [7/8] 0, 128
        %2326 = vxpose.xlu0.c.b16.end [8/8] 0, 128
        %v2327 = vpop.trf.xlu0
        %v2328 = vpop.trf.xlu0
        %v2329 = vpop.trf.xlu0
        %v2330 = vpop.trf.xlu0
        %v2331 = vpop.trf.xlu0
        %v2332 = vpop.trf.xlu0
        %v2333 = vpop.trf.xlu0
        %v2334 = vpop.trf.xlu0
        %v2336 = vsel %vm543, %v2311, 0
        %v2339 = vsel %vm543, %v2312, 0
        %v2342 = vsel %vm543, %v2313, 0
        %v2345 = vsel %vm543, %v2314, 0
        %v2348 = vsel %vm543, %v2315, 0
        %v2351 = vsel %vm543, %v2316, 0
        %v2354 = vsel %vm543, %v2317, 0
        %v2357 = vsel %vm543, %v2318, 0
        %v2360 = vsel %vm543, %v2327, 0
        %v2363 = vsel %vm543, %v2328, 0
        %v2366 = vsel %vm543, %v2329, 0
        %v2369 = vsel %vm543, %v2330, 0
        %v2372 = vsel %vm543, %v2331, 0
        %v2375 = vsel %vm543, %v2332, 0
        %v2378 = vsel %vm543, %v2333, 0
        %v2381 = vsel %vm543, %v2334, 0
        %v2384 = vsel %vm592, %v2302, 0
        %2386 = vmatprep.subr.bf16.mxu0 0
        %2387 = vmatpush1.bf16.msra.mxu0 0
        %2388 = vmatprep.subr.bf16.mxu0 0
        %2389 = vmatpush1.bf16.msra.mxu0 0
        %2390 = vmatprep.subr.bf16.mxu0 0
        %2391 = vmatpush1.bf16.msra.mxu0 0
        %2392 = vmatprep.subr.bf16.mxu0 0
        %2393 = vmatpush1.bf16.msra.mxu0 0
        %2394 = vmatprep.subr.bf16.mxu0 0
        %2395 = vmatpush1.bf16.msra.mxu0 0
        %2396 = vmatprep.subr.bf16.mxu0 0
        %2397 = vmatpush1.bf16.msra.mxu0 0
        %2398 = vmatprep.subr.bf16.mxu0 0
        %2399 = vmatpush1.bf16.msra.mxu0 0
        %2400 = vmatprep.subr.bf16.mxu0 0
        %2401 = vmatpush1.bf16.msra.mxu0 %v2384
        %2402 = vmatprep.subr.bf16.mxu0 0
        %2403 = vmatpush2.bf16.msra.mxu0 0
        %2404 = vmatprep.subr.bf16.mxu0 0
        %2405 = vmatpush2.bf16.msra.mxu0 0
        %2406 = vmatprep.subr.bf16.mxu0 0
        %2407 = vmatpush2.bf16.msra.mxu0 0
        %2408 = vmatprep.subr.bf16.mxu0 0
        %2409 = vmatpush2.bf16.msra.mxu0 0
        %2410 = vmatprep.subr.bf16.mxu0 0
        %2411 = vmatpush2.bf16.msra.mxu0 0
        %2412 = vmatprep.subr.bf16.mxu0 0
        %2413 = vmatpush2.bf16.msra.mxu0 0
        %2414 = vmatprep.subr.bf16.mxu0 0
        %2415 = vmatpush2.bf16.msra.mxu0 0
        %2416 = vmatprep.subr.bf16.mxu0 0
        %2417 = vmatpush2.bf16.msra.mxu0 0
        %2418 = vmatprep.mubr.bf16.mxu0 0
        %2419 = vmatmul.mubr.bf16.gmra.mxu0 %v2336
        %v2420 = vpop.f32.mrf.mxu0
        %v2421 = vadd.f32 0.0, %v2420
        %v2422 = vpop.f32.mrf.mxu0
        %v2423 = vpop.f32.mrf.mxu0
        %v2424 = vadd.f32 0.0, %v2423
        %v2425 = vpop.f32.mrf.mxu0
        %2426 = vmatprep.mubr.bf16.mxu0 0
        %2427 = vmatmul.mubr.bf16.gmra.mxu0 %v2339
        %v2428 = vpop.f32.mrf.mxu0
        %v2429 = vadd.f32 0.0, %v2428
        %v2430 = vpop.f32.mrf.mxu0
        %v2431 = vpop.f32.mrf.mxu0
        %v2432 = vadd.f32 0.0, %v2431
        %v2433 = vpop.f32.mrf.mxu0
        %2434 = vmatprep.mubr.bf16.mxu0 0
        %2435 = vmatmul.mubr.bf16.gmra.mxu0 %v2342
        %v2436 = vpop.f32.mrf.mxu0
        %v2437 = vadd.f32 0.0, %v2436
        %v2438 = vpop.f32.mrf.mxu0
        %v2439 = vpop.f32.mrf.mxu0
        %v2440 = vadd.f32 0.0, %v2439
        %v2441 = vpop.f32.mrf.mxu0
        %2442 = vmatprep.mubr.bf16.mxu0 0
        %2443 = vmatmul.mubr.bf16.gmra.mxu0 %v2345
        %v2444 = vpop.f32.mrf.mxu0
        %v2445 = vadd.f32 0.0, %v2444
        %v2446 = vpop.f32.mrf.mxu0
        %v2447 = vpop.f32.mrf.mxu0
        %v2448 = vadd.f32 0.0, %v2447
        %v2449 = vpop.f32.mrf.mxu0
        %2450 = vmatprep.mubr.bf16.mxu0 0
        %2451 = vmatmul.mubr.bf16.gmra.mxu0 %v2348
        %v2452 = vpop.f32.mrf.mxu0
        %v2453 = vadd.f32 0.0, %v2452
        %v2454 = vpop.f32.mrf.mxu0
        %v2455 = vpop.f32.mrf.mxu0
        %v2456 = vadd.f32 0.0, %v2455
        %v2457 = vpop.f32.mrf.mxu0
        %2458 = vmatprep.mubr.bf16.mxu0 0
        %2459 = vmatmul.mubr.bf16.gmra.mxu0 %v2351
        %v2460 = vpop.f32.mrf.mxu0
        %v2461 = vadd.f32 0.0, %v2460
        %v2462 = vpop.f32.mrf.mxu0
        %v2463 = vpop.f32.mrf.mxu0
        %v2464 = vadd.f32 0.0, %v2463
        %v2465 = vpop.f32.mrf.mxu0
        %2466 = vmatprep.mubr.bf16.mxu0 0
        %2467 = vmatmul.mubr.bf16.gmra.mxu0 %v2354
        %v2468 = vpop.f32.mrf.mxu0
        %v2469 = vadd.f32 0.0, %v2468
        %v2470 = vpop.f32.mrf.mxu0
        %v2471 = vpop.f32.mrf.mxu0
        %v2472 = vadd.f32 0.0, %v2471
        %v2473 = vpop.f32.mrf.mxu0
        %2474 = vmatprep.mubr.bf16.mxu0 0
        %2475 = vmatmul.mubr.bf16.gmra.mxu0 %v2357
        %v2476 = vpop.f32.mrf.mxu0
        %v2477 = vadd.f32 0.0, %v2476
        %v2478 = vpop.f32.mrf.mxu0
        %v2479 = vpop.f32.mrf.mxu0
        %v2480 = vadd.f32 0.0, %v2479
        %v2481 = vpop.f32.mrf.mxu0
        %2482 = vmatprep.mubr.bf16.mxu0 0
        %2483 = vmatmul.mubr.bf16.gmra.mxu0 %v2360
        %v2484 = vpop.f32.mrf.mxu0
        %v2485 = vadd.f32 0.0, %v2484
        %v2486 = vpop.f32.mrf.mxu0
        %v2487 = vpop.f32.mrf.mxu0
        %v2488 = vadd.f32 0.0, %v2487
        %v2489 = vpop.f32.mrf.mxu0
        %2490 = vmatprep.mubr.bf16.mxu0 0
        %2491 = vmatmul.mubr.bf16.gmra.mxu0 %v2363
        %v2492 = vpop.f32.mrf.mxu0
        %v2493 = vadd.f32 0.0, %v2492
        %v2494 = vpop.f32.mrf.mxu0
        %v2495 = vpop.f32.mrf.mxu0
        %v2496 = vadd.f32 0.0, %v2495
        %v2497 = vpop.f32.mrf.mxu0
        %2498 = vmatprep.mubr.bf16.mxu0 0
        %2499 = vmatmul.mubr.bf16.gmra.mxu0 %v2366
        %v2500 = vpop.f32.mrf.mxu0
        %v2501 = vadd.f32 0.0, %v2500
        %v2502 = vpop.f32.mrf.mxu0
        %v2503 = vpop.f32.mrf.mxu0
        %v2504 = vadd.f32 0.0, %v2503
        %v2505 = vpop.f32.mrf.mxu0
        %2506 = vmatprep.mubr.bf16.mxu0 0
        %2507 = vmatmul.mubr.bf16.gmra.mxu0 %v2369
        %v2508 = vpop.f32.mrf.mxu0
        %v2509 = vadd.f32 0.0, %v2508
        %v2510 = vpop.f32.mrf.mxu0
        %v2511 = vpop.f32.mrf.mxu0
        %v2512 = vadd.f32 0.0, %v2511
        %v2513 = vpop.f32.mrf.mxu0
        %2514 = vmatprep.mubr.bf16.mxu0 0
        %2515 = vmatmul.mubr.bf16.gmra.mxu0 %v2372
        %v2516 = vpop.f32.mrf.mxu0
        %v2517 = vadd.f32 0.0, %v2516
        %v2518 = vpop.f32.mrf.mxu0
        %v2519 = vpop.f32.mrf.mxu0
        %v2520 = vadd.f32 0.0, %v2519
        %v2521 = vpop.f32.mrf.mxu0
        %2522 = vmatprep.mubr.bf16.mxu0 0
        %2523 = vmatmul.mubr.bf16.gmra.mxu0 %v2375
        %v2524 = vpop.f32.mrf.mxu0
        %v2525 = vadd.f32 0.0, %v2524
        %v2526 = vpop.f32.mrf.mxu0
        %v2527 = vpop.f32.mrf.mxu0
        %v2528 = vadd.f32 0.0, %v2527
        %v2529 = vpop.f32.mrf.mxu0
        %2530 = vmatprep.mubr.bf16.mxu0 0
        %2531 = vmatmul.mubr.bf16.gmra.mxu0 %v2378
        %v2532 = vpop.f32.mrf.mxu0
        %v2533 = vadd.f32 0.0, %v2532
        %v2534 = vpop.f32.mrf.mxu0
        %v2535 = vpop.f32.mrf.mxu0
        %v2536 = vadd.f32 0.0, %v2535
        %v2537 = vpop.f32.mrf.mxu0
        %2538 = vmatprep.mubr.bf16.mxu0 0
        %2539 = vmatmul.mubr.bf16.gmra.mxu0 %v2381
        %v2540 = vpop.f32.mrf.mxu0
        %v2541 = vadd.f32 0.0, %v2540
        %v2542 = vpop.f32.mrf.mxu0
        %v2543 = vpop.f32.mrf.mxu0
        %v2544 = vadd.f32 0.0, %v2543
        %v2545 = vpop.f32.mrf.mxu0
        %2546 = vdwg.mxu0
        %v2547 = vmax.f32 %v2421, %v2437
        %v2548 = vmax.f32 %v2424, %v2440
        %v2549 = vmax.f32 %v2429, %v2445
        %v2550 = vmax.f32 %v2432, %v2448
        %v2551 = vmax.f32 %v2547, %v2453
        %v2552 = vmax.f32 %v2548, %v2456
        %v2553 = vmax.f32 %v2549, %v2461
        %v2554 = vmax.f32 %v2550, %v2464
        %v2555 = vmax.f32 %v2551, %v2469
        %v2556 = vmax.f32 %v2552, %v2472
        %v2557 = vmax.f32 %v2553, %v2477
        %v2558 = vmax.f32 %v2554, %v2480
        %v2559 = vmax.f32 %v2555, %v2485
        %v2560 = vmax.f32 %v2556, %v2488
        %v2561 = vmax.f32 %v2557, %v2493
        %v2562 = vmax.f32 %v2558, %v2496
        %v2563 = vmax.f32 %v2559, %v2501
        %v2564 = vmax.f32 %v2560, %v2504
        %v2565 = vmax.f32 %v2561, %v2509
        %v2566 = vmax.f32 %v2562, %v2512
        %v2567 = vmax.f32 %v2563, %v2517
        %v2568 = vmax.f32 %v2564, %v2520
        %v2569 = vmax.f32 %v2565, %v2525
        %v2570 = vmax.f32 %v2566, %v2528
        %v2571 = vmax.f32 %v2567, %v2533
        %v2572 = vmax.f32 %v2568, %v2536
        %v2573 = vmax.f32 %v2569, %v2541
        %v2574 = vmax.f32 %v2570, %v2544
        %v2575 = vmax.f32 %v2571, %v2572
        %v2576 = vmax.f32 %v2573, %v2574
        %v2577 = vmax.f32 %v2575, %v2576
        %v2578 = vrot.slane %v2577, 4
        %v2579 = vmax.f32 %v2577, %v2578
        %v2580 = vrot.slane %v2579, 2
        %v2581 = vmax.f32 %v2579, %v2580
        %v2582 = vrot.slane %v2581, 1
        %v2583 = vmax.f32 %v2581, %v2582
        %v2584 = vsub.f32 %v2421, %v2583
        %v2585 = vsub.f32 %v2424, %v2583
        %v2586 = vsub.f32 %v2429, %v2583
        %v2587 = vsub.f32 %v2432, %v2583
        %v2588 = vsub.f32 %v2437, %v2583
        %v2589 = vsub.f32 %v2440, %v2583
        %v2590 = vsub.f32 %v2445, %v2583
        %v2591 = vsub.f32 %v2448, %v2583
        %v2592 = vsub.f32 %v2453, %v2583
        %v2593 = vsub.f32 %v2456, %v2583
        %v2594 = vsub.f32 %v2461, %v2583
        %v2595 = vsub.f32 %v2464, %v2583
        %v2596 = vsub.f32 %v2469, %v2583
        %v2597 = vsub.f32 %v2472, %v2583
        %v2598 = vsub.f32 %v2477, %v2583
        %v2599 = vsub.f32 %v2480, %v2583
        %v2600 = vsub.f32 %v2485, %v2583
        %v2601 = vsub.f32 %v2488, %v2583
        %v2602 = vsub.f32 %v2493, %v2583
        %v2603 = vsub.f32 %v2496, %v2583
        %v2604 = vsub.f32 %v2501, %v2583
        %v2605 = vsub.f32 %v2504, %v2583
        %v2606 = vsub.f32 %v2509, %v2583
        %v2607 = vsub.f32 %v2512, %v2583
        %v2608 = vsub.f32 %v2517, %v2583
        %v2609 = vsub.f32 %v2520, %v2583
        %v2610 = vsub.f32 %v2525, %v2583
        %v2611 = vsub.f32 %v2528, %v2583
        %v2612 = vsub.f32 %v2533, %v2583
        %v2613 = vsub.f32 %v2536, %v2583
        %v2614 = vsub.f32 %v2541, %v2583
        %v2615 = vsub.f32 %v2544, %v2583
        %v2616 = vmul.f32 %v2584, 1.442695
        %v2617 = vpow.pop %v2616
        %v2618 = vmul.f32 %v2585, 1.442695
        %v2619 = vpow.pop %v2618
        %v2620 = vmul.f32 %v2586, 1.442695
        %v2621 = vpow.pop %v2620
        %v2622 = vmul.f32 %v2587, 1.442695
        %v2623 = vpow.pop %v2622
        %v2624 = vmul.f32 %v2588, 1.442695
        %v2625 = vpow.pop %v2624
        %v2626 = vmul.f32 %v2589, 1.442695
        %v2627 = vpow.pop %v2626
        %v2628 = vmul.f32 %v2590, 1.442695
        %v2629 = vpow.pop %v2628
        %v2630 = vmul.f32 %v2591, 1.442695
        %v2631 = vpow.pop %v2630
        %v2632 = vmul.f32 %v2592, 1.442695
        %v2633 = vpow.pop %v2632
        %v2634 = vmul.f32 %v2593, 1.442695
        %v2635 = vpow.pop %v2634
        %v2636 = vmul.f32 %v2594, 1.442695
        %v2637 = vpow.pop %v2636
        %v2638 = vmul.f32 %v2595, 1.442695
        %v2639 = vpow.pop %v2638
        %v2640 = vmul.f32 %v2596, 1.442695
        %v2641 = vpow.pop %v2640
        %v2642 = vmul.f32 %v2597, 1.442695
        %v2643 = vpow.pop %v2642
        %v2644 = vmul.f32 %v2598, 1.442695
        %v2645 = vpow.pop %v2644
        %v2646 = vmul.f32 %v2599, 1.442695
        %v2647 = vpow.pop %v2646
        %v2648 = vmul.f32 %v2600, 1.442695
        %v2649 = vpow.pop %v2648
        %v2650 = vmul.f32 %v2601, 1.442695
        %v2651 = vpow.pop %v2650
        %v2652 = vmul.f32 %v2602, 1.442695
        %v2653 = vpow.pop %v2652
        %v2654 = vmul.f32 %v2603, 1.442695
        %v2655 = vpow.pop %v2654
        %v2656 = vmul.f32 %v2604, 1.442695
        %v2657 = vpow.pop %v2656
        %v2658 = vmul.f32 %v2605, 1.442695
        %v2659 = vpow.pop %v2658
        %v2660 = vmul.f32 %v2606, 1.442695
        %v2661 = vpow.pop %v2660
        %v2662 = vmul.f32 %v2607, 1.442695
        %v2663 = vpow.pop %v2662
        %v2664 = vmul.f32 %v2608, 1.442695
        %v2665 = vpow.pop %v2664
        %v2666 = vmul.f32 %v2609, 1.442695
        %v2667 = vpow.pop %v2666
        %v2668 = vmul.f32 %v2610, 1.442695
        %v2669 = vpow.pop %v2668
        %v2670 = vmul.f32 %v2611, 1.442695
        %v2671 = vpow.pop %v2670
        %v2672 = vmul.f32 %v2612, 1.442695
        %v2673 = vpow.pop %v2672
        %v2674 = vmul.f32 %v2613, 1.442695
        %v2675 = vpow.pop %v2674
        %v2676 = vmul.f32 %v2614, 1.442695
        %v2677 = vpow.pop %v2676
        %v2678 = vmul.f32 %v2615, 1.442695
        %v2679 = vpow.pop %v2678
        %v2680 = vadd.f32 %v2617, %v2619
        %v2681 = vadd.f32 %v2680, %v2621
        %v2682 = vadd.f32 %v2681, %v2623
        %v2683 = vadd.f32 %v2682, %v2625
        %v2684 = vadd.f32 %v2683, %v2627
        %v2685 = vadd.f32 %v2684, %v2629
        %v2686 = vadd.f32 %v2685, %v2631
        %v2687 = vadd.f32 %v2686, %v2633
        %v2688 = vadd.f32 %v2687, %v2635
        %v2689 = vadd.f32 %v2688, %v2637
        %v2690 = vadd.f32 %v2689, %v2639
        %v2691 = vadd.f32 %v2690, %v2641
        %v2692 = vadd.f32 %v2691, %v2643
        %v2693 = vadd.f32 %v2692, %v2645
        %v2694 = vadd.f32 %v2693, %v2647
        %v2695 = vadd.f32 %v2694, %v2649
        %v2696 = vadd.f32 %v2695, %v2651
        %v2697 = vadd.f32 %v2696, %v2653
        %v2698 = vadd.f32 %v2697, %v2655
        %v2699 = vadd.f32 %v2698, %v2657
        %v2700 = vadd.f32 %v2699, %v2659
        %v2701 = vadd.f32 %v2700, %v2661
        %v2702 = vadd.f32 %v2701, %v2663
        %v2703 = vadd.f32 %v2702, %v2665
        %v2704 = vadd.f32 %v2703, %v2667
        %v2705 = vadd.f32 %v2704, %v2669
        %v2706 = vadd.f32 %v2705, %v2671
        %v2707 = vadd.f32 %v2706, %v2673
        %v2708 = vadd.f32 %v2707, %v2675
        %v2709 = vadd.f32 %v2708, %v2677
        %v2710 = vadd.f32 %v2709, %v2679
        %v2711 = vrot.slane %v2710, 4
        %v2712 = vadd.f32 %v2710, %v2711
        %v2713 = vrot.slane %v2712, 2
        %v2714 = vadd.f32 %v2712, %v2713
        %v2715 = vrot.slane %v2714, 1
        %v2716 = vadd.f32 %v2714, %v2715
        %v2717 = vpack.c.bf16 %v2619, %v2617
        %v2718 = vpack.c.bf16 %v2623, %v2621
        %v2719 = vpack.c.bf16 %v2627, %v2625
        %v2720 = vpack.c.bf16 %v2631, %v2629
        %v2721 = vpack.c.bf16 %v2635, %v2633
        %v2722 = vpack.c.bf16 %v2639, %v2637
        %v2723 = vpack.c.bf16 %v2643, %v2641
        %v2724 = vpack.c.bf16 %v2647, %v2645
        %v2725 = vpack.c.bf16 %v2651, %v2649
        %v2726 = vpack.c.bf16 %v2655, %v2653
        %v2727 = vpack.c.bf16 %v2659, %v2657
        %v2728 = vpack.c.bf16 %v2663, %v2661
        %v2729 = vpack.c.bf16 %v2667, %v2665
        %v2730 = vpack.c.bf16 %v2671, %v2669
        %v2731 = vpack.c.bf16 %v2675, %v2673
        %v2732 = vpack.c.bf16 %v2679, %v2677
        %2733 = vmatprep.subr.bf16.mxu0 0
        %2734 = vmatpush1.bf16.msra.mxu0 %v2724
        %2735 = vmatprep.subr.bf16.mxu0 0
        %2736 = vmatpush1.bf16.msra.mxu0 %v2723
        %2737 = vmatprep.subr.bf16.mxu0 0
        %2738 = vmatpush1.bf16.msra.mxu0 %v2722
        %2739 = vmatprep.subr.bf16.mxu0 0
        %2740 = vmatpush1.bf16.msra.mxu0 %v2721
        %2741 = vmatprep.subr.bf16.mxu0 0
        %2742 = vmatpush1.bf16.msra.mxu0 %v2720
        %2743 = vmatprep.subr.bf16.mxu0 0
        %2744 = vmatpush1.bf16.msra.mxu0 %v2719
        %2745 = vmatprep.subr.bf16.mxu0 0
        %2746 = vmatpush1.bf16.msra.mxu0 %v2718
        %2747 = vmatprep.subr.bf16.mxu0 0
        %2748 = vmatpush1.bf16.msra.mxu0 %v2717
        %2749 = vmatprep.subr.bf16.mxu0 0
        %2750 = vmatpush2.bf16.msra.mxu0 %v2732
        %2751 = vmatprep.subr.bf16.mxu0 0
        %2752 = vmatpush2.bf16.msra.mxu0 %v2731
        %2753 = vmatprep.subr.bf16.mxu0 0
        %2754 = vmatpush2.bf16.msra.mxu0 %v2730
        %2755 = vmatprep.subr.bf16.mxu0 0
        %2756 = vmatpush2.bf16.msra.mxu0 %v2729
        %2757 = vmatprep.subr.bf16.mxu0 0
        %2758 = vmatpush2.bf16.msra.mxu0 %v2728
        %2759 = vmatprep.subr.bf16.mxu0 0
        %2760 = vmatpush2.bf16.msra.mxu0 %v2727
        %2761 = vmatprep.subr.bf16.mxu0 0
        %2762 = vmatpush2.bf16.msra.mxu0 %v2726
        %2763 = vmatprep.subr.bf16.mxu0 0
        %2764 = vmatpush2.bf16.msra.mxu0 %v2725
        %2765 = vmatprep.mubr.bf16.mxu0 %v2297
        %2766 = vmatmul.mubr.bf16.gmra.mxu0 %v2296
        %v2767 = vpop.f32.mrf.mxu0
        %v2768 = vadd.f32 0.0, %v2767
        %v2769 = vpop.f32.mrf.mxu0
        %v2770 = vpop.f32.mrf.mxu0
        %v2771 = vpop.f32.mrf.mxu0
        %2772 = vdwg.mxu0
        %v2773 = vrcp.pop %v2716
        %v2774 = vmul.f32 %v2768, %v2773
        %s2775 = smul.addr %s2298, 8
        %s2776 = scalar_lea.vmem [#allocation3], %s2775
        %2777 = vst [vmem:[%s2776] sm:$0xff] %v2774
        %v2778 = vld [vmem:[%s2300 + $0x8] sm:$0xff]
        %v2779 = vpack.c.bf16 %v2778, %v2778
        %v2781 = vsel %vm592, %v2779, 0
        %2783 = vmatprep.subr.bf16.mxu0 0
        %2784 = vmatpush1.bf16.msra.mxu0 0
        %2785 = vmatprep.subr.bf16.mxu0 0
        %2786 = vmatpush1.bf16.msra.mxu0 0
        %2787 = vmatprep.subr.bf16.mxu0 0
        %2788 = vmatpush1.bf16.msra.mxu0 0
        %2789 = vmatprep.subr.bf16.mxu0 0
        %2790 = vmatpush1.bf16.msra.mxu0 0
        %2791 = vmatprep.subr.bf16.mxu0 0
        %2792 = vmatpush1.bf16.msra.mxu0 0
        %2793 = vmatprep.subr.bf16.mxu0 0
        %2794 = vmatpush1.bf16.msra.mxu0 0
        %2795 = vmatprep.subr.bf16.mxu0 0
        %2796 = vmatpush1.bf16.msra.mxu0 0
        %2797 = vmatprep.subr.bf16.mxu0 0
        %2798 = vmatpush1.bf16.msra.mxu0 %v2781
        %2799 = vmatprep.subr.bf16.mxu0 0
        %2800 = vmatpush2.bf16.msra.mxu0 0
        %2801 = vmatprep.subr.bf16.mxu0 0
        %2802 = vmatpush2.bf16.msra.mxu0 0
        %2803 = vmatprep.subr.bf16.mxu0 0
        %2804 = vmatpush2.bf16.msra.mxu0 0
        %2805 = vmatprep.subr.bf16.mxu0 0
        %2806 = vmatpush2.bf16.msra.mxu0 0
        %2807 = vmatprep.subr.bf16.mxu0 0
        %2808 = vmatpush2.bf16.msra.mxu0 0
        %2809 = vmatprep.subr.bf16.mxu0 0
        %2810 = vmatpush2.bf16.msra.mxu0 0
        %2811 = vmatprep.subr.bf16.mxu0 0
        %2812 = vmatpush2.bf16.msra.mxu0 0
        %2813 = vmatprep.subr.bf16.mxu0 0
        %2814 = vmatpush2.bf16.msra.mxu0 0
        %2815 = vmatprep.mubr.bf16.mxu0 0
        %2816 = vmatmul.mubr.bf16.gmra.mxu0 %v2336
        %v2817 = vpop.f32.mrf.mxu0
        %v2818 = vadd.f32 0.0, %v2817
        %v2819 = vpop.f32.mrf.mxu0
        %v2820 = vpop.f32.mrf.mxu0
        %v2821 = vadd.f32 0.0, %v2820
        %v2822 = vpop.f32.mrf.mxu0
        %2823 = vmatprep.mubr.bf16.mxu0 0
        %2824 = vmatmul.mubr.bf16.gmra.mxu0 %v2339
        %v2825 = vpop.f32.mrf.mxu0
        %v2826 = vadd.f32 0.0, %v2825
        %v2827 = vpop.f32.mrf.mxu0
        %v2828 = vpop.f32.mrf.mxu0
        %v2829 = vadd.f32 0.0, %v2828
        %v2830 = vpop.f32.mrf.mxu0
        %2831 = vmatprep.mubr.bf16.mxu0 0
        %2832 = vmatmul.mubr.bf16.gmra.mxu0 %v2342
        %v2833 = vpop.f32.mrf.mxu0
        %v2834 = vadd.f32 0.0, %v2833
        %v2835 = vpop.f32.mrf.mxu0
        %v2836 = vpop.f32.mrf.mxu0
        %v2837 = vadd.f32 0.0, %v2836
        %v2838 = vpop.f32.mrf.mxu0
        %2839 = vmatprep.mubr.bf16.mxu0 0
        %2840 = vmatmul.mubr.bf16.gmra.mxu0 %v2345
        %v2841 = vpop.f32.mrf.mxu0
        %v2842 = vadd.f32 0.0, %v2841
        %v2843 = vpop.f32.mrf.mxu0
        %v2844 = vpop.f32.mrf.mxu0
        %v2845 = vadd.f32 0.0, %v2844
        %v2846 = vpop.f32.mrf.mxu0
        %2847 = vmatprep.mubr.bf16.mxu0 0
        %2848 = vmatmul.mubr.bf16.gmra.mxu0 %v2348
        %v2849 = vpop.f32.mrf.mxu0
        %v2850 = vadd.f32 0.0, %v2849
        %v2851 = vpop.f32.mrf.mxu0
        %v2852 = vpop.f32.mrf.mxu0
        %v2853 = vadd.f32 0.0, %v2852
        %v2854 = vpop.f32.mrf.mxu0
        %2855 = vmatprep.mubr.bf16.mxu0 0
        %2856 = vmatmul.mubr.bf16.gmra.mxu0 %v2351
        %v2857 = vpop.f32.mrf.mxu0
        %v2858 = vadd.f32 0.0, %v2857
        %v2859 = vpop.f32.mrf.mxu0
        %v2860 = vpop.f32.mrf.mxu0
        %v2861 = vadd.f32 0.0, %v2860
        %v2862 = vpop.f32.mrf.mxu0
        %2863 = vmatprep.mubr.bf16.mxu0 0
        %2864 = vmatmul.mubr.bf16.gmra.mxu0 %v2354
        %v2865 = vpop.f32.mrf.mxu0
        %v2866 = vadd.f32 0.0, %v2865
        %v2867 = vpop.f32.mrf.mxu0
        %v2868 = vpop.f32.mrf.mxu0
        %v2869 = vadd.f32 0.0, %v2868
        %v2870 = vpop.f32.mrf.mxu0
        %2871 = vmatprep.mubr.bf16.mxu0 0
        %2872 = vmatmul.mubr.bf16.gmra.mxu0 %v2357
        %v2873 = vpop.f32.mrf.mxu0
        %v2874 = vadd.f32 0.0, %v2873
        %v2875 = vpop.f32.mrf.mxu0
        %v2876 = vpop.f32.mrf.mxu0
        %v2877 = vadd.f32 0.0, %v2876
        %v2878 = vpop.f32.mrf.mxu0
        %2879 = vmatprep.mubr.bf16.mxu0 0
        %2880 = vmatmul.mubr.bf16.gmra.mxu0 %v2360
        %v2881 = vpop.f32.mrf.mxu0
        %v2882 = vadd.f32 0.0, %v2881
        %v2883 = vpop.f32.mrf.mxu0
        %v2884 = vpop.f32.mrf.mxu0
        %v2885 = vadd.f32 0.0, %v2884
        %v2886 = vpop.f32.mrf.mxu0
        %2887 = vmatprep.mubr.bf16.mxu0 0
        %2888 = vmatmul.mubr.bf16.gmra.mxu0 %v2363
        %v2889 = vpop.f32.mrf.mxu0
        %v2890 = vadd.f32 0.0, %v2889
        %v2891 = vpop.f32.mrf.mxu0
        %v2892 = vpop.f32.mrf.mxu0
        %v2893 = vadd.f32 0.0, %v2892
        %v2894 = vpop.f32.mrf.mxu0
        %2895 = vmatprep.mubr.bf16.mxu0 0
        %2896 = vmatmul.mubr.bf16.gmra.mxu0 %v2366
        %v2897 = vpop.f32.mrf.mxu0
        %v2898 = vadd.f32 0.0, %v2897
        %v2899 = vpop.f32.mrf.mxu0
        %v2900 = vpop.f32.mrf.mxu0
        %v2901 = vadd.f32 0.0, %v2900
        %v2902 = vpop.f32.mrf.mxu0
        %2903 = vmatprep.mubr.bf16.mxu0 0
        %2904 = vmatmul.mubr.bf16.gmra.mxu0 %v2369
        %v2905 = vpop.f32.mrf.mxu0
        %v2906 = vadd.f32 0.0, %v2905
        %v2907 = vpop.f32.mrf.mxu0
        %v2908 = vpop.f32.mrf.mxu0
        %v2909 = vadd.f32 0.0, %v2908
        %v2910 = vpop.f32.mrf.mxu0
        %2911 = vmatprep.mubr.bf16.mxu0 0
        %2912 = vmatmul.mubr.bf16.gmra.mxu0 %v2372
        %v2913 = vpop.f32.mrf.mxu0
        %v2914 = vadd.f32 0.0, %v2913
        %v2915 = vpop.f32.mrf.mxu0
        %v2916 = vpop.f32.mrf.mxu0
        %v2917 = vadd.f32 0.0, %v2916
        %v2918 = vpop.f32.mrf.mxu0
        %2919 = vmatprep.mubr.bf16.mxu0 0
        %2920 = vmatmul.mubr.bf16.gmra.mxu0 %v2375
        %v2921 = vpop.f32.mrf.mxu0
        %v2922 = vadd.f32 0.0, %v2921
        %v2923 = vpop.f32.mrf.mxu0
        %v2924 = vpop.f32.mrf.mxu0
        %v2925 = vadd.f32 0.0, %v2924
        %v2926 = vpop.f32.mrf.mxu0
        %2927 = vmatprep.mubr.bf16.mxu0 0
        %2928 = vmatmul.mubr.bf16.gmra.mxu0 %v2378
        %v2929 = vpop.f32.mrf.mxu0
        %v2930 = vadd.f32 0.0, %v2929
        %v2931 = vpop.f32.mrf.mxu0
        %v2932 = vpop.f32.mrf.mxu0
        %v2933 = vadd.f32 0.0, %v2932
        %v2934 = vpop.f32.mrf.mxu0
        %2935 = vmatprep.mubr.bf16.mxu0 0
        %2936 = vmatmul.mubr.bf16.gmra.mxu0 %v2381
        %v2937 = vpop.f32.mrf.mxu0
        %v2938 = vadd.f32 0.0, %v2937
        %v2939 = vpop.f32.mrf.mxu0
        %v2940 = vpop.f32.mrf.mxu0
        %v2941 = vadd.f32 0.0, %v2940
        %v2942 = vpop.f32.mrf.mxu0
        %2943 = vdwg.mxu0
        %v2944 = vmax.f32 %v2818, %v2834
        %v2945 = vmax.f32 %v2821, %v2837
        %v2946 = vmax.f32 %v2826, %v2842
        %v2947 = vmax.f32 %v2829, %v2845
        %v2948 = vmax.f32 %v2944, %v2850
        %v2949 = vmax.f32 %v2945, %v2853
        %v2950 = vmax.f32 %v2946, %v2858
        %v2951 = vmax.f32 %v2947, %v2861
        %v2952 = vmax.f32 %v2948, %v2866
        %v2953 = vmax.f32 %v2949, %v2869
        %v2954 = vmax.f32 %v2950, %v2874
        %v2955 = vmax.f32 %v2951, %v2877
        %v2956 = vmax.f32 %v2952, %v2882
        %v2957 = vmax.f32 %v2953, %v2885
        %v2958 = vmax.f32 %v2954, %v2890
        %v2959 = vmax.f32 %v2955, %v2893
        %v2960 = vmax.f32 %v2956, %v2898
        %v2961 = vmax.f32 %v2957, %v2901
        %v2962 = vmax.f32 %v2958, %v2906
        %v2963 = vmax.f32 %v2959, %v2909
        %v2964 = vmax.f32 %v2960, %v2914
        %v2965 = vmax.f32 %v2961, %v2917
        %v2966 = vmax.f32 %v2962, %v2922
        %v2967 = vmax.f32 %v2963, %v2925
        %v2968 = vmax.f32 %v2964, %v2930
        %v2969 = vmax.f32 %v2965, %v2933
        %v2970 = vmax.f32 %v2966, %v2938
        %v2971 = vmax.f32 %v2967, %v2941
        %v2972 = vmax.f32 %v2968, %v2969
        %v2973 = vmax.f32 %v2970, %v2971
        %v2974 = vmax.f32 %v2972, %v2973
        %v2975 = vrot.slane %v2974, 4
        %v2976 = vmax.f32 %v2974, %v2975
        %v2977 = vrot.slane %v2976, 2
        %v2978 = vmax.f32 %v2976, %v2977
        %v2979 = vrot.slane %v2978, 1
        %v2980 = vmax.f32 %v2978, %v2979
        %v2981 = vsub.f32 %v2818, %v2980
        %v2982 = vsub.f32 %v2821, %v2980
        %v2983 = vsub.f32 %v2826, %v2980
        %v2984 = vsub.f32 %v2829, %v2980
        %v2985 = vsub.f32 %v2834, %v2980
        %v2986 = vsub.f32 %v2837, %v2980
        %v2987 = vsub.f32 %v2842, %v2980
        %v2988 = vsub.f32 %v2845, %v2980
        %v2989 = vsub.f32 %v2850, %v2980
        %v2990 = vsub.f32 %v2853, %v2980
        %v2991 = vsub.f32 %v2858, %v2980
        %v2992 = vsub.f32 %v2861, %v2980
        %v2993 = vsub.f32 %v2866, %v2980
        %v2994 = vsub.f32 %v2869, %v2980
        %v2995 = vsub.f32 %v2874, %v2980
        %v2996 = vsub.f32 %v2877, %v2980
        %v2997 = vsub.f32 %v2882, %v2980
        %v2998 = vsub.f32 %v2885, %v2980
        %v2999 = vsub.f32 %v2890, %v2980
        %v3000 = vsub.f32 %v2893, %v2980
        %v3001 = vsub.f32 %v2898, %v2980
        %v3002 = vsub.f32 %v2901, %v2980
        %v3003 = vsub.f32 %v2906, %v2980
        %v3004 = vsub.f32 %v2909, %v2980
        %v3005 = vsub.f32 %v2914, %v2980
        %v3006 = vsub.f32 %v2917, %v2980
        %v3007 = vsub.f32 %v2922, %v2980
        %v3008 = vsub.f32 %v2925, %v2980
        %v3009 = vsub.f32 %v2930, %v2980
        %v3010 = vsub.f32 %v2933, %v2980
        %v3011 = vsub.f32 %v2938, %v2980
        %v3012 = vsub.f32 %v2941, %v2980
        %v3013 = vmul.f32 %v2981, 1.442695
        %v3014 = vpow.pop %v3013
        %v3015 = vmul.f32 %v2982, 1.442695
        %v3016 = vpow.pop %v3015
        %v3017 = vmul.f32 %v2983, 1.442695
        %v3018 = vpow.pop %v3017
        %v3019 = vmul.f32 %v2984, 1.442695
        %v3020 = vpow.pop %v3019
        %v3021 = vmul.f32 %v2985, 1.442695
        %v3022 = vpow.pop %v3021
        %v3023 = vmul.f32 %v2986, 1.442695
        %v3024 = vpow.pop %v3023
        %v3025 = vmul.f32 %v2987, 1.442695
        %v3026 = vpow.pop %v3025
        %v3027 = vmul.f32 %v2988, 1.442695
        %v3028 = vpow.pop %v3027
        %v3029 = vmul.f32 %v2989, 1.442695
        %v3030 = vpow.pop %v3029
        %v3031 = vmul.f32 %v2990, 1.442695
        %v3032 = vpow.pop %v3031
        %v3033 = vmul.f32 %v2991, 1.442695
        %v3034 = vpow.pop %v3033
        %v3035 = vmul.f32 %v2992, 1.442695
        %v3036 = vpow.pop %v3035
        %v3037 = vmul.f32 %v2993, 1.442695
        %v3038 = vpow.pop %v3037
        %v3039 = vmul.f32 %v2994, 1.442695
        %v3040 = vpow.pop %v3039
        %v3041 = vmul.f32 %v2995, 1.442695
        %v3042 = vpow.pop %v3041
        %v3043 = vmul.f32 %v2996, 1.442695
        %v3044 = vpow.pop %v3043
        %v3045 = vmul.f32 %v2997, 1.442695
        %v3046 = vpow.pop %v3045
        %v3047 = vmul.f32 %v2998, 1.442695
        %v3048 = vpow.pop %v3047
        %v3049 = vmul.f32 %v2999, 1.442695
        %v3050 = vpow.pop %v3049
        %v3051 = vmul.f32 %v3000, 1.442695
        %v3052 = vpow.pop %v3051
        %v3053 = vmul.f32 %v3001, 1.442695
        %v3054 = vpow.pop %v3053
        %v3055 = vmul.f32 %v3002, 1.442695
        %v3056 = vpow.pop %v3055
        %v3057 = vmul.f32 %v3003, 1.442695
        %v3058 = vpow.pop %v3057
        %v3059 = vmul.f32 %v3004, 1.442695
        %v3060 = vpow.pop %v3059
        %v3061 = vmul.f32 %v3005, 1.442695
        %v3062 = vpow.pop %v3061
        %v3063 = vmul.f32 %v3006, 1.442695
        %v3064 = vpow.pop %v3063
        %v3065 = vmul.f32 %v3007, 1.442695
        %v3066 = vpow.pop %v3065
        %v3067 = vmul.f32 %v3008, 1.442695
        %v3068 = vpow.pop %v3067
        %v3069 = vmul.f32 %v3009, 1.442695
        %v3070 = vpow.pop %v3069
        %v3071 = vmul.f32 %v3010, 1.442695
        %v3072 = vpow.pop %v3071
        %v3073 = vmul.f32 %v3011, 1.442695
        %v3074 = vpow.pop %v3073
        %v3075 = vmul.f32 %v3012, 1.442695
        %v3076 = vpow.pop %v3075
        %v3077 = vadd.f32 %v3014, %v3016
        %v3078 = vadd.f32 %v3077, %v3018
        %v3079 = vadd.f32 %v3078, %v3020
        %v3080 = vadd.f32 %v3079, %v3022
        %v3081 = vadd.f32 %v3080, %v3024
        %v3082 = vadd.f32 %v3081, %v3026
        %v3083 = vadd.f32 %v3082, %v3028
        %v3084 = vadd.f32 %v3083, %v3030
        %v3085 = vadd.f32 %v3084, %v3032
        %v3086 = vadd.f32 %v3085, %v3034
        %v3087 = vadd.f32 %v3086, %v3036
        %v3088 = vadd.f32 %v3087, %v3038
        %v3089 = vadd.f32 %v3088, %v3040
        %v3090 = vadd.f32 %v3089, %v3042
        %v3091 = vadd.f32 %v3090, %v3044
        %v3092 = vadd.f32 %v3091, %v3046
        %v3093 = vadd.f32 %v3092, %v3048
        %v3094 = vadd.f32 %v3093, %v3050
        %v3095 = vadd.f32 %v3094, %v3052
        %v3096 = vadd.f32 %v3095, %v3054
        %v3097 = vadd.f32 %v3096, %v3056
        %v3098 = vadd.f32 %v3097, %v3058
        %v3099 = vadd.f32 %v3098, %v3060
        %v3100 = vadd.f32 %v3099, %v3062
        %v3101 = vadd.f32 %v3100, %v3064
        %v3102 = vadd.f32 %v3101, %v3066
        %v3103 = vadd.f32 %v3102, %v3068
        %v3104 = vadd.f32 %v3103, %v3070
        %v3105 = vadd.f32 %v3104, %v3072
        %v3106 = vadd.f32 %v3105, %v3074
        %v3107 = vadd.f32 %v3106, %v3076
        %v3108 = vrot.slane %v3107, 4
        %v3109 = vadd.f32 %v3107, %v3108
        %v3110 = vrot.slane %v3109, 2
        %v3111 = vadd.f32 %v3109, %v3110
        %v3112 = vrot.slane %v3111, 1
        %v3113 = vadd.f32 %v3111, %v3112
        %v3114 = vpack.c.bf16 %v3016, %v3014
        %v3115 = vpack.c.bf16 %v3020, %v3018
        %v3116 = vpack.c.bf16 %v3024, %v3022
        %v3117 = vpack.c.bf16 %v3028, %v3026
        %v3118 = vpack.c.bf16 %v3032, %v3030
        %v3119 = vpack.c.bf16 %v3036, %v3034
        %v3120 = vpack.c.bf16 %v3040, %v3038
        %v3121 = vpack.c.bf16 %v3044, %v3042
        %v3122 = vpack.c.bf16 %v3048, %v3046
        %v3123 = vpack.c.bf16 %v3052, %v3050
        %v3124 = vpack.c.bf16 %v3056, %v3054
        %v3125 = vpack.c.bf16 %v3060, %v3058
        %v3126 = vpack.c.bf16 %v3064, %v3062
        %v3127 = vpack.c.bf16 %v3068, %v3066
        %v3128 = vpack.c.bf16 %v3072, %v3070
        %v3129 = vpack.c.bf16 %v3076, %v3074
        %3130 = vmatprep.subr.bf16.mxu0 0
        %3131 = vmatpush1.bf16.msra.mxu0 %v3121
        %3132 = vmatprep.subr.bf16.mxu0 0
        %3133 = vmatpush1.bf16.msra.mxu0 %v3120
        %3134 = vmatprep.subr.bf16.mxu0 0
        %3135 = vmatpush1.bf16.msra.mxu0 %v3119
        %3136 = vmatprep.subr.bf16.mxu0 0
        %3137 = vmatpush1.bf16.msra.mxu0 %v3118
        %3138 = vmatprep.subr.bf16.mxu0 0
        %3139 = vmatpush1.bf16.msra.mxu0 %v3117
        %3140 = vmatprep.subr.bf16.mxu0 0
        %3141 = vmatpush1.bf16.msra.mxu0 %v3116
        %3142 = vmatprep.subr.bf16.mxu0 0
        %3143 = vmatpush1.bf16.msra.mxu0 %v3115
        %3144 = vmatprep.subr.bf16.mxu0 0
        %3145 = vmatpush1.bf16.msra.mxu0 %v3114
        %3146 = vmatprep.subr.bf16.mxu0 0
        %3147 = vmatpush2.bf16.msra.mxu0 %v3129
        %3148 = vmatprep.subr.bf16.mxu0 0
        %3149 = vmatpush2.bf16.msra.mxu0 %v3128
        %3150 = vmatprep.subr.bf16.mxu0 0
        %3151 = vmatpush2.bf16.msra.mxu0 %v3127
        %3152 = vmatprep.subr.bf16.mxu0 0
        %3153 = vmatpush2.bf16.msra.mxu0 %v3126
        %3154 = vmatprep.subr.bf16.mxu0 0
        %3155 = vmatpush2.bf16.msra.mxu0 %v3125
        %3156 = vmatprep.subr.bf16.mxu0 0
        %3157 = vmatpush2.bf16.msra.mxu0 %v3124
        %3158 = vmatprep.subr.bf16.mxu0 0
        %3159 = vmatpush2.bf16.msra.mxu0 %v3123
        %3160 = vmatprep.subr.bf16.mxu0 0
        %3161 = vmatpush2.bf16.msra.mxu0 %v3122
        %3162 = vmatprep.mubr.bf16.mxu0 %v2297
        %3163 = vmatmul.mubr.bf16.gmra.mxu0 %v2296
        %v3164 = vpop.f32.mrf.mxu0
        %v3165 = vadd.f32 0.0, %v3164
        %v3166 = vpop.f32.mrf.mxu0
        %v3167 = vpop.f32.mrf.mxu0
        %v3168 = vpop.f32.mrf.mxu0
        %3169 = vdwg.mxu0
        %v3170 = vrcp.pop %v3113
        %v3171 = vmul.f32 %v3165, %v3170
        %3172 = vst [vmem:[%s2776 + $0x8] sm:$0xff] %v3171
        %s3173 = sadd.s32 24, 32
        %s3174 = sshra.s32 %s3173, 3
        %s3175 = sand.u32 %s3173, 7
        %s3176 = smul.u32 %s3174, 2
        %s3177 = smul.addr %s3176, 8
        %s3178 = scalar_lea.vmem [#allocation2], %s3177
        %v3179 = vld [vmem:[%s3178] sm:$0xff]
        %v3180 = vld [vmem:[%s3178 + $0x8] sm:$0xff]
        %v3181 = vpack.c.bf16 %v3179, %v3179
        %v3182 = vpack.c.bf16 %v3180, %v3180
        %s3183 = sadd.s32 24, 64
        %s3184 = sshra.s32 %s3183, 3
        %s3185 = sand.u32 %s3183, 7
        %s3186 = smul.u32 %s3184, 2
        %s3187 = smul.addr %s3186, 8
        %s3188 = scalar_lea.vmem [#allocation2], %s3187
        %v3189 = vld [vmem:[%s3188] sm:$0xff]
        %v3190 = vld [vmem:[%s3188 + $0x8] sm:$0xff]
        %v3191 = vpack.c.bf16 %v3189, %v3189
        %v3192 = vpack.c.bf16 %v3190, %v3190
        %s3193 = smul.u32 3, 2
        %s3194 = smul.addr %s3193, 8
        %s3195 = scalar_lea.vmem [#allocation2], %s3194
        %v3196 = vld [vmem:[%s3195] sm:$0xff]
        %v3197 = vpack.c.bf16 %v3196, %v3196
        %3198 = vxpose.xlu0.c.b16.start [1/8] %v3181, 128
        %3199 = vxpose.xlu0.c.b16.cont [2/8] 0, 128
        %3200 = vxpose.xlu0.c.b16.cont [3/8] 0, 128
        %3201 = vxpose.xlu0.c.b16.cont [4/8] 0, 128
        %3202 = vxpose.xlu0.c.b16.cont [5/8] 0, 128
        %3203 = vxpose.xlu0.c.b16.cont [6/8] 0, 128
        %3204 = vxpose.xlu0.c.b16.cont [7/8] 0, 128
        %3205 = vxpose.xlu0.c.b16.end [8/8] 0, 128
        %v3206 = vpop.trf.xlu0
        %v3207 = vpop.trf.xlu0
        %v3208 = vpop.trf.xlu0
        %v3209 = vpop.trf.xlu0
        %v3210 = vpop.trf.xlu0
        %v3211 = vpop.trf.xlu0
        %v3212 = vpop.trf.xlu0
        %v3213 = vpop.trf.xlu0
        %3214 = vxpose.xlu0.c.b16.start [1/8] %v3182, 128
        %3215 = vxpose.xlu0.c.b16.cont [2/8] 0, 128
        %3216 = vxpose.xlu0.c.b16.cont [3/8] 0, 128
        %3217 = vxpose.xlu0.c.b16.cont [4/8] 0, 128
        %3218 = vxpose.xlu0.c.b16.cont [5/8] 0, 128
        %3219 = vxpose.xlu0.c.b16.cont [6/8] 0, 128
        %3220 = vxpose.xlu0.c.b16.cont [7/8] 0, 128
        %3221 = vxpose.xlu0.c.b16.end [8/8] 0, 128
        %v3222 = vpop.trf.xlu0
        %v3223 = vpop.trf.xlu0
        %v3224 = vpop.trf.xlu0
        %v3225 = vpop.trf.xlu0
        %v3226 = vpop.trf.xlu0
        %v3227 = vpop.trf.xlu0
        %v3228 = vpop.trf.xlu0
        %v3229 = vpop.trf.xlu0
        %v3231 = vsel %vm543, %v3206, 0
        %v3234 = vsel %vm543, %v3207, 0
        %v3237 = vsel %vm543, %v3208, 0
        %v3240 = vsel %vm543, %v3209, 0
        %v3243 = vsel %vm543, %v3210, 0
        %v3246 = vsel %vm543, %v3211, 0
        %v3249 = vsel %vm543, %v3212, 0
        %v3252 = vsel %vm543, %v3213, 0
        %v3255 = vsel %vm543, %v3222, 0
        %v3258 = vsel %vm543, %v3223, 0
        %v3261 = vsel %vm543, %v3224, 0
        %v3264 = vsel %vm543, %v3225, 0
        %v3267 = vsel %vm543, %v3226, 0
        %v3270 = vsel %vm543, %v3227, 0
        %v3273 = vsel %vm543, %v3228, 0
        %v3276 = vsel %vm543, %v3229, 0
        %v3279 = vsel %vm592, %v3197, 0
        %3281 = vmatprep.subr.bf16.mxu0 0
        %3282 = vmatpush1.bf16.msra.mxu0 0
        %3283 = vmatprep.subr.bf16.mxu0 0
        %3284 = vmatpush1.bf16.msra.mxu0 0
        %3285 = vmatprep.subr.bf16.mxu0 0
        %3286 = vmatpush1.bf16.msra.mxu0 0
        %3287 = vmatprep.subr.bf16.mxu0 0
        %3288 = vmatpush1.bf16.msra.mxu0 0
        %3289 = vmatprep.subr.bf16.mxu0 0
        %3290 = vmatpush1.bf16.msra.mxu0 0
        %3291 = vmatprep.subr.bf16.mxu0 0
        %3292 = vmatpush1.bf16.msra.mxu0 0
        %3293 = vmatprep.subr.bf16.mxu0 0
        %3294 = vmatpush1.bf16.msra.mxu0 0
        %3295 = vmatprep.subr.bf16.mxu0 0
        %3296 = vmatpush1.bf16.msra.mxu0 %v3279
        %3297 = vmatprep.subr.bf16.mxu0 0
        %3298 = vmatpush2.bf16.msra.mxu0 0
        %3299 = vmatprep.subr.bf16.mxu0 0
        %3300 = vmatpush2.bf16.msra.mxu0 0
        %3301 = vmatprep.subr.bf16.mxu0 0
        %3302 = vmatpush2.bf16.msra.mxu0 0
        %3303 = vmatprep.subr.bf16.mxu0 0
        %3304 = vmatpush2.bf16.msra.mxu0 0
        %3305 = vmatprep.subr.bf16.mxu0 0
        %3306 = vmatpush2.bf16.msra.mxu0 0
        %3307 = vmatprep.subr.bf16.mxu0 0
        %3308 = vmatpush2.bf16.msra.mxu0 0
        %3309 = vmatprep.subr.bf16.mxu0 0
        %3310 = vmatpush2.bf16.msra.mxu0 0
        %3311 = vmatprep.subr.bf16.mxu0 0
        %3312 = vmatpush2.bf16.msra.mxu0 0
        %3313 = vmatprep.mubr.bf16.mxu0 0
        %3314 = vmatmul.mubr.bf16.gmra.mxu0 %v3231
        %v3315 = vpop.f32.mrf.mxu0
        %v3316 = vadd.f32 0.0, %v3315
        %v3317 = vpop.f32.mrf.mxu0
        %v3318 = vpop.f32.mrf.mxu0
        %v3319 = vadd.f32 0.0, %v3318
        %v3320 = vpop.f32.mrf.mxu0
        %3321 = vmatprep.mubr.bf16.mxu0 0
        %3322 = vmatmul.mubr.bf16.gmra.mxu0 %v3234
        %v3323 = vpop.f32.mrf.mxu0
        %v3324 = vadd.f32 0.0, %v3323
        %v3325 = vpop.f32.mrf.mxu0
        %v3326 = vpop.f32.mrf.mxu0
        %v3327 = vadd.f32 0.0, %v3326
        %v3328 = vpop.f32.mrf.mxu0
        %3329 = vmatprep.mubr.bf16.mxu0 0
        %3330 = vmatmul.mubr.bf16.gmra.mxu0 %v3237
        %v3331 = vpop.f32.mrf.mxu0
        %v3332 = vadd.f32 0.0, %v3331
        %v3333 = vpop.f32.mrf.mxu0
        %v3334 = vpop.f32.mrf.mxu0
        %v3335 = vadd.f32 0.0, %v3334
        %v3336 = vpop.f32.mrf.mxu0
        %3337 = vmatprep.mubr.bf16.mxu0 0
        %3338 = vmatmul.mubr.bf16.gmra.mxu0 %v3240
        %v3339 = vpop.f32.mrf.mxu0
        %v3340 = vadd.f32 0.0, %v3339
        %v3341 = vpop.f32.mrf.mxu0
        %v3342 = vpop.f32.mrf.mxu0
        %v3343 = vadd.f32 0.0, %v3342
        %v3344 = vpop.f32.mrf.mxu0
        %3345 = vmatprep.mubr.bf16.mxu0 0
        %3346 = vmatmul.mubr.bf16.gmra.mxu0 %v3243
        %v3347 = vpop.f32.mrf.mxu0
        %v3348 = vadd.f32 0.0, %v3347
        %v3349 = vpop.f32.mrf.mxu0
        %v3350 = vpop.f32.mrf.mxu0
        %v3351 = vadd.f32 0.0, %v3350
        %v3352 = vpop.f32.mrf.mxu0
        %3353 = vmatprep.mubr.bf16.mxu0 0
        %3354 = vmatmul.mubr.bf16.gmra.mxu0 %v3246
        %v3355 = vpop.f32.mrf.mxu0
        %v3356 = vadd.f32 0.0, %v3355
        %v3357 = vpop.f32.mrf.mxu0
        %v3358 = vpop.f32.mrf.mxu0
        %v3359 = vadd.f32 0.0, %v3358
        %v3360 = vpop.f32.mrf.mxu0
        %3361 = vmatprep.mubr.bf16.mxu0 0
        %3362 = vmatmul.mubr.bf16.gmra.mxu0 %v3249
        %v3363 = vpop.f32.mrf.mxu0
        %v3364 = vadd.f32 0.0, %v3363
        %v3365 = vpop.f32.mrf.mxu0
        %v3366 = vpop.f32.mrf.mxu0
        %v3367 = vadd.f32 0.0, %v3366
        %v3368 = vpop.f32.mrf.mxu0
        %3369 = vmatprep.mubr.bf16.mxu0 0
        %3370 = vmatmul.mubr.bf16.gmra.mxu0 %v3252
        %v3371 = vpop.f32.mrf.mxu0
        %v3372 = vadd.f32 0.0, %v3371
        %v3373 = vpop.f32.mrf.mxu0
        %v3374 = vpop.f32.mrf.mxu0
        %v3375 = vadd.f32 0.0, %v3374
        %v3376 = vpop.f32.mrf.mxu0
        %3377 = vmatprep.mubr.bf16.mxu0 0
        %3378 = vmatmul.mubr.bf16.gmra.mxu0 %v3255
        %v3379 = vpop.f32.mrf.mxu0
        %v3380 = vadd.f32 0.0, %v3379
        %v3381 = vpop.f32.mrf.mxu0
        %v3382 = vpop.f32.mrf.mxu0
        %v3383 = vadd.f32 0.0, %v3382
        %v3384 = vpop.f32.mrf.mxu0
        %3385 = vmatprep.mubr.bf16.mxu0 0
        %3386 = vmatmul.mubr.bf16.gmra.mxu0 %v3258
        %v3387 = vpop.f32.mrf.mxu0
        %v3388 = vadd.f32 0.0, %v3387
        %v3389 = vpop.f32.mrf.mxu0
        %v3390 = vpop.f32.mrf.mxu0
        %v3391 = vadd.f32 0.0, %v3390
        %v3392 = vpop.f32.mrf.mxu0
        %3393 = vmatprep.mubr.bf16.mxu0 0
        %3394 = vmatmul.mubr.bf16.gmra.mxu0 %v3261
        %v3395 = vpop.f32.mrf.mxu0
        %v3396 = vadd.f32 0.0, %v3395
        %v3397 = vpop.f32.mrf.mxu0
        %v3398 = vpop.f32.mrf.mxu0
        %v3399 = vadd.f32 0.0, %v3398
        %v3400 = vpop.f32.mrf.mxu0
        %3401 = vmatprep.mubr.bf16.mxu0 0
        %3402 = vmatmul.mubr.bf16.gmra.mxu0 %v3264
        %v3403 = vpop.f32.mrf.mxu0
        %v3404 = vadd.f32 0.0, %v3403
        %v3405 = vpop.f32.mrf.mxu0
        %v3406 = vpop.f32.mrf.mxu0
        %v3407 = vadd.f32 0.0, %v3406
        %v3408 = vpop.f32.mrf.mxu0
        %3409 = vmatprep.mubr.bf16.mxu0 0
        %3410 = vmatmul.mubr.bf16.gmra.mxu0 %v3267
        %v3411 = vpop.f32.mrf.mxu0
        %v3412 = vadd.f32 0.0, %v3411
        %v3413 = vpop.f32.mrf.mxu0
        %v3414 = vpop.f32.mrf.mxu0
        %v3415 = vadd.f32 0.0, %v3414
        %v3416 = vpop.f32.mrf.mxu0
        %3417 = vmatprep.mubr.bf16.mxu0 0
        %3418 = vmatmul.mubr.bf16.gmra.mxu0 %v3270
        %v3419 = vpop.f32.mrf.mxu0
        %v3420 = vadd.f32 0.0, %v3419
        %v3421 = vpop.f32.mrf.mxu0
        %v3422 = vpop.f32.mrf.mxu0
        %v3423 = vadd.f32 0.0, %v3422
        %v3424 = vpop.f32.mrf.mxu0
        %3425 = vmatprep.mubr.bf16.mxu0 0
        %3426 = vmatmul.mubr.bf16.gmra.mxu0 %v3273
        %v3427 = vpop.f32.mrf.mxu0
        %v3428 = vadd.f32 0.0, %v3427
        %v3429 = vpop.f32.mrf.mxu0
        %v3430 = vpop.f32.mrf.mxu0
        %v3431 = vadd.f32 0.0, %v3430
        %v3432 = vpop.f32.mrf.mxu0
        %3433 = vmatprep.mubr.bf16.mxu0 0
        %3434 = vmatmul.mubr.bf16.gmra.mxu0 %v3276
        %v3435 = vpop.f32.mrf.mxu0
        %v3436 = vadd.f32 0.0, %v3435
        %v3437 = vpop.f32.mrf.mxu0
        %v3438 = vpop.f32.mrf.mxu0
        %v3439 = vadd.f32 0.0, %v3438
        %v3440 = vpop.f32.mrf.mxu0
        %3441 = vdwg.mxu0
        %v3442 = vmax.f32 %v3316, %v3332
        %v3443 = vmax.f32 %v3319, %v3335
        %v3444 = vmax.f32 %v3324, %v3340
        %v3445 = vmax.f32 %v3327, %v3343
        %v3446 = vmax.f32 %v3442, %v3348
        %v3447 = vmax.f32 %v3443, %v3351
        %v3448 = vmax.f32 %v3444, %v3356
        %v3449 = vmax.f32 %v3445, %v3359
        %v3450 = vmax.f32 %v3446, %v3364
        %v3451 = vmax.f32 %v3447, %v3367
        %v3452 = vmax.f32 %v3448, %v3372
        %v3453 = vmax.f32 %v3449, %v3375
        %v3454 = vmax.f32 %v3450, %v3380
        %v3455 = vmax.f32 %v3451, %v3383
        %v3456 = vmax.f32 %v3452, %v3388
        %v3457 = vmax.f32 %v3453, %v3391
        %v3458 = vmax.f32 %v3454, %v3396
        %v3459 = vmax.f32 %v3455, %v3399
        %v3460 = vmax.f32 %v3456, %v3404
        %v3461 = vmax.f32 %v3457, %v3407
        %v3462 = vmax.f32 %v3458, %v3412
        %v3463 = vmax.f32 %v3459, %v3415
        %v3464 = vmax.f32 %v3460, %v3420
        %v3465 = vmax.f32 %v3461, %v3423
        %v3466 = vmax.f32 %v3462, %v3428
        %v3467 = vmax.f32 %v3463, %v3431
        %v3468 = vmax.f32 %v3464, %v3436
        %v3469 = vmax.f32 %v3465, %v3439
        %v3470 = vmax.f32 %v3466, %v3467
        %v3471 = vmax.f32 %v3468, %v3469
        %v3472 = vmax.f32 %v3470, %v3471
        %v3473 = vrot.slane %v3472, 4
        %v3474 = vmax.f32 %v3472, %v3473
        %v3475 = vrot.slane %v3474, 2
        %v3476 = vmax.f32 %v3474, %v3475
        %v3477 = vrot.slane %v3476, 1
        %v3478 = vmax.f32 %v3476, %v3477
        %v3479 = vsub.f32 %v3316, %v3478
        %v3480 = vsub.f32 %v3319, %v3478
        %v3481 = vsub.f32 %v3324, %v3478
        %v3482 = vsub.f32 %v3327, %v3478
        %v3483 = vsub.f32 %v3332, %v3478
        %v3484 = vsub.f32 %v3335, %v3478
        %v3485 = vsub.f32 %v3340, %v3478
        %v3486 = vsub.f32 %v3343, %v3478
        %v3487 = vsub.f32 %v3348, %v3478
        %v3488 = vsub.f32 %v3351, %v3478
        %v3489 = vsub.f32 %v3356, %v3478
        %v3490 = vsub.f32 %v3359, %v3478
        %v3491 = vsub.f32 %v3364, %v3478
        %v3492 = vsub.f32 %v3367, %v3478
        %v3493 = vsub.f32 %v3372, %v3478
        %v3494 = vsub.f32 %v3375, %v3478
        %v3495 = vsub.f32 %v3380, %v3478
        %v3496 = vsub.f32 %v3383, %v3478
        %v3497 = vsub.f32 %v3388, %v3478
        %v3498 = vsub.f32 %v3391, %v3478
        %v3499 = vsub.f32 %v3396, %v3478
        %v3500 = vsub.f32 %v3399, %v3478
        %v3501 = vsub.f32 %v3404, %v3478
        %v3502 = vsub.f32 %v3407, %v3478
        %v3503 = vsub.f32 %v3412, %v3478
        %v3504 = vsub.f32 %v3415, %v3478
        %v3505 = vsub.f32 %v3420, %v3478
        %v3506 = vsub.f32 %v3423, %v3478
        %v3507 = vsub.f32 %v3428, %v3478
        %v3508 = vsub.f32 %v3431, %v3478
        %v3509 = vsub.f32 %v3436, %v3478
        %v3510 = vsub.f32 %v3439, %v3478
        %v3511 = vmul.f32 %v3479, 1.442695
        %v3512 = vpow.pop %v3511
        %v3513 = vmul.f32 %v3480, 1.442695
        %v3514 = vpow.pop %v3513
        %v3515 = vmul.f32 %v3481, 1.442695
        %v3516 = vpow.pop %v3515
        %v3517 = vmul.f32 %v3482, 1.442695
        %v3518 = vpow.pop %v3517
        %v3519 = vmul.f32 %v3483, 1.442695
        %v3520 = vpow.pop %v3519
        %v3521 = vmul.f32 %v3484, 1.442695
        %v3522 = vpow.pop %v3521
        %v3523 = vmul.f32 %v3485, 1.442695
        %v3524 = vpow.pop %v3523
        %v3525 = vmul.f32 %v3486, 1.442695
        %v3526 = vpow.pop %v3525
        %v3527 = vmul.f32 %v3487, 1.442695
        %v3528 = vpow.pop %v3527
        %v3529 = vmul.f32 %v3488, 1.442695
        %v3530 = vpow.pop %v3529
        %v3531 = vmul.f32 %v3489, 1.442695
        %v3532 = vpow.pop %v3531
        %v3533 = vmul.f32 %v3490, 1.442695
        %v3534 = vpow.pop %v3533
        %v3535 = vmul.f32 %v3491, 1.442695
        %v3536 = vpow.pop %v3535
        %v3537 = vmul.f32 %v3492, 1.442695
        %v3538 = vpow.pop %v3537
        %v3539 = vmul.f32 %v3493, 1.442695
        %v3540 = vpow.pop %v3539
        %v3541 = vmul.f32 %v3494, 1.442695
        %v3542 = vpow.pop %v3541
        %v3543 = vmul.f32 %v3495, 1.442695
        %v3544 = vpow.pop %v3543
        %v3545 = vmul.f32 %v3496, 1.442695
        %v3546 = vpow.pop %v3545
        %v3547 = vmul.f32 %v3497, 1.442695
        %v3548 = vpow.pop %v3547
        %v3549 = vmul.f32 %v3498, 1.442695
        %v3550 = vpow.pop %v3549
        %v3551 = vmul.f32 %v3499, 1.442695
        %v3552 = vpow.pop %v3551
        %v3553 = vmul.f32 %v3500, 1.442695
        %v3554 = vpow.pop %v3553
        %v3555 = vmul.f32 %v3501, 1.442695
        %v3556 = vpow.pop %v3555
        %v3557 = vmul.f32 %v3502, 1.442695
        %v3558 = vpow.pop %v3557
        %v3559 = vmul.f32 %v3503, 1.442695
        %v3560 = vpow.pop %v3559
        %v3561 = vmul.f32 %v3504, 1.442695
        %v3562 = vpow.pop %v3561
        %v3563 = vmul.f32 %v3505, 1.442695
        %v3564 = vpow.pop %v3563
        %v3565 = vmul.f32 %v3506, 1.442695
        %v3566 = vpow.pop %v3565
        %v3567 = vmul.f32 %v3507, 1.442695
        %v3568 = vpow.pop %v3567
        %v3569 = vmul.f32 %v3508, 1.442695
        %v3570 = vpow.pop %v3569
        %v3571 = vmul.f32 %v3509, 1.442695
        %v3572 = vpow.pop %v3571
        %v3573 = vmul.f32 %v3510, 1.442695
        %v3574 = vpow.pop %v3573
        %v3575 = vadd.f32 %v3512, %v3514
        %v3576 = vadd.f32 %v3575, %v3516
        %v3577 = vadd.f32 %v3576, %v3518
        %v3578 = vadd.f32 %v3577, %v3520
        %v3579 = vadd.f32 %v3578, %v3522
        %v3580 = vadd.f32 %v3579, %v3524
        %v3581 = vadd.f32 %v3580, %v3526
        %v3582 = vadd.f32 %v3581, %v3528
        %v3583 = vadd.f32 %v3582, %v3530
        %v3584 = vadd.f32 %v3583, %v3532
        %v3585 = vadd.f32 %v3584, %v3534
        %v3586 = vadd.f32 %v3585, %v3536
        %v3587 = vadd.f32 %v3586, %v3538
        %v3588 = vadd.f32 %v3587, %v3540
        %v3589 = vadd.f32 %v3588, %v3542
        %v3590 = vadd.f32 %v3589, %v3544
        %v3591 = vadd.f32 %v3590, %v3546
        %v3592 = vadd.f32 %v3591, %v3548
        %v3593 = vadd.f32 %v3592, %v3550
        %v3594 = vadd.f32 %v3593, %v3552
        %v3595 = vadd.f32 %v3594, %v3554
        %v3596 = vadd.f32 %v3595, %v3556
        %v3597 = vadd.f32 %v3596, %v3558
        %v3598 = vadd.f32 %v3597, %v3560
        %v3599 = vadd.f32 %v3598, %v3562
        %v3600 = vadd.f32 %v3599, %v3564
        %v3601 = vadd.f32 %v3600, %v3566
        %v3602 = vadd.f32 %v3601, %v3568
        %v3603 = vadd.f32 %v3602, %v3570
        %v3604 = vadd.f32 %v3603, %v3572
        %v3605 = vadd.f32 %v3604, %v3574
        %v3606 = vrot.slane %v3605, 4
        %v3607 = vadd.f32 %v3605, %v3606
        %v3608 = vrot.slane %v3607, 2
        %v3609 = vadd.f32 %v3607, %v3608
        %v3610 = vrot.slane %v3609, 1
        %v3611 = vadd.f32 %v3609, %v3610
        %v3612 = vpack.c.bf16 %v3514, %v3512
        %v3613 = vpack.c.bf16 %v3518, %v3516
        %v3614 = vpack.c.bf16 %v3522, %v3520
        %v3615 = vpack.c.bf16 %v3526, %v3524
        %v3616 = vpack.c.bf16 %v3530, %v3528
        %v3617 = vpack.c.bf16 %v3534, %v3532
        %v3618 = vpack.c.bf16 %v3538, %v3536
        %v3619 = vpack.c.bf16 %v3542, %v3540
        %v3620 = vpack.c.bf16 %v3546, %v3544
        %v3621 = vpack.c.bf16 %v3550, %v3548
        %v3622 = vpack.c.bf16 %v3554, %v3552
        %v3623 = vpack.c.bf16 %v3558, %v3556
        %v3624 = vpack.c.bf16 %v3562, %v3560
        %v3625 = vpack.c.bf16 %v3566, %v3564
        %v3626 = vpack.c.bf16 %v3570, %v3568
        %v3627 = vpack.c.bf16 %v3574, %v3572
        %3628 = vmatprep.subr.bf16.mxu0 0
        %3629 = vmatpush1.bf16.msra.mxu0 %v3619
        %3630 = vmatprep.subr.bf16.mxu0 0
        %3631 = vmatpush1.bf16.msra.mxu0 %v3618
        %3632 = vmatprep.subr.bf16.mxu0 0
        %3633 = vmatpush1.bf16.msra.mxu0 %v3617
        %3634 = vmatprep.subr.bf16.mxu0 0
        %3635 = vmatpush1.bf16.msra.mxu0 %v3616
        %3636 = vmatprep.subr.bf16.mxu0 0
        %3637 = vmatpush1.bf16.msra.mxu0 %v3615
        %3638 = vmatprep.subr.bf16.mxu0 0
        %3639 = vmatpush1.bf16.msra.mxu0 %v3614
        %3640 = vmatprep.subr.bf16.mxu0 0
        %3641 = vmatpush1.bf16.msra.mxu0 %v3613
        %3642 = vmatprep.subr.bf16.mxu0 0
        %3643 = vmatpush1.bf16.msra.mxu0 %v3612
        %3644 = vmatprep.subr.bf16.mxu0 0
        %3645 = vmatpush2.bf16.msra.mxu0 %v3627
        %3646 = vmatprep.subr.bf16.mxu0 0
        %3647 = vmatpush2.bf16.msra.mxu0 %v3626
        %3648 = vmatprep.subr.bf16.mxu0 0
        %3649 = vmatpush2.bf16.msra.mxu0 %v3625
        %3650 = vmatprep.subr.bf16.mxu0 0
        %3651 = vmatpush2.bf16.msra.mxu0 %v3624
        %3652 = vmatprep.subr.bf16.mxu0 0
        %3653 = vmatpush2.bf16.msra.mxu0 %v3623
        %3654 = vmatprep.subr.bf16.mxu0 0
        %3655 = vmatpush2.bf16.msra.mxu0 %v3622
        %3656 = vmatprep.subr.bf16.mxu0 0
        %3657 = vmatpush2.bf16.msra.mxu0 %v3621
        %3658 = vmatprep.subr.bf16.mxu0 0
        %3659 = vmatpush2.bf16.msra.mxu0 %v3620
        %3660 = vmatprep.mubr.bf16.mxu0 %v3192
        %3661 = vmatmul.mubr.bf16.gmra.mxu0 %v3191
        %v3662 = vpop.f32.mrf.mxu0
        %v3663 = vadd.f32 0.0, %v3662
        %v3664 = vpop.f32.mrf.mxu0
        %v3665 = vpop.f32.mrf.mxu0
        %v3666 = vpop.f32.mrf.mxu0
        %3667 = vdwg.mxu0
        %v3668 = vrcp.pop %v3611
        %v3669 = vmul.f32 %v3663, %v3668
        %s3670 = smul.addr %s3193, 8
        %s3671 = scalar_lea.vmem [#allocation3], %s3670
        %3672 = vst [vmem:[%s3671] sm:$0xff] %v3669
        %v3673 = vld [vmem:[%s3195 + $0x8] sm:$0xff]
        %v3674 = vpack.c.bf16 %v3673, %v3673
        %v3676 = vsel %vm592, %v3674, 0
        %3678 = vmatprep.subr.bf16.mxu0 0
        %3679 = vmatpush1.bf16.msra.mxu0 0
        %3680 = vmatprep.subr.bf16.mxu0 0
        %3681 = vmatpush1.bf16.msra.mxu0 0
        %3682 = vmatprep.subr.bf16.mxu0 0
        %3683 = vmatpush1.bf16.msra.mxu0 0
        %3684 = vmatprep.subr.bf16.mxu0 0
        %3685 = vmatpush1.bf16.msra.mxu0 0
        %3686 = vmatprep.subr.bf16.mxu0 0
        %3687 = vmatpush1.bf16.msra.mxu0 0
        %3688 = vmatprep.subr.bf16.mxu0 0
        %3689 = vmatpush1.bf16.msra.mxu0 0
        %3690 = vmatprep.subr.bf16.mxu0 0
        %3691 = vmatpush1.bf16.msra.mxu0 0
        %3692 = vmatprep.subr.bf16.mxu0 0
        %3693 = vmatpush1.bf16.msra.mxu0 %v3676
        %3694 = vmatprep.subr.bf16.mxu0 0
        %3695 = vmatpush2.bf16.msra.mxu0 0
        %3696 = vmatprep.subr.bf16.mxu0 0
        %3697 = vmatpush2.bf16.msra.mxu0 0
        %3698 = vmatprep.subr.bf16.mxu0 0
        %3699 = vmatpush2.bf16.msra.mxu0 0
        %3700 = vmatprep.subr.bf16.mxu0 0
        %3701 = vmatpush2.bf16.msra.mxu0 0
        %3702 = vmatprep.subr.bf16.mxu0 0
        %3703 = vmatpush2.bf16.msra.mxu0 0
        %3704 = vmatprep.subr.bf16.mxu0 0
        %3705 = vmatpush2.bf16.msra.mxu0 0
        %3706 = vmatprep.subr.bf16.mxu0 0
        %3707 = vmatpush2.bf16.msra.mxu0 0
        %3708 = vmatprep.subr.bf16.mxu0 0
        %3709 = vmatpush2.bf16.msra.mxu0 0
        %3710 = vmatprep.mubr.bf16.mxu0 0
        %3711 = vmatmul.mubr.bf16.gmra.mxu0 %v3231
        %v3712 = vpop.f32.mrf.mxu0
        %v3713 = vadd.f32 0.0, %v3712
        %v3714 = vpop.f32.mrf.mxu0
        %v3715 = vpop.f32.mrf.mxu0
        %v3716 = vadd.f32 0.0, %v3715
        %v3717 = vpop.f32.mrf.mxu0
        %3718 = vmatprep.mubr.bf16.mxu0 0
        %3719 = vmatmul.mubr.bf16.gmra.mxu0 %v3234
        %v3720 = vpop.f32.mrf.mxu0
        %v3721 = vadd.f32 0.0, %v3720
        %v3722 = vpop.f32.mrf.mxu0
        %v3723 = vpop.f32.mrf.mxu0
        %v3724 = vadd.f32 0.0, %v3723
        %v3725 = vpop.f32.mrf.mxu0
        %3726 = vmatprep.mubr.bf16.mxu0 0
        %3727 = vmatmul.mubr.bf16.gmra.mxu0 %v3237
        %v3728 = vpop.f32.mrf.mxu0
        %v3729 = vadd.f32 0.0, %v3728
        %v3730 = vpop.f32.mrf.mxu0
        %v3731 = vpop.f32.mrf.mxu0
        %v3732 = vadd.f32 0.0, %v3731
        %v3733 = vpop.f32.mrf.mxu0
        %3734 = vmatprep.mubr.bf16.mxu0 0
        %3735 = vmatmul.mubr.bf16.gmra.mxu0 %v3240
        %v3736 = vpop.f32.mrf.mxu0
        %v3737 = vadd.f32 0.0, %v3736
        %v3738 = vpop.f32.mrf.mxu0
        %v3739 = vpop.f32.mrf.mxu0
        %v3740 = vadd.f32 0.0, %v3739
        %v3741 = vpop.f32.mrf.mxu0
        %3742 = vmatprep.mubr.bf16.mxu0 0
        %3743 = vmatmul.mubr.bf16.gmra.mxu0 %v3243
        %v3744 = vpop.f32.mrf.mxu0
        %v3745 = vadd.f32 0.0, %v3744
        %v3746 = vpop.f32.mrf.mxu0
        %v3747 = vpop.f32.mrf.mxu0
        %v3748 = vadd.f32 0.0, %v3747
        %v3749 = vpop.f32.mrf.mxu0
        %3750 = vmatprep.mubr.bf16.mxu0 0
        %3751 = vmatmul.mubr.bf16.gmra.mxu0 %v3246
        %v3752 = vpop.f32.mrf.mxu0
        %v3753 = vadd.f32 0.0, %v3752
        %v3754 = vpop.f32.mrf.mxu0
        %v3755 = vpop.f32.mrf.mxu0
        %v3756 = vadd.f32 0.0, %v3755
        %v3757 = vpop.f32.mrf.mxu0
        %3758 = vmatprep.mubr.bf16.mxu0 0
        %3759 = vmatmul.mubr.bf16.gmra.mxu0 %v3249
        %v3760 = vpop.f32.mrf.mxu0
        %v3761 = vadd.f32 0.0, %v3760
        %v3762 = vpop.f32.mrf.mxu0
        %v3763 = vpop.f32.mrf.mxu0
        %v3764 = vadd.f32 0.0, %v3763
        %v3765 = vpop.f32.mrf.mxu0
        %3766 = vmatprep.mubr.bf16.mxu0 0
        %3767 = vmatmul.mubr.bf16.gmra.mxu0 %v3252
        %v3768 = vpop.f32.mrf.mxu0
        %v3769 = vadd.f32 0.0, %v3768
        %v3770 = vpop.f32.mrf.mxu0
        %v3771 = vpop.f32.mrf.mxu0
        %v3772 = vadd.f32 0.0, %v3771
        %v3773 = vpop.f32.mrf.mxu0
        %3774 = vmatprep.mubr.bf16.mxu0 0
        %3775 = vmatmul.mubr.bf16.gmra.mxu0 %v3255
        %v3776 = vpop.f32.mrf.mxu0
        %v3777 = vadd.f32 0.0, %v3776
        %v3778 = vpop.f32.mrf.mxu0
        %v3779 = vpop.f32.mrf.mxu0
        %v3780 = vadd.f32 0.0, %v3779
        %v3781 = vpop.f32.mrf.mxu0
        %3782 = vmatprep.mubr.bf16.mxu0 0
        %3783 = vmatmul.mubr.bf16.gmra.mxu0 %v3258
        %v3784 = vpop.f32.mrf.mxu0
        %v3785 = vadd.f32 0.0, %v3784
        %v3786 = vpop.f32.mrf.mxu0
        %v3787 = vpop.f32.mrf.mxu0
        %v3788 = vadd.f32 0.0, %v3787
        %v3789 = vpop.f32.mrf.mxu0
        %3790 = vmatprep.mubr.bf16.mxu0 0
        %3791 = vmatmul.mubr.bf16.gmra.mxu0 %v3261
        %v3792 = vpop.f32.mrf.mxu0
        %v3793 = vadd.f32 0.0, %v3792
        %v3794 = vpop.f32.mrf.mxu0
        %v3795 = vpop.f32.mrf.mxu0
        %v3796 = vadd.f32 0.0, %v3795
        %v3797 = vpop.f32.mrf.mxu0
        %3798 = vmatprep.mubr.bf16.mxu0 0
        %3799 = vmatmul.mubr.bf16.gmra.mxu0 %v3264
        %v3800 = vpop.f32.mrf.mxu0
        %v3801 = vadd.f32 0.0, %v3800
        %v3802 = vpop.f32.mrf.mxu0
        %v3803 = vpop.f32.mrf.mxu0
        %v3804 = vadd.f32 0.0, %v3803
        %v3805 = vpop.f32.mrf.mxu0
        %3806 = vmatprep.mubr.bf16.mxu0 0
        %3807 = vmatmul.mubr.bf16.gmra.mxu0 %v3267
        %v3808 = vpop.f32.mrf.mxu0
        %v3809 = vadd.f32 0.0, %v3808
        %v3810 = vpop.f32.mrf.mxu0
        %v3811 = vpop.f32.mrf.mxu0
        %v3812 = vadd.f32 0.0, %v3811
        %v3813 = vpop.f32.mrf.mxu0
        %3814 = vmatprep.mubr.bf16.mxu0 0
        %3815 = vmatmul.mubr.bf16.gmra.mxu0 %v3270
        %v3816 = vpop.f32.mrf.mxu0
        %v3817 = vadd.f32 0.0, %v3816
        %v3818 = vpop.f32.mrf.mxu0
        %v3819 = vpop.f32.mrf.mxu0
        %v3820 = vadd.f32 0.0, %v3819
        %v3821 = vpop.f32.mrf.mxu0
        %3822 = vmatprep.mubr.bf16.mxu0 0
        %3823 = vmatmul.mubr.bf16.gmra.mxu0 %v3273
        %v3824 = vpop.f32.mrf.mxu0
        %v3825 = vadd.f32 0.0, %v3824
        %v3826 = vpop.f32.mrf.mxu0
        %v3827 = vpop.f32.mrf.mxu0
        %v3828 = vadd.f32 0.0, %v3827
        %v3829 = vpop.f32.mrf.mxu0
        %3830 = vmatprep.mubr.bf16.mxu0 0
        %3831 = vmatmul.mubr.bf16.gmra.mxu0 %v3276
        %v3832 = vpop.f32.mrf.mxu0
        %v3833 = vadd.f32 0.0, %v3832
        %v3834 = vpop.f32.mrf.mxu0
        %v3835 = vpop.f32.mrf.mxu0
        %v3836 = vadd.f32 0.0, %v3835
        %v3837 = vpop.f32.mrf.mxu0
        %3838 = vdwg.mxu0
        %v3839 = vmax.f32 %v3713, %v3729
        %v3840 = vmax.f32 %v3716, %v3732
        %v3841 = vmax.f32 %v3721, %v3737
        %v3842 = vmax.f32 %v3724, %v3740
        %v3843 = vmax.f32 %v3839, %v3745
        %v3844 = vmax.f32 %v3840, %v3748
        %v3845 = vmax.f32 %v3841, %v3753
        %v3846 = vmax.f32 %v3842, %v3756
        %v3847 = vmax.f32 %v3843, %v3761
        %v3848 = vmax.f32 %v3844, %v3764
        %v3849 = vmax.f32 %v3845, %v3769
        %v3850 = vmax.f32 %v3846, %v3772
        %v3851 = vmax.f32 %v3847, %v3777
        %v3852 = vmax.f32 %v3848, %v3780
        %v3853 = vmax.f32 %v3849, %v3785
        %v3854 = vmax.f32 %v3850, %v3788
        %v3855 = vmax.f32 %v3851, %v3793
        %v3856 = vmax.f32 %v3852, %v3796
        %v3857 = vmax.f32 %v3853, %v3801
        %v3858 = vmax.f32 %v3854, %v3804
        %v3859 = vmax.f32 %v3855, %v3809
        %v3860 = vmax.f32 %v3856, %v3812
        %v3861 = vmax.f32 %v3857, %v3817
        %v3862 = vmax.f32 %v3858, %v3820
        %v3863 = vmax.f32 %v3859, %v3825
        %v3864 = vmax.f32 %v3860, %v3828
        %v3865 = vmax.f32 %v3861, %v3833
        %v3866 = vmax.f32 %v3862, %v3836
        %v3867 = vmax.f32 %v3863, %v3864
        %v3868 = vmax.f32 %v3865, %v3866
        %v3869 = vmax.f32 %v3867, %v3868
        %v3870 = vrot.slane %v3869, 4
        %v3871 = vmax.f32 %v3869, %v3870
        %v3872 = vrot.slane %v3871, 2
        %v3873 = vmax.f32 %v3871, %v3872
        %v3874 = vrot.slane %v3873, 1
        %v3875 = vmax.f32 %v3873, %v3874
        %v3876 = vsub.f32 %v3713, %v3875
        %v3877 = vsub.f32 %v3716, %v3875
        %v3878 = vsub.f32 %v3721, %v3875
        %v3879 = vsub.f32 %v3724, %v3875
        %v3880 = vsub.f32 %v3729, %v3875
        %v3881 = vsub.f32 %v3732, %v3875
        %v3882 = vsub.f32 %v3737, %v3875
        %v3883 = vsub.f32 %v3740, %v3875
        %v3884 = vsub.f32 %v3745, %v3875
        %v3885 = vsub.f32 %v3748, %v3875
        %v3886 = vsub.f32 %v3753, %v3875
        %v3887 = vsub.f32 %v3756, %v3875
        %v3888 = vsub.f32 %v3761, %v3875
        %v3889 = vsub.f32 %v3764, %v3875
        %v3890 = vsub.f32 %v3769, %v3875
        %v3891 = vsub.f32 %v3772, %v3875
        %v3892 = vsub.f32 %v3777, %v3875
        %v3893 = vsub.f32 %v3780, %v3875
        %v3894 = vsub.f32 %v3785, %v3875
        %v3895 = vsub.f32 %v3788, %v3875
        %v3896 = vsub.f32 %v3793, %v3875
        %v3897 = vsub.f32 %v3796, %v3875
        %v3898 = vsub.f32 %v3801, %v3875
        %v3899 = vsub.f32 %v3804, %v3875
        %v3900 = vsub.f32 %v3809, %v3875
        %v3901 = vsub.f32 %v3812, %v3875
        %v3902 = vsub.f32 %v3817, %v3875
        %v3903 = vsub.f32 %v3820, %v3875
        %v3904 = vsub.f32 %v3825, %v3875
        %v3905 = vsub.f32 %v3828, %v3875
        %v3906 = vsub.f32 %v3833, %v3875
        %v3907 = vsub.f32 %v3836, %v3875
        %v3908 = vmul.f32 %v3876, 1.442695
        %v3909 = vpow.pop %v3908
        %v3910 = vmul.f32 %v3877, 1.442695
        %v3911 = vpow.pop %v3910
        %v3912 = vmul.f32 %v3878, 1.442695
        %v3913 = vpow.pop %v3912
        %v3914 = vmul.f32 %v3879, 1.442695
        %v3915 = vpow.pop %v3914
        %v3916 = vmul.f32 %v3880, 1.442695
        %v3917 = vpow.pop %v3916
        %v3918 = vmul.f32 %v3881, 1.442695
        %v3919 = vpow.pop %v3918
        %v3920 = vmul.f32 %v3882, 1.442695
        %v3921 = vpow.pop %v3920
        %v3922 = vmul.f32 %v3883, 1.442695
        %v3923 = vpow.pop %v3922
        %v3924 = vmul.f32 %v3884, 1.442695
        %v3925 = vpow.pop %v3924
        %v3926 = vmul.f32 %v3885, 1.442695
        %v3927 = vpow.pop %v3926
        %v3928 = vmul.f32 %v3886, 1.442695
        %v3929 = vpow.pop %v3928
        %v3930 = vmul.f32 %v3887, 1.442695
        %v3931 = vpow.pop %v3930
        %v3932 = vmul.f32 %v3888, 1.442695
        %v3933 = vpow.pop %v3932
        %v3934 = vmul.f32 %v3889, 1.442695
        %v3935 = vpow.pop %v3934
        %v3936 = vmul.f32 %v3890, 1.442695
        %v3937 = vpow.pop %v3936
        %v3938 = vmul.f32 %v3891, 1.442695
        %v3939 = vpow.pop %v3938
        %v3940 = vmul.f32 %v3892, 1.442695
        %v3941 = vpow.pop %v3940
        %v3942 = vmul.f32 %v3893, 1.442695
        %v3943 = vpow.pop %v3942
        %v3944 = vmul.f32 %v3894, 1.442695
        %v3945 = vpow.pop %v3944
        %v3946 = vmul.f32 %v3895, 1.442695
        %v3947 = vpow.pop %v3946
        %v3948 = vmul.f32 %v3896, 1.442695
        %v3949 = vpow.pop %v3948
        %v3950 = vmul.f32 %v3897, 1.442695
        %v3951 = vpow.pop %v3950
        %v3952 = vmul.f32 %v3898, 1.442695
        %v3953 = vpow.pop %v3952
        %v3954 = vmul.f32 %v3899, 1.442695
        %v3955 = vpow.pop %v3954
        %v3956 = vmul.f32 %v3900, 1.442695
        %v3957 = vpow.pop %v3956
        %v3958 = vmul.f32 %v3901, 1.442695
        %v3959 = vpow.pop %v3958
        %v3960 = vmul.f32 %v3902, 1.442695
        %v3961 = vpow.pop %v3960
        %v3962 = vmul.f32 %v3903, 1.442695
        %v3963 = vpow.pop %v3962
        %v3964 = vmul.f32 %v3904, 1.442695
        %v3965 = vpow.pop %v3964
        %v3966 = vmul.f32 %v3905, 1.442695
        %v3967 = vpow.pop %v3966
        %v3968 = vmul.f32 %v3906, 1.442695
        %v3969 = vpow.pop %v3968
        %v3970 = vmul.f32 %v3907, 1.442695
        %v3971 = vpow.pop %v3970
        %v3972 = vadd.f32 %v3909, %v3911
        %v3973 = vadd.f32 %v3972, %v3913
        %v3974 = vadd.f32 %v3973, %v3915
        %v3975 = vadd.f32 %v3974, %v3917
        %v3976 = vadd.f32 %v3975, %v3919
        %v3977 = vadd.f32 %v3976, %v3921
        %v3978 = vadd.f32 %v3977, %v3923
        %v3979 = vadd.f32 %v3978, %v3925
        %v3980 = vadd.f32 %v3979, %v3927
        %v3981 = vadd.f32 %v3980, %v3929
        %v3982 = vadd.f32 %v3981, %v3931
        %v3983 = vadd.f32 %v3982, %v3933
        %v3984 = vadd.f32 %v3983, %v3935
        %v3985 = vadd.f32 %v3984, %v3937
        %v3986 = vadd.f32 %v3985, %v3939
        %v3987 = vadd.f32 %v3986, %v3941
        %v3988 = vadd.f32 %v3987, %v3943
        %v3989 = vadd.f32 %v3988, %v3945
        %v3990 = vadd.f32 %v3989, %v3947
        %v3991 = vadd.f32 %v3990, %v3949
        %v3992 = vadd.f32 %v3991, %v3951
        %v3993 = vadd.f32 %v3992, %v3953
        %v3994 = vadd.f32 %v3993, %v3955
        %v3995 = vadd.f32 %v3994, %v3957
        %v3996 = vadd.f32 %v3995, %v3959
        %v3997 = vadd.f32 %v3996, %v3961
        %v3998 = vadd.f32 %v3997, %v3963
        %v3999 = vadd.f32 %v3998, %v3965
        %v4000 = vadd.f32 %v3999, %v3967
        %v4001 = vadd.f32 %v4000, %v3969
        %v4002 = vadd.f32 %v4001, %v3971
        %v4003 = vrot.slane %v4002, 4
        %v4004 = vadd.f32 %v4002, %v4003
        %v4005 = vrot.slane %v4004, 2
        %v4006 = vadd.f32 %v4004, %v4005
        %v4007 = vrot.slane %v4006, 1
        %v4008 = vadd.f32 %v4006, %v4007
        %v4009 = vpack.c.bf16 %v3911, %v3909
        %v4010 = vpack.c.bf16 %v3915, %v3913
        %v4011 = vpack.c.bf16 %v3919, %v3917
        %v4012 = vpack.c.bf16 %v3923, %v3921
        %v4013 = vpack.c.bf16 %v3927, %v3925
        %v4014 = vpack.c.bf16 %v3931, %v3929
        %v4015 = vpack.c.bf16 %v3935, %v3933
        %v4016 = vpack.c.bf16 %v3939, %v3937
        %v4017 = vpack.c.bf16 %v3943, %v3941
        %v4018 = vpack.c.bf16 %v3947, %v3945
        %v4019 = vpack.c.bf16 %v3951, %v3949
        %v4020 = vpack.c.bf16 %v3955, %v3953
        %v4021 = vpack.c.bf16 %v3959, %v3957
        %v4022 = vpack.c.bf16 %v3963, %v3961
        %v4023 = vpack.c.bf16 %v3967, %v3965
        %v4024 = vpack.c.bf16 %v3971, %v3969
        %4025 = vmatprep.subr.bf16.mxu0 0
        %4026 = vmatpush1.bf16.msra.mxu0 %v4016
        %4027 = vmatprep.subr.bf16.mxu0 0
        %4028 = vmatpush1.bf16.msra.mxu0 %v4015
        %4029 = vmatprep.subr.bf16.mxu0 0
        %4030 = vmatpush1.bf16.msra.mxu0 %v4014
        %4031 = vmatprep.subr.bf16.mxu0 0
        %4032 = vmatpush1.bf16.msra.mxu0 %v4013
        %4033 = vmatprep.subr.bf16.mxu0 0
        %4034 = vmatpush1.bf16.msra.mxu0 %v4012
        %4035 = vmatprep.subr.bf16.mxu0 0
        %4036 = vmatpush1.bf16.msra.mxu0 %v4011
        %4037 = vmatprep.subr.bf16.mxu0 0
        %4038 = vmatpush1.bf16.msra.mxu0 %v4010
        %4039 = vmatprep.subr.bf16.mxu0 0
        %4040 = vmatpush1.bf16.msra.mxu0 %v4009
        %4041 = vmatprep.subr.bf16.mxu0 0
        %4042 = vmatpush2.bf16.msra.mxu0 %v4024
        %4043 = vmatprep.subr.bf16.mxu0 0
        %4044 = vmatpush2.bf16.msra.mxu0 %v4023
        %4045 = vmatprep.subr.bf16.mxu0 0
        %4046 = vmatpush2.bf16.msra.mxu0 %v4022
        %4047 = vmatprep.subr.bf16.mxu0 0
        %4048 = vmatpush2.bf16.msra.mxu0 %v4021
        %4049 = vmatprep.subr.bf16.mxu0 0
        %4050 = vmatpush2.bf16.msra.mxu0 %v4020
        %4051 = vmatprep.subr.bf16.mxu0 0
        %4052 = vmatpush2.bf16.msra.mxu0 %v4019
        %4053 = vmatprep.subr.bf16.mxu0 0
        %4054 = vmatpush2.bf16.msra.mxu0 %v4018
        %4055 = vmatprep.subr.bf16.mxu0 0
        %4056 = vmatpush2.bf16.msra.mxu0 %v4017
        %4057 = vmatprep.mubr.bf16.mxu0 %v3192
        %4058 = vmatmul.mubr.bf16.gmra.mxu0 %v3191
        %v4059 = vpop.f32.mrf.mxu0
        %v4060 = vadd.f32 0.0, %v4059
        %v4061 = vpop.f32.mrf.mxu0
        %v4062 = vpop.f32.mrf.mxu0
        %v4063 = vpop.f32.mrf.mxu0
        %4064 = vdwg.mxu0
        %v4065 = vrcp.pop %v4008
        %v4066 = vmul.f32 %v4060, %v4065
        %4067 = vst [vmem:[%s3671 + $0x8] sm:$0xff] %v4066
        %v4068 = vld [vmem:[%s3] sm:$0xf]
        %v4069 = vld [vmem:[%s3 + $0x4] sm:$0xf]
        %v4070 = vld [vmem:[%s3 + $0x8] sm:$0xf]
        %v4071 = vld [vmem:[%s3 + $0xc] sm:$0xf]
        %v4072 = vld [vmem:[#allocation3] sm:$0xff]
        %v4073 = vld [vmem:[#allocation3 + $0x8] sm:$0xff]
        %v4074 = vld [vmem:[#allocation3 + $0x10] sm:$0xff]
        %v4075 = vld [vmem:[#allocation3 + $0x18] sm:$0xff]
        %v4076 = vld [vmem:[#allocation3 + $0x20] sm:$0xff]
        %v4077 = vld [vmem:[#allocation3 + $0x28] sm:$0xff]
        %v4078 = vld [vmem:[#allocation3 + $0x30] sm:$0xff]
        %v4079 = vld [vmem:[#allocation3 + $0x38] sm:$0xff]
        %v4080 = vpack.c.bf16 %v4074, %v4072
        %v4081 = vpack.c.bf16 %v4075, %v4073
        %v4082 = vpack.c.bf16 %v4078, %v4076
        %v4083 = vpack.c.bf16 %v4079, %v4077
        %v4084 = vld [vmem:[%s4] sm:$0xff]
        %v4085 = vld [vmem:[%s4 + $0x8] sm:$0xff]
        %v4086 = vld [vmem:[%s4 + $0x10] sm:$0xff]
        %v4087 = vld [vmem:[%s4 + $0x18] sm:$0xff]
        %4089 = vset.pattern.permute.xlu0 0
        %4090 = vperm.xlu0 %4089, %v4084
        %v4091 = vpop.permute.xlu0 %4090
        %4094 = vset.pattern.permute.xlu0 0
        %4095 = vperm.xlu0 %4094, %v4085
        %v4096 = vpop.permute.xlu0 %4095
        %4099 = vset.pattern.permute.xlu0 0
        %4100 = vperm.xlu0 %4099, %v4086
        %v4101 = vpop.permute.xlu0 %4100
        %4104 = vset.pattern.permute.xlu0 0
        %4105 = vperm.xlu0 %4104, %v4087
        %v4106 = vpop.permute.xlu0 %4105
        %v4112 = vunpack.c.l.b16 %v4068
        %v4113 = vunpack.c.l.b16 %v4069
        %v4114 = vunpack.c.l.b16 %v4070
        %v4115 = vunpack.c.l.b16 %v4071
        %v4116 = vpack.c.b16 %v4113, %v4112
        %v4117 = vpack.c.b16 %v4115, %v4114
        %v4119 = vsel %vm350, %v4116, 0
        %v4122 = vsel %vm350, %v4117, 0
        %4124 = vmatprep.subr.bf16.mxu0 0
        %4125 = vmatpush1.bf16.msra.mxu0 0
        %4126 = vmatprep.subr.bf16.mxu0 0
        %4127 = vmatpush1.bf16.msra.mxu0 0
        %4128 = vmatprep.subr.bf16.mxu0 0
        %4129 = vmatpush1.bf16.msra.mxu0 0
        %4130 = vmatprep.subr.bf16.mxu0 0
        %4131 = vmatpush1.bf16.msra.mxu0 0
        %4132 = vmatprep.subr.bf16.mxu0 0
        %4133 = vmatpush1.bf16.msra.mxu0 0
        %4134 = vmatprep.subr.bf16.mxu0 0
        %4135 = vmatpush1.bf16.msra.mxu0 0
        %4136 = vmatprep.subr.bf16.mxu0 %v4083
        %4137 = vmatpush1.bf16.msra.mxu0 %v4082
        %4138 = vmatprep.subr.bf16.mxu0 %v4081
        %4139 = vmatpush1.bf16.msra.mxu0 %v4080
        %4140 = vmatprep.subr.bf16.mxu0 0
        %4141 = vmatpush2.bf16.msra.mxu0 0
        %4142 = vmatprep.subr.bf16.mxu0 0
        %4143 = vmatpush2.bf16.msra.mxu0 0
        %4144 = vmatprep.subr.bf16.mxu0 0
        %4145 = vmatpush2.bf16.msra.mxu0 0
        %4146 = vmatprep.subr.bf16.mxu0 0
        %4147 = vmatpush2.bf16.msra.mxu0 0
        %4148 = vmatprep.subr.bf16.mxu0 0
        %4149 = vmatpush2.bf16.msra.mxu0 0
        %4150 = vmatprep.subr.bf16.mxu0 0
        %4151 = vmatpush2.bf16.msra.mxu0 0
        %4152 = vmatprep.subr.bf16.mxu0 0
        %4153 = vmatpush2.bf16.msra.mxu0 0
        %4154 = vmatprep.subr.bf16.mxu0 0
        %4155 = vmatpush2.bf16.msra.mxu0 0
        %4156 = vmatprep.mubr.bf16.mxu0 0
        %4157 = vmatmul.mubr.bf16.gmra.mxu0 %v4119
        %v4158 = vpop.f32.mrf.mxu0
        %v4159 = vadd.f32 %v4091, %v4158
        %v4160 = vpop.f32.mrf.mxu0
        %v4161 = vadd.f32 %v4091, %v4160
        %v4162 = vpop.f32.mrf.mxu0
        %v4163 = vadd.f32 %v4096, %v4162
        %v4164 = vpop.f32.mrf.mxu0
        %v4165 = vadd.f32 %v4096, %v4164
        %4166 = vmatprep.mubr.bf16.mxu0 0
        %4167 = vmatmul.mubr.bf16.gmra.mxu0 %v4122
        %v4168 = vpop.f32.mrf.mxu0
        %v4169 = vadd.f32 %v4101, %v4168
        %v4170 = vpop.f32.mrf.mxu0
        %v4171 = vadd.f32 %v4101, %v4170
        %v4172 = vpop.f32.mrf.mxu0
        %v4173 = vadd.f32 %v4106, %v4172
        %v4174 = vpop.f32.mrf.mxu0
        %v4175 = vadd.f32 %v4106, %v4174
        %4176 = vdwg.mxu0
        %4177 = vst [vmem:[%s217] sm:$0xff] %v4159
        %4178 = vst [vmem:[%s217 + $0x8] sm:$0xff] %v4161
        %4179 = vst [vmem:[%s217 + $0x10] sm:$0xff] %v4163
        %4180 = vst [vmem:[%s217 + $0x18] sm:$0xff] %v4165
        %4181 = vst [vmem:[%s217 + $0x20] sm:$0xff] %v4169
        %4182 = vst [vmem:[%s217 + $0x28] sm:$0xff] %v4171
        %4183 = vst [vmem:[%s217 + $0x30] sm:$0xff] %v4173
        %4184 = vst [vmem:[%s217 + $0x38] sm:$0xff] %v4175
        %s4185 = sand.u32 %s137, 1
        %s4186 = scalar_lea.sflag [#allocation5], %s4185
        %s4187 = sand.u32 %s137, 1
        %s4188 = smul.addr %s4187, 64
        %s4189 = scalar_lea.vmem [#allocation4], %s4188
        // Predicated region
        $region41: #{tpu_custom_call.1} parent=39 // pred_check
          %p4190 = pneg %p147
        $region42: #{tpu_custom_call.1} parent=39 // pred_check_branch
          %4192 = sbr.rel (%p4190) target = $region44
        $region43: #{tpu_custom_call.1} parent=39 // pred_region
          %s4194 = ssub.s32 1024, 1024
          %4195 = vsyncadd %s4186, %s4194
          %s4196 = smul.addr %s19, 8
          %s4197 = smul.addr %s4196, 128
          %s4198 = scalar_lea.hbm %s5, %s4197
          %s4199 = sshll.u32 %s4189, 4
          %s4200 = int_to_ptr.vmem [resolvable:$true] %s4199
          %4205 = dma.vmem_to_hbm [thread:$0]  %s4200, 1024, %s4198, %s4186, 256, 256, 16
        $region44: #{tpu_custom_call.1} parent=39 // pred_fallthru
          _
      $region40: #{tpu_custom_call.1} parent=5 // pred_fallthru
        _
      %p4206 = scmp.le.s32.totalorder 2, %s14
      // Predicated region
      $region45: #{tpu_custom_call.1} parent=5 // pred_check
        %p4207 = pneg %p4206
      $region46: #{tpu_custom_call.1} parent=5 // pred_check_branch
        %4209 = sbr.rel (%p4207) target = $region48
      $region47: #{tpu_custom_call.1} parent=5 // pred_region
        %s4210 = ssub.s32 %s14, 2
        // Predicated region
        $region49: #{tpu_custom_call.1} parent=47 // pred_check
          %p4211 = pneg %p153
        $region50: #{tpu_custom_call.1} parent=47 // pred_check_branch
          %4213 = sbr.rel (%p4211) target = $region52
        $region51: #{tpu_custom_call.1} parent=47 // pred_region
          %s4214 = sand.u32 %s138, 1
          %s4215 = scalar_lea.sflag [#allocation5], %s4214
          %s4216 = sand.u32 %s138, 1
          %s4217 = smul.addr %s4216, 64
          %s4218 = scalar_lea.vmem [#allocation4], %s4217
          %4219 = dma.done %s4215, 1024
        $region52: #{tpu_custom_call.1} parent=47 // pred_fallthru
          _
      $region48: #{tpu_custom_call.1} parent=5 // pred_fallthru
        _
    $region6: #{tpu_custom_call.1} parent=1 // loop_footer
      %s18 = sadd.s32 1, %s14
    $region7: #{tpu_custom_call.1} parent=1 // loop_footer_branch
      %13 = sbr.rel target = $region3
    $region8: #{tpu_custom_call.1} parent=1 // loop_exit
      _
    %4220 = vsyncpa [#allocation5], 1
    %s4221 = scalar_lea.sflag [#allocation5], 1
    %4222 = vsyncpa %s4221, 1

</llo_original>
